<compile_context>
chip_gen: v5e
topology: v5e:2x2
jax: 0.10.0
libtpu: 0.0.40
codegen_flags: <defaults>
</compile_context>

<pallas_src>
import jax
import jax.numpy as jnp
from jax.experimental import pallas as pl
from jax.experimental.pallas import tpu as pltpu

# Fixed model geometry (from the PyTorch module).
C_IN, L_IN = 64, 320
K = 5
L1, L2, L3 = 160, 80, 40            # conv output lengths (stride 2, pad 2)
C1, C2, C3 = 32, 16, 8              # conv output channels
H1, H2 = 64, 5                      # LSTM hidden sizes
GP1, GP2 = 64, 64                   # per-direction gate pad (LSTM1 exact, LSTM2 5->64)
NOUT = 5


# ----------------------------------------------------------------------------
# Fused kernel: conv stack -> flatten -> biLSTM1 -> biLSTM2 -> FC, per batch tile
# ----------------------------------------------------------------------------
def _fused_kernel(x_ref, w1_ref, b1_ref, w2_ref, b2_ref, w3_ref, b3_ref,
                  wl1_ref, bl1_ref, wl2_ref, bl2_ref, wfc_ref, bfc_ref,
                  o_ref,
                  xpad_ref, a1pad_ref, a2pad_ref, flat_ref):
    bt = x_ref.shape[0]                                   # batch tile (static)

    def conv5(src_ref, w_ref, b_ref, lout, cin):
        # Conv1d(k=5, stride=2, pad=2) as 5 shifted [lout,cin]x[cin,cout]
        # matmuls; bf16 x bf16 -> f32 accumulate; BN folded into w/b host-side.
        cout = w_ref.shape[1]
        acc = jnp.zeros((lout, cout), jnp.float32)
        for k in range(K):
            xk = src_ref[pl.ds(k, lout, stride=2), :].astype(jnp.bfloat16)
            acc = acc + jnp.dot(xk, w_ref[k * cin:(k + 1) * cin, :],
                                preferred_element_type=jnp.float32)
        return jnp.maximum(acc + b_ref[...], 0.0)

    def store_padded(dst_ref, val, lout, cout):
        # Value rows at [2, 2+lout); two zero rows of conv padding per side.
        dst_ref[0:2, :] = jnp.zeros((2, cout), jnp.float32)
        dst_ref[pl.ds(2, lout), :] = val
        dst_ref[pl.ds(2 + lout, 2), :] = jnp.zeros((2, cout), jnp.float32)

    # ---- conv1 -> conv2 -> conv3 (+BN+ReLU); intermediates live in VMEM only.
    for s in range(bt):
        xs_t = jnp.transpose(x_ref[s], (1, 0))            # NCL -> [320, 64] (XLU)
        store_padded(xpad_ref, xs_t, L_IN, C_IN)
        a1 = conv5(xpad_ref, w1_ref, b1_ref, L1, C_IN)    # [160, 32]
        store_padded(a1pad_ref, a1, L1, C1)
        a2 = conv5(a1pad_ref, w2_ref, b2_ref, L2, C1)     # [80, 16]
        store_padded(a2pad_ref, a2, L2, C2)
        a3 = conv5(a2pad_ref, w3_ref, b3_ref, L3, C2)     # [40, 8]
        # Channel-major rows so the tail can read per-channel [bt, 40] slabs;
        # rows s*8 + c hold sample s, conv3 channel c over time.
        flat_ref[s * C3:(s + 1) * C3, :] = jnp.transpose(a3, (1, 0))

    # ---- bidirectional LSTM1 -> LSTM2 -> FC (seq_len == 1, h0 = c0 = 0).
    # Gate columns: [i_f|i_b | g_f|g_b | o_f|o_b], each direction padded to 64
    # lanes, so i/g/o slabs are 128-lane aligned.  Forget gate dropped (f*c0==0),
    # W_hh unused (h0==0); padded lanes stay exactly zero through the cell.
    def bilstm_h(g):                                      # g: [bt, 384]
        i = jax.nn.sigmoid(g[:, 0:128])
        cell = i * jnp.tanh(g[:, 128:256])
        o = jax.nn.sigmoid(g[:, 256:384])
        return o * jnp.tanh(cell)                         # [bt, 128] = [h_f | h_b]

    acc1 = jnp.zeros((bt, 6 * GP1), jnp.float32)
    for c in range(C3):
        if bt > 1:
            xc = flat_ref[pl.ds(c, bt, stride=C3), :]     # [bt, 40]
        else:
            xc = flat_ref[c:c + 1, :]
        acc1 = acc1 + jnp.dot(xc.astype(jnp.bfloat16), wl1_ref[c],
                              preferred_element_type=jnp.float32)
    h1 = bilstm_h(acc1 + bl1_ref[...])                    # [bt, 128]
    g2 = jnp.dot(h1.astype(jnp.bfloat16), wl2_ref[...],
                 preferred_element_type=jnp.float32) + bl2_ref[...]
    h2 = bilstm_h(g2)                                     # real lanes 0:5 & 64:69
    out = jnp.dot(h2.astype(jnp.bfloat16), wfc_ref[...],
                  preferred_element_type=jnp.float32) + bfc_ref[...]
    for s in range(bt):                                   # [1,5] -> [1,1,5] stores
        o_ref[s:s + 1, :, :] = out[s:s + 1, :][None]


def _const(shape):
    if len(shape) == 2:
        return pl.BlockSpec(shape, lambda b: (0, 0))
    return pl.BlockSpec(shape, lambda b: (0, 0, 0))


def _pick_batch_tile(batch):
    # Block the batch; keep >= 2 grid steps so both v7x TensorCores get work.
    for bt in (8, 4, 2):
        if batch % bt == 0 and batch // bt >= 2:
            return bt
    return 1


@jax.jit
def conv_lstm_forward(x, packed):
    # x: [B, 1, 64, 320] (mirrors PyTorch input); squeeze(1) is a free bitcast.
    x = x[:, 0]                                           # [B, 64, 320] (NCL)
    batch = x.shape[0]
    bt = _pick_batch_tile(batch)

    out3 = pl.pallas_call(
        _fused_kernel,
        out_shape=jax.ShapeDtypeStruct((batch, 1, NOUT), jnp.float32),
        grid=(batch // bt,),
        in_specs=[
            pl.BlockSpec((bt, C_IN, L_IN), lambda b: (b, 0, 0)),
            # Constant-index weight blocks: Pallas skips the re-DMA when the
            # block index does not change across grid steps.
            _const((K * C_IN, C1)), _const((1, C1)),
            _const((K * C1, C2)), _const((1, C2)),
            _const((K * C2, C3)), _const((1, C3)),
            _const((C3, L3, 6 * GP1)), _const((1, 6 * GP1)),
            _const((2 * H1, 6 * GP2)), _const((1, 6 * GP2)),
            _const((2 * GP2, NOUT)), _const((1, NOUT)),
        ],
        out_specs=pl.BlockSpec((bt, 1, NOUT), lambda b: (b, 0, 0)),
        scratch_shapes=[
            pltpu.VMEM((L_IN + 4, C_IN), jnp.float32),    # time-padded input
            pltpu.VMEM((L1 + 4, C1), jnp.float32),        # time-padded conv1 out
            pltpu.VMEM((L2 + 4, C2), jnp.float32),        # time-padded conv2 out
            pltpu.VMEM((C3 * bt, L3), jnp.float32),       # channel-major conv3 out
        ],
        compiler_params=pltpu.CompilerParams(
            dimension_semantics=("parallel",)),
    )(x, packed["w1"], packed["b1"], packed["w2"], packed["b2"],
      packed["w3"], packed["b3"], packed["wl1"], packed["bl1"],
      packed["wl2"], packed["bl2"], packed["wfc"], packed["bfc"])

    return out3[:, 0, :]                                  # [B, 5]


# ----------------------------------------------------------------------------
# Parameters: PyTorch-layout init + one-time host-side packing / BN folding
# ----------------------------------------------------------------------------
def init_params(key):
    ks = iter(jax.random.split(key, 48))

    def uni(shape, fan_in):
        bound = 1.0 / jnp.sqrt(float(fan_in))
        return jax.random.uniform(next(ks), shape, jnp.float32, -bound, bound)

    def conv_bn(cin, cout):
        return {
            "w": uni((cout, cin, K), cin * K),
            "b": uni((cout,), cin * K),
            "gamma": 1.0 + 0.1 * jax.random.normal(next(ks), (cout,), jnp.float32),
            "beta": 0.1 * jax.random.normal(next(ks), (cout,), jnp.float32),
            "mean": 0.1 * jax.random.normal(next(ks), (cout,), jnp.float32),
            "var": 1.0 + 0.1 * jax.random.uniform(next(ks), (cout,), jnp.float32),
        }

    def lstm_dir(din, h):
        # weight_hh is mathematically unused (seq_len == 1, h0 == 0).
        return {"w_ih": uni((4 * h, din), h),
                "b_ih": uni((4 * h,), h),
                "b_hh": uni((4 * h,), h)}

    return {
        "conv1": conv_bn(C_IN, C1),
        "conv2": conv_bn(C1, C2),
        "conv3": conv_bn(C2, C3),
        "lstm1_f": lstm_dir(C3 * L3, H1),
        "lstm1_b": lstm_dir(C3 * L3, H1),
        "lstm2_f": lstm_dir(2 * H1, H2),
        "lstm2_b": lstm_dir(2 * H1, H2),
        "fc_w": uni((NOUT, 2 * H2), 2 * H2),
        "fc_b": uni((NOUT,), 2 * H2),
    }


def _fold_conv_bn(layer, eps=1e-5):
    # Fold inference BatchNorm into conv weights/bias; rearrange [Cout,Cin,K]
    # into K row-stacked [Cin,Cout] taps -> [K*Cin, Cout] (bf16 weights).
    w = layer["w"]
    cout, cin, k = w.shape
    inv = layer["gamma"] / jnp.sqrt(layer["var"] + eps)
    w = w * inv[:, None, None]
    bias = (layer["b"] - layer["mean"]) * inv + layer["beta"]
    w_taps = jnp.transpose(w, (2, 1, 0)).reshape(k * cin, cout)
    return w_taps.astype(jnp.bfloat16), bias.reshape(1, cout).astype(jnp.float32)


def _pack_bilstm(pf, pb, hidden, pad_to):
    # -> W: [Din, 6*pad_to] with columns [i_f|i_b | g_f|g_b | o_f|o_b] (each
    #    direction's gate zero-padded to pad_to lanes), b: [1, 6*pad_to].
    # PyTorch gate row order is (i, f, g, o); forget gate dropped (c0 == 0).
    def gate(p, gi):
        w = p["w_ih"][gi * hidden:(gi + 1) * hidden, :].T          # [Din, hidden]
        b = (p["b_ih"] + p["b_hh"])[gi * hidden:(gi + 1) * hidden]
        return (jnp.pad(w, ((0, 0), (0, pad_to - hidden))),
                jnp.pad(b, (0, pad_to - hidden)))

    cols, bias = [], []
    for gi in (0, 2, 3):                                           # i, g, o
        wf, bfv = gate(pf, gi)
        wb, bbv = gate(pb, gi)
        cols += [wf, wb]
        bias += [bfv, bbv]
    return jnp.concatenate(cols, axis=1), jnp.concatenate(bias).reshape(1, -1)


def pack_params(p):
    w1, b1 = _fold_conv_bn(p["conv1"])
    w2, b2 = _fold_conv_bn(p["conv2"])
    w3, b3 = _fold_conv_bn(p["conv3"])

    # LSTM1 consumes flatten(conv3) in PyTorch NCL order (idx = c*40 + t); the
    # kernel contracts per conv3 channel, so reshape rows to [8, 40, 384].
    wl1, bl1 = _pack_bilstm(p["lstm1_f"], p["lstm1_b"], H1, GP1)    # [320, 384]
    wl1 = wl1.reshape(C3, L3, 6 * GP1)

    # LSTM2 consumes h1 = [h_fwd(64) | h_bwd(64)] (exactly PyTorch order).
    wl2, bl2 = _pack_bilstm(p["lstm2_f"], p["lstm2_b"], H2, GP2)    # [128, 384]

    # FC consumes h2 with real lanes 0:5 (fwd) and 64:69 (bwd); zero elsewhere.
    wfc = jnp.zeros((2 * GP2, NOUT), jnp.float32)
    wfc = wfc.at[0:H2, :].set(p["fc_w"][:, 0:H2].T)
    wfc = wfc.at[GP2:GP2 + H2, :].set(p["fc_w"][:, H2:2 * H2].T)

    return {
        "w1": w1, "b1": b1, "w2": w2, "b2": b2, "w3": w3, "b3": b3,
        "wl1": wl1.astype(jnp.bfloat16), "bl1": bl1.astype(jnp.float32),
        "wl2": wl2.astype(jnp.bfloat16), "bl2": bl2.astype(jnp.float32),
        "wfc": wfc.astype(jnp.bfloat16),
        "bfc": p["fc_b"].reshape(1, NOUT).astype(jnp.float32),
    }


if __name__ == "__main__":
    key = jax.random.PRNGKey(0)
    k_param, k_in = jax.random.split(key)
    params = init_params(k_param)
    packed = pack_params(params)

    # Input length 320 -> conv lengths 160/80/40 -> flatten 8*40 = 320, matching
    # the LSTM1 input_size=320 required by the PyTorch module.
    x = jax.random.normal(k_in, (2, 1, C_IN, L_IN), dtype=jnp.float32)

    out = conv_lstm_forward(x, packed)
    out = jax.block_until_ready(out)

    assert out.shape == (2, NOUT), out.shape
    assert bool(jnp.all(jnp.isfinite(out)))
    print("KERNEL_OK")
</pallas_src>

<mosaic_0001>
module attributes {stable_mosaic.version = 11 : i64} {
  func.func @_fused_kernel(%arg0: i32, %arg1: memref<1x64x320xf32, #tpu.memory_space<vmem>>, %arg2: memref<320x32xbf16, #tpu.memory_space<vmem>>, %arg3: memref<1x32xf32, #tpu.memory_space<vmem>>, %arg4: memref<160x16xbf16, #tpu.memory_space<vmem>>, %arg5: memref<1x16xf32, #tpu.memory_space<vmem>>, %arg6: memref<80x8xbf16, #tpu.memory_space<vmem>>, %arg7: memref<1x8xf32, #tpu.memory_space<vmem>>, %arg8: memref<8x40x384xbf16, #tpu.memory_space<vmem>>, %arg9: memref<1x384xf32, #tpu.memory_space<vmem>>, %arg10: memref<128x384xbf16, #tpu.memory_space<vmem>>, %arg11: memref<1x384xf32, #tpu.memory_space<vmem>>, %arg12: memref<128x5xbf16, #tpu.memory_space<vmem>>, %arg13: memref<1x5xf32, #tpu.memory_space<vmem>>, %arg14: memref<1x1x5xf32, #tpu.memory_space<vmem>>, %arg15: memref<324x64xf32, #tpu.memory_space<vmem>>, %arg16: memref<164x32xf32, #tpu.memory_space<vmem>>, %arg17: memref<84x16xf32, #tpu.memory_space<vmem>>, %arg18: memref<8x40xf32, #tpu.memory_space<vmem>>) attributes {dimension_semantics = [#tpu.dimension_semantics<parallel>], iteration_bounds = array<i64: 2>, scalar_prefetch = 0 : i64, scratch_operands = 4 : i64, tpu.core_type = #tpu.core_type<tc>, window_params = [{transform_indices = @transform_0, window_bounds = array<i64: 1, 64, 320>}, {pipeline_mode = #tpu.pipeline_mode<synchronous>, transform_indices = @transform_1, window_bounds = array<i64: 320, 32>}, {pipeline_mode = #tpu.pipeline_mode<synchronous>, transform_indices = @transform_2, window_bounds = array<i64: 1, 32>}, {pipeline_mode = #tpu.pipeline_mode<synchronous>, transform_indices = @transform_3, window_bounds = array<i64: 160, 16>}, {pipeline_mode = #tpu.pipeline_mode<synchronous>, transform_indices = @transform_4, window_bounds = array<i64: 1, 16>}, {pipeline_mode = #tpu.pipeline_mode<synchronous>, transform_indices = @transform_5, window_bounds = array<i64: 80, 8>}, {pipeline_mode = #tpu.pipeline_mode<synchronous>, transform_indices = @transform_6, window_bounds = array<i64: 1, 8>}, {pipeline_mode = #tpu.pipeline_mode<synchronous>, transform_indices = @transform_7, window_bounds = array<i64: 8, 40, 384>}, {pipeline_mode = #tpu.pipeline_mode<synchronous>, transform_indices = @transform_8, window_bounds = array<i64: 1, 384>}, {pipeline_mode = #tpu.pipeline_mode<synchronous>, transform_indices = @transform_9, window_bounds = array<i64: 128, 384>}, {pipeline_mode = #tpu.pipeline_mode<synchronous>, transform_indices = @transform_10, window_bounds = array<i64: 1, 384>}, {pipeline_mode = #tpu.pipeline_mode<synchronous>, transform_indices = @transform_11, window_bounds = array<i64: 128, 5>}, {pipeline_mode = #tpu.pipeline_mode<synchronous>, transform_indices = @transform_12, window_bounds = array<i64: 1, 5>}, {transform_indices = @transform_13, window_bounds = array<i64: 1, 1, 5>}]} {
    %c0 = arith.constant 0 : index
    %c0_0 = arith.constant 0 : index
    %c0_1 = arith.constant 0 : index
    %0 = vector.load %arg1[%c0, %c0_0, %c0_1] : memref<1x64x320xf32, #tpu.memory_space<vmem>>, vector<1x64x320xf32>
    %1 = vector.shape_cast %0 : vector<1x64x320xf32> to vector<64x320xf32>
    %2 = tpu.transpose %1, [1, 0] : vector<64x320xf32> -> vector<320x64xf32>
    %cst = arith.constant 0.000000e+00 : f32
    %3 = vector.broadcast %cst : f32 to vector<2x64xf32>
    %c0_2 = arith.constant 0 : index
    %c0_3 = arith.constant 0 : index
    %4 = vector.load %arg15[%c0_2, %c0_3] : memref<324x64xf32, #tpu.memory_space<vmem>>, vector<2x64xf32>
    tpu.vector_store %arg15[%c0_2, %c0_3], %3 {strides = array<i32>} : memref<324x64xf32, #tpu.memory_space<vmem>>, vector<2x64xf32>,
    %c2 = arith.constant 2 : index
    %c0_4 = arith.constant 0 : index
    %5 = vector.load %arg15[%c2, %c0_4] : memref<324x64xf32, #tpu.memory_space<vmem>>, vector<320x64xf32>
    tpu.vector_store %arg15[%c2, %c0_4], %2 {strides = array<i32>} : memref<324x64xf32, #tpu.memory_space<vmem>>, vector<320x64xf32>,
    %cst_5 = arith.constant 0.000000e+00 : f32
    %6 = vector.broadcast %cst_5 : f32 to vector<2x64xf32>
    %c322 = arith.constant 322 : index
    %c0_6 = arith.constant 0 : index
    %7 = vector.load %arg15[%c322, %c0_6] : memref<324x64xf32, #tpu.memory_space<vmem>>, vector<2x64xf32>
    tpu.vector_store %arg15[%c322, %c0_6], %6 {strides = array<i32>} : memref<324x64xf32, #tpu.memory_space<vmem>>, vector<2x64xf32>,
    %cst_7 = arith.constant 0.000000e+00 : f32
    %8 = vector.broadcast %cst_7 : f32 to vector<160x32xf32>
    %c0_8 = arith.constant 0 : index
    %c0_9 = arith.constant 0 : index
    %9 = tpu.strided_load %arg15[%c0_8, %c0_9] {strides = array<i32: 2, 1>} : memref<324x64xf32, #tpu.memory_space<vmem>>, vector<160x64xf32>
    %10 = arith.truncf %9 : vector<160x64xf32> to vector<160x64xbf16>
    %c0_10 = arith.constant 0 : index
    %c0_11 = arith.constant 0 : index
    %11 = vector.load %arg2[%c0_10, %c0_11] : memref<320x32xbf16, #tpu.memory_space<vmem>>, vector<64x32xbf16>
    %cst_12 = arith.constant dense<0.000000e+00> : vector<160x32xf32>
    %12 = tpu.matmul %10, %11, %cst_12 {dimension_numbers = #tpu.dot_dimension_numbers<[1], [0], [0], [1], [0, 0, 1, 1], [], []>} : vector<160x64xbf16>, vector<64x32xbf16>, vector<160x32xf32> -> vector<160x32xf32>
    %13 = arith.addf %8, %12 : vector<160x32xf32>
    %c1 = arith.constant 1 : index
    %c0_13 = arith.constant 0 : index
    %14 = tpu.strided_load %arg15[%c1, %c0_13] {strides = array<i32: 2, 1>} : memref<324x64xf32, #tpu.memory_space<vmem>>, vector<160x64xf32>
    %15 = arith.truncf %14 : vector<160x64xf32> to vector<160x64xbf16>
    %c64 = arith.constant 64 : index
    %c0_14 = arith.constant 0 : index
    %16 = vector.load %arg2[%c64, %c0_14] : memref<320x32xbf16, #tpu.memory_space<vmem>>, vector<64x32xbf16>
    %cst_15 = arith.constant dense<0.000000e+00> : vector<160x32xf32>
    %17 = tpu.matmul %15, %16, %cst_15 {dimension_numbers = #tpu.dot_dimension_numbers<[1], [0], [0], [1], [0, 0, 1, 1], [], []>} : vector<160x64xbf16>, vector<64x32xbf16>, vector<160x32xf32> -> vector<160x32xf32>
    %18 = arith.addf %13, %17 : vector<160x32xf32>
    %c2_16 = arith.constant 2 : index
    %c0_17 = arith.constant 0 : index
    %19 = tpu.strided_load %arg15[%c2_16, %c0_17] {strides = array<i32: 2, 1>} : memref<324x64xf32, #tpu.memory_space<vmem>>, vector<160x64xf32>
    %20 = arith.truncf %19 : vector<160x64xf32> to vector<160x64xbf16>
    %c128 = arith.constant 128 : index
    %c0_18 = arith.constant 0 : index
    %21 = vector.load %arg2[%c128, %c0_18] : memref<320x32xbf16, #tpu.memory_space<vmem>>, vector<64x32xbf16>
    %cst_19 = arith.constant dense<0.000000e+00> : vector<160x32xf32>
    %22 = tpu.matmul %20, %21, %cst_19 {dimension_numbers = #tpu.dot_dimension_numbers<[1], [0], [0], [1], [0, 0, 1, 1], [], []>} : vector<160x64xbf16>, vector<64x32xbf16>, vector<160x32xf32> -> vector<160x32xf32>
    %23 = arith.addf %18, %22 : vector<160x32xf32>
    %c3 = arith.constant 3 : index
    %c0_20 = arith.constant 0 : index
    %24 = tpu.strided_load %arg15[%c3, %c0_20] {strides = array<i32: 2, 1>} : memref<324x64xf32, #tpu.memory_space<vmem>>, vector<160x64xf32>
    %25 = arith.truncf %24 : vector<160x64xf32> to vector<160x64xbf16>
    %c192 = arith.constant 192 : index
    %c0_21 = arith.constant 0 : index
    %26 = vector.load %arg2[%c192, %c0_21] : memref<320x32xbf16, #tpu.memory_space<vmem>>, vector<64x32xbf16>
    %cst_22 = arith.constant dense<0.000000e+00> : vector<160x32xf32>
    %27 = tpu.matmul %25, %26, %cst_22 {dimension_numbers = #tpu.dot_dimension_numbers<[1], [0], [0], [1], [0, 0, 1, 1], [], []>} : vector<160x64xbf16>, vector<64x32xbf16>, vector<160x32xf32> -> vector<160x32xf32>
    %28 = arith.addf %23, %27 : vector<160x32xf32>
    %c4 = arith.constant 4 : index
    %c0_23 = arith.constant 0 : index
    %29 = tpu.strided_load %arg15[%c4, %c0_23] {strides = array<i32: 2, 1>} : memref<324x64xf32, #tpu.memory_space<vmem>>, vector<160x64xf32>
    %30 = arith.truncf %29 : vector<160x64xf32> to vector<160x64xbf16>
    %c256 = arith.constant 256 : index
    %c0_24 = arith.constant 0 : index
    %31 = vector.load %arg2[%c256, %c0_24] : memref<320x32xbf16, #tpu.memory_space<vmem>>, vector<64x32xbf16>
    %cst_25 = arith.constant dense<0.000000e+00> : vector<160x32xf32>
    %32 = tpu.matmul %30, %31, %cst_25 {dimension_numbers = #tpu.dot_dimension_numbers<[1], [0], [0], [1], [0, 0, 1, 1], [], []>} : vector<160x64xbf16>, vector<64x32xbf16>, vector<160x32xf32> -> vector<160x32xf32>
    %33 = arith.addf %28, %32 : vector<160x32xf32>
    %c0_26 = arith.constant 0 : index
    %c0_27 = arith.constant 0 : index
    %34 = vector.load %arg3[%c0_26, %c0_27] : memref<1x32xf32, #tpu.memory_space<vmem>>, vector<1x32xf32>
    %35 = vector.broadcast %34 : vector<1x32xf32> to vector<160x32xf32>
    %36 = arith.addf %33, %35 : vector<160x32xf32>
    %cst_28 = arith.constant 0.000000e+00 : f32
    %37 = vector.broadcast %cst_28 : f32 to vector<160x32xf32>
    %38 = arith.maximumf %36, %37 : vector<160x32xf32>
    %cst_29 = arith.constant 0.000000e+00 : f32
    %39 = vector.broadcast %cst_29 : f32 to vector<2x32xf32>
    %c0_30 = arith.constant 0 : index
    %c0_31 = arith.constant 0 : index
    %40 = vector.load %arg16[%c0_30, %c0_31] : memref<164x32xf32, #tpu.memory_space<vmem>>, vector<2x32xf32>
    tpu.vector_store %arg16[%c0_30, %c0_31], %39 {strides = array<i32>} : memref<164x32xf32, #tpu.memory_space<vmem>>, vector<2x32xf32>,
    %c2_32 = arith.constant 2 : index
    %c0_33 = arith.constant 0 : index
    %41 = vector.load %arg16[%c2_32, %c0_33] : memref<164x32xf32, #tpu.memory_space<vmem>>, vector<160x32xf32>
    tpu.vector_store %arg16[%c2_32, %c0_33], %38 {strides = array<i32>} : memref<164x32xf32, #tpu.memory_space<vmem>>, vector<160x32xf32>,
    %cst_34 = arith.constant 0.000000e+00 : f32
    %42 = vector.broadcast %cst_34 : f32 to vector<2x32xf32>
    %c162 = arith.constant 162 : index
    %c0_35 = arith.constant 0 : index
    %43 = vector.load %arg16[%c162, %c0_35] : memref<164x32xf32, #tpu.memory_space<vmem>>, vector<2x32xf32>
    tpu.vector_store %arg16[%c162, %c0_35], %42 {strides = array<i32>} : memref<164x32xf32, #tpu.memory_space<vmem>>, vector<2x32xf32>,
    %cst_36 = arith.constant 0.000000e+00 : f32
    %44 = vector.broadcast %cst_36 : f32 to vector<80x16xf32>
    %c0_37 = arith.constant 0 : index
    %c0_38 = arith.constant 0 : index
    %45 = tpu.strided_load %arg16[%c0_37, %c0_38] {strides = array<i32: 2, 1>} : memref<164x32xf32, #tpu.memory_space<vmem>>, vector<80x32xf32>
    %46 = arith.truncf %45 : vector<80x32xf32> to vector<80x32xbf16>
    %c0_39 = arith.constant 0 : index
    %c0_40 = arith.constant 0 : index
    %47 = vector.load %arg4[%c0_39, %c0_40] : memref<160x16xbf16, #tpu.memory_space<vmem>>, vector<32x16xbf16>
    %cst_41 = arith.constant dense<0.000000e+00> : vector<80x16xf32>
    %48 = tpu.matmul %46, %47, %cst_41 {dimension_numbers = #tpu.dot_dimension_numbers<[1], [0], [0], [1], [0, 0, 1, 1], [], []>} : vector<80x32xbf16>, vector<32x16xbf16>, vector<80x16xf32> -> vector<80x16xf32>
    %49 = arith.addf %44, %48 : vector<80x16xf32>
    %c1_42 = arith.constant 1 : index
    %c0_43 = arith.constant 0 : index
    %50 = tpu.strided_load %arg16[%c1_42, %c0_43] {strides = array<i32: 2, 1>} : memref<164x32xf32, #tpu.memory_space<vmem>>, vector<80x32xf32>
    %51 = arith.truncf %50 : vector<80x32xf32> to vector<80x32xbf16>
    %c32 = arith.constant 32 : index
    %c0_44 = arith.constant 0 : index
    %52 = vector.load %arg4[%c32, %c0_44] : memref<160x16xbf16, #tpu.memory_space<vmem>>, vector<32x16xbf16>
    %cst_45 = arith.constant dense<0.000000e+00> : vector<80x16xf32>
    %53 = tpu.matmul %51, %52, %cst_45 {dimension_numbers = #tpu.dot_dimension_numbers<[1], [0], [0], [1], [0, 0, 1, 1], [], []>} : vector<80x32xbf16>, vector<32x16xbf16>, vector<80x16xf32> -> vector<80x16xf32>
    %54 = arith.addf %49, %53 : vector<80x16xf32>
    %c2_46 = arith.constant 2 : index
    %c0_47 = arith.constant 0 : index
    %55 = tpu.strided_load %arg16[%c2_46, %c0_47] {strides = array<i32: 2, 1>} : memref<164x32xf32, #tpu.memory_space<vmem>>, vector<80x32xf32>
    %56 = arith.truncf %55 : vector<80x32xf32> to vector<80x32xbf16>
    %c64_48 = arith.constant 64 : index
    %c0_49 = arith.constant 0 : index
    %57 = vector.load %arg4[%c64_48, %c0_49] : memref<160x16xbf16, #tpu.memory_space<vmem>>, vector<32x16xbf16>
    %cst_50 = arith.constant dense<0.000000e+00> : vector<80x16xf32>
    %58 = tpu.matmul %56, %57, %cst_50 {dimension_numbers = #tpu.dot_dimension_numbers<[1], [0], [0], [1], [0, 0, 1, 1], [], []>} : vector<80x32xbf16>, vector<32x16xbf16>, vector<80x16xf32> -> vector<80x16xf32>
    %59 = arith.addf %54, %58 : vector<80x16xf32>
    %c3_51 = arith.constant 3 : index
    %c0_52 = arith.constant 0 : index
    %60 = tpu.strided_load %arg16[%c3_51, %c0_52] {strides = array<i32: 2, 1>} : memref<164x32xf32, #tpu.memory_space<vmem>>, vector<80x32xf32>
    %61 = arith.truncf %60 : vector<80x32xf32> to vector<80x32xbf16>
    %c96 = arith.constant 96 : index
    %c0_53 = arith.constant 0 : index
    %62 = vector.load %arg4[%c96, %c0_53] : memref<160x16xbf16, #tpu.memory_space<vmem>>, vector<32x16xbf16>
    %cst_54 = arith.constant dense<0.000000e+00> : vector<80x16xf32>
    %63 = tpu.matmul %61, %62, %cst_54 {dimension_numbers = #tpu.dot_dimension_numbers<[1], [0], [0], [1], [0, 0, 1, 1], [], []>} : vector<80x32xbf16>, vector<32x16xbf16>, vector<80x16xf32> -> vector<80x16xf32>
    %64 = arith.addf %59, %63 : vector<80x16xf32>
    %c4_55 = arith.constant 4 : index
    %c0_56 = arith.constant 0 : index
    %65 = tpu.strided_load %arg16[%c4_55, %c0_56] {strides = array<i32: 2, 1>} : memref<164x32xf32, #tpu.memory_space<vmem>>, vector<80x32xf32>
    %66 = arith.truncf %65 : vector<80x32xf32> to vector<80x32xbf16>
    %c128_57 = arith.constant 128 : index
    %c0_58 = arith.constant 0 : index
    %67 = vector.load %arg4[%c128_57, %c0_58] : memref<160x16xbf16, #tpu.memory_space<vmem>>, vector<32x16xbf16>
    %cst_59 = arith.constant dense<0.000000e+00> : vector<80x16xf32>
    %68 = tpu.matmul %66, %67, %cst_59 {dimension_numbers = #tpu.dot_dimension_numbers<[1], [0], [0], [1], [0, 0, 1, 1], [], []>} : vector<80x32xbf16>, vector<32x16xbf16>, vector<80x16xf32> -> vector<80x16xf32>
    %69 = arith.addf %64, %68 : vector<80x16xf32>
    %c0_60 = arith.constant 0 : index
    %c0_61 = arith.constant 0 : index
    %70 = vector.load %arg5[%c0_60, %c0_61] : memref<1x16xf32, #tpu.memory_space<vmem>>, vector<1x16xf32>
    %71 = vector.broadcast %70 : vector<1x16xf32> to vector<80x16xf32>
    %72 = arith.addf %69, %71 : vector<80x16xf32>
    %cst_62 = arith.constant 0.000000e+00 : f32
    %73 = vector.broadcast %cst_62 : f32 to vector<80x16xf32>
    %74 = arith.maximumf %72, %73 : vector<80x16xf32>
    %cst_63 = arith.constant 0.000000e+00 : f32
    %75 = vector.broadcast %cst_63 : f32 to vector<2x16xf32>
    %c0_64 = arith.constant 0 : index
    %c0_65 = arith.constant 0 : index
    %76 = vector.load %arg17[%c0_64, %c0_65] : memref<84x16xf32, #tpu.memory_space<vmem>>, vector<2x16xf32>
    tpu.vector_store %arg17[%c0_64, %c0_65], %75 {strides = array<i32>} : memref<84x16xf32, #tpu.memory_space<vmem>>, vector<2x16xf32>,
    %c2_66 = arith.constant 2 : index
    %c0_67 = arith.constant 0 : index
    %77 = vector.load %arg17[%c2_66, %c0_67] : memref<84x16xf32, #tpu.memory_space<vmem>>, vector<80x16xf32>
    tpu.vector_store %arg17[%c2_66, %c0_67], %74 {strides = array<i32>} : memref<84x16xf32, #tpu.memory_space<vmem>>, vector<80x16xf32>,
    %cst_68 = arith.constant 0.000000e+00 : f32
    %78 = vector.broadcast %cst_68 : f32 to vector<2x16xf32>
    %c82 = arith.constant 82 : index
    %c0_69 = arith.constant 0 : index
    %79 = vector.load %arg17[%c82, %c0_69] : memref<84x16xf32, #tpu.memory_space<vmem>>, vector<2x16xf32>
    tpu.vector_store %arg17[%c82, %c0_69], %78 {strides = array<i32>} : memref<84x16xf32, #tpu.memory_space<vmem>>, vector<2x16xf32>,
    %cst_70 = arith.constant 0.000000e+00 : f32
    %80 = vector.broadcast %cst_70 : f32 to vector<40x8xf32>
    %c0_71 = arith.constant 0 : index
    %c0_72 = arith.constant 0 : index
    %81 = tpu.strided_load %arg17[%c0_71, %c0_72] {strides = array<i32: 2, 1>} : memref<84x16xf32, #tpu.memory_space<vmem>>, vector<40x16xf32>
    %82 = arith.truncf %81 : vector<40x16xf32> to vector<40x16xbf16>
    %c0_73 = arith.constant 0 : index
    %c0_74 = arith.constant 0 : index
    %83 = vector.load %arg6[%c0_73, %c0_74] : memref<80x8xbf16, #tpu.memory_space<vmem>>, vector<16x8xbf16>
    %cst_75 = arith.constant dense<0.000000e+00> : vector<40x8xf32>
    %84 = tpu.matmul %82, %83, %cst_75 {dimension_numbers = #tpu.dot_dimension_numbers<[1], [0], [0], [1], [0, 0, 1, 1], [], []>} : vector<40x16xbf16>, vector<16x8xbf16>, vector<40x8xf32> -> vector<40x8xf32>
    %85 = arith.addf %80, %84 : vector<40x8xf32>
    %c1_76 = arith.constant 1 : index
    %c0_77 = arith.constant 0 : index
    %86 = tpu.strided_load %arg17[%c1_76, %c0_77] {strides = array<i32: 2, 1>} : memref<84x16xf32, #tpu.memory_space<vmem>>, vector<40x16xf32>
    %87 = arith.truncf %86 : vector<40x16xf32> to vector<40x16xbf16>
    %c16 = arith.constant 16 : index
    %c0_78 = arith.constant 0 : index
    %88 = vector.load %arg6[%c16, %c0_78] : memref<80x8xbf16, #tpu.memory_space<vmem>>, vector<16x8xbf16>
    %cst_79 = arith.constant dense<0.000000e+00> : vector<40x8xf32>
    %89 = tpu.matmul %87, %88, %cst_79 {dimension_numbers = #tpu.dot_dimension_numbers<[1], [0], [0], [1], [0, 0, 1, 1], [], []>} : vector<40x16xbf16>, vector<16x8xbf16>, vector<40x8xf32> -> vector<40x8xf32>
    %90 = arith.addf %85, %89 : vector<40x8xf32>
    %c2_80 = arith.constant 2 : index
    %c0_81 = arith.constant 0 : index
    %91 = tpu.strided_load %arg17[%c2_80, %c0_81] {strides = array<i32: 2, 1>} : memref<84x16xf32, #tpu.memory_space<vmem>>, vector<40x16xf32>
    %92 = arith.truncf %91 : vector<40x16xf32> to vector<40x16xbf16>
    %c32_82 = arith.constant 32 : index
    %c0_83 = arith.constant 0 : index
    %93 = vector.load %arg6[%c32_82, %c0_83] : memref<80x8xbf16, #tpu.memory_space<vmem>>, vector<16x8xbf16>
    %cst_84 = arith.constant dense<0.000000e+00> : vector<40x8xf32>
    %94 = tpu.matmul %92, %93, %cst_84 {dimension_numbers = #tpu.dot_dimension_numbers<[1], [0], [0], [1], [0, 0, 1, 1], [], []>} : vector<40x16xbf16>, vector<16x8xbf16>, vector<40x8xf32> -> vector<40x8xf32>
    %95 = arith.addf %90, %94 : vector<40x8xf32>
    %c3_85 = arith.constant 3 : index
    %c0_86 = arith.constant 0 : index
    %96 = tpu.strided_load %arg17[%c3_85, %c0_86] {strides = array<i32: 2, 1>} : memref<84x16xf32, #tpu.memory_space<vmem>>, vector<40x16xf32>
    %97 = arith.truncf %96 : vector<40x16xf32> to vector<40x16xbf16>
    %c48 = arith.constant 48 : index
    %c0_87 = arith.constant 0 : index
    %98 = vector.load %arg6[%c48, %c0_87] : memref<80x8xbf16, #tpu.memory_space<vmem>>, vector<16x8xbf16>
    %cst_88 = arith.constant dense<0.000000e+00> : vector<40x8xf32>
    %99 = tpu.matmul %97, %98, %cst_88 {dimension_numbers = #tpu.dot_dimension_numbers<[1], [0], [0], [1], [0, 0, 1, 1], [], []>} : vector<40x16xbf16>, vector<16x8xbf16>, vector<40x8xf32> -> vector<40x8xf32>
    %100 = arith.addf %95, %99 : vector<40x8xf32>
    %c4_89 = arith.constant 4 : index
    %c0_90 = arith.constant 0 : index
    %101 = tpu.strided_load %arg17[%c4_89, %c0_90] {strides = array<i32: 2, 1>} : memref<84x16xf32, #tpu.memory_space<vmem>>, vector<40x16xf32>
    %102 = arith.truncf %101 : vector<40x16xf32> to vector<40x16xbf16>
    %c64_91 = arith.constant 64 : index
    %c0_92 = arith.constant 0 : index
    %103 = vector.load %arg6[%c64_91, %c0_92] : memref<80x8xbf16, #tpu.memory_space<vmem>>, vector<16x8xbf16>
    %cst_93 = arith.constant dense<0.000000e+00> : vector<40x8xf32>
    %104 = tpu.matmul %102, %103, %cst_93 {dimension_numbers = #tpu.dot_dimension_numbers<[1], [0], [0], [1], [0, 0, 1, 1], [], []>} : vector<40x16xbf16>, vector<16x8xbf16>, vector<40x8xf32> -> vector<40x8xf32>
    %105 = arith.addf %100, %104 : vector<40x8xf32>
    %c0_94 = arith.constant 0 : index
    %c0_95 = arith.constant 0 : index
    %106 = vector.load %arg7[%c0_94, %c0_95] : memref<1x8xf32, #tpu.memory_space<vmem>>, vector<1x8xf32>
    %107 = vector.broadcast %106 : vector<1x8xf32> to vector<40x8xf32>
    %108 = arith.addf %105, %107 : vector<40x8xf32>
    %cst_96 = arith.constant 0.000000e+00 : f32
    %109 = vector.broadcast %cst_96 : f32 to vector<40x8xf32>
    %110 = arith.maximumf %108, %109 : vector<40x8xf32>
    %111 = tpu.transpose %110, [1, 0] : vector<40x8xf32> -> vector<8x40xf32>
    %c0_97 = arith.constant 0 : index
    %c0_98 = arith.constant 0 : index
    %112 = vector.load %arg18[%c0_97, %c0_98] : memref<8x40xf32, #tpu.memory_space<vmem>>, vector<8x40xf32>
    tpu.vector_store %arg18[%c0_97, %c0_98], %111 {strides = array<i32>} : memref<8x40xf32, #tpu.memory_space<vmem>>, vector<8x40xf32>,
    %cst_99 = arith.constant 0.000000e+00 : f32
    %113 = vector.broadcast %cst_99 : f32 to vector<1x384xf32>
    %c0_100 = arith.constant 0 : index
    %c0_101 = arith.constant 0 : index
    %114 = vector.load %arg18[%c0_100, %c0_101] : memref<8x40xf32, #tpu.memory_space<vmem>>, vector<1x40xf32>
    %115 = arith.truncf %114 : vector<1x40xf32> to vector<1x40xbf16>
    %c0_102 = arith.constant 0 : index
    %c0_103 = arith.constant 0 : index
    %c0_104 = arith.constant 0 : index
    %116 = vector.load %arg8[%c0_102, %c0_103, %c0_104] : memref<8x40x384xbf16, #tpu.memory_space<vmem>>, vector<1x40x384xbf16>
    %117 = vector.shape_cast %116 : vector<1x40x384xbf16> to vector<40x384xbf16>
    %cst_105 = arith.constant dense<0.000000e+00> : vector<1x384xf32>
    %118 = tpu.matmul %115, %117, %cst_105 {dimension_numbers = #tpu.dot_dimension_numbers<[1], [0], [0], [1], [0, 0, 1, 1], [], []>} : vector<1x40xbf16>, vector<40x384xbf16>, vector<1x384xf32> -> vector<1x384xf32>
    %119 = arith.addf %113, %118 : vector<1x384xf32>
    %c1_106 = arith.constant 1 : index
    %c0_107 = arith.constant 0 : index
    %120 = vector.load %arg18[%c1_106, %c0_107] : memref<8x40xf32, #tpu.memory_space<vmem>>, vector<1x40xf32>
    %121 = arith.truncf %120 : vector<1x40xf32> to vector<1x40xbf16>
    %c1_108 = arith.constant 1 : index
    %c0_109 = arith.constant 0 : index
    %c0_110 = arith.constant 0 : index
    %122 = vector.load %arg8[%c1_108, %c0_109, %c0_110] : memref<8x40x384xbf16, #tpu.memory_space<vmem>>, vector<1x40x384xbf16>
    %123 = vector.shape_cast %122 : vector<1x40x384xbf16> to vector<40x384xbf16>
    %cst_111 = arith.constant dense<0.000000e+00> : vector<1x384xf32>
    %124 = tpu.matmul %121, %123, %cst_111 {dimension_numbers = #tpu.dot_dimension_numbers<[1], [0], [0], [1], [0, 0, 1, 1], [], []>} : vector<1x40xbf16>, vector<40x384xbf16>, vector<1x384xf32> -> vector<1x384xf32>
    %125 = arith.addf %119, %124 : vector<1x384xf32>
    %c2_112 = arith.constant 2 : index
    %c0_113 = arith.constant 0 : index
    %126 = vector.load %arg18[%c2_112, %c0_113] : memref<8x40xf32, #tpu.memory_space<vmem>>, vector<1x40xf32>
    %127 = arith.truncf %126 : vector<1x40xf32> to vector<1x40xbf16>
    %c2_114 = arith.constant 2 : index
    %c0_115 = arith.constant 0 : index
    %c0_116 = arith.constant 0 : index
    %128 = vector.load %arg8[%c2_114, %c0_115, %c0_116] : memref<8x40x384xbf16, #tpu.memory_space<vmem>>, vector<1x40x384xbf16>
    %129 = vector.shape_cast %128 : vector<1x40x384xbf16> to vector<40x384xbf16>
    %cst_117 = arith.constant dense<0.000000e+00> : vector<1x384xf32>
    %130 = tpu.matmul %127, %129, %cst_117 {dimension_numbers = #tpu.dot_dimension_numbers<[1], [0], [0], [1], [0, 0, 1, 1], [], []>} : vector<1x40xbf16>, vector<40x384xbf16>, vector<1x384xf32> -> vector<1x384xf32>
    %131 = arith.addf %125, %130 : vector<1x384xf32>
    %c3_118 = arith.constant 3 : index
    %c0_119 = arith.constant 0 : index
    %132 = vector.load %arg18[%c3_118, %c0_119] : memref<8x40xf32, #tpu.memory_space<vmem>>, vector<1x40xf32>
    %133 = arith.truncf %132 : vector<1x40xf32> to vector<1x40xbf16>
    %c3_120 = arith.constant 3 : index
    %c0_121 = arith.constant 0 : index
    %c0_122 = arith.constant 0 : index
    %134 = vector.load %arg8[%c3_120, %c0_121, %c0_122] : memref<8x40x384xbf16, #tpu.memory_space<vmem>>, vector<1x40x384xbf16>
    %135 = vector.shape_cast %134 : vector<1x40x384xbf16> to vector<40x384xbf16>
    %cst_123 = arith.constant dense<0.000000e+00> : vector<1x384xf32>
    %136 = tpu.matmul %133, %135, %cst_123 {dimension_numbers = #tpu.dot_dimension_numbers<[1], [0], [0], [1], [0, 0, 1, 1], [], []>} : vector<1x40xbf16>, vector<40x384xbf16>, vector<1x384xf32> -> vector<1x384xf32>
    %137 = arith.addf %131, %136 : vector<1x384xf32>
    %c4_124 = arith.constant 4 : index
    %c0_125 = arith.constant 0 : index
    %138 = vector.load %arg18[%c4_124, %c0_125] : memref<8x40xf32, #tpu.memory_space<vmem>>, vector<1x40xf32>
    %139 = arith.truncf %138 : vector<1x40xf32> to vector<1x40xbf16>
    %c4_126 = arith.constant 4 : index
    %c0_127 = arith.constant 0 : index
    %c0_128 = arith.constant 0 : index
    %140 = vector.load %arg8[%c4_126, %c0_127, %c0_128] : memref<8x40x384xbf16, #tpu.memory_space<vmem>>, vector<1x40x384xbf16>
    %141 = vector.shape_cast %140 : vector<1x40x384xbf16> to vector<40x384xbf16>
    %cst_129 = arith.constant dense<0.000000e+00> : vector<1x384xf32>
    %142 = tpu.matmul %139, %141, %cst_129 {dimension_numbers = #tpu.dot_dimension_numbers<[1], [0], [0], [1], [0, 0, 1, 1], [], []>} : vector<1x40xbf16>, vector<40x384xbf16>, vector<1x384xf32> -> vector<1x384xf32>
    %143 = arith.addf %137, %142 : vector<1x384xf32>
    %c5 = arith.constant 5 : index
    %c0_130 = arith.constant 0 : index
    %144 = vector.load %arg18[%c5, %c0_130] : memref<8x40xf32, #tpu.memory_space<vmem>>, vector<1x40xf32>
    %145 = arith.truncf %144 : vector<1x40xf32> to vector<1x40xbf16>
    %c5_131 = arith.constant 5 : index
    %c0_132 = arith.constant 0 : index
    %c0_133 = arith.constant 0 : index
    %146 = vector.load %arg8[%c5_131, %c0_132, %c0_133] : memref<8x40x384xbf16, #tpu.memory_space<vmem>>, vector<1x40x384xbf16>
    %147 = vector.shape_cast %146 : vector<1x40x384xbf16> to vector<40x384xbf16>
    %cst_134 = arith.constant dense<0.000000e+00> : vector<1x384xf32>
    %148 = tpu.matmul %145, %147, %cst_134 {dimension_numbers = #tpu.dot_dimension_numbers<[1], [0], [0], [1], [0, 0, 1, 1], [], []>} : vector<1x40xbf16>, vector<40x384xbf16>, vector<1x384xf32> -> vector<1x384xf32>
    %149 = arith.addf %143, %148 : vector<1x384xf32>
    %c6 = arith.constant 6 : index
    %c0_135 = arith.constant 0 : index
    %150 = vector.load %arg18[%c6, %c0_135] : memref<8x40xf32, #tpu.memory_space<vmem>>, vector<1x40xf32>
    %151 = arith.truncf %150 : vector<1x40xf32> to vector<1x40xbf16>
    %c6_136 = arith.constant 6 : index
    %c0_137 = arith.constant 0 : index
    %c0_138 = arith.constant 0 : index
    %152 = vector.load %arg8[%c6_136, %c0_137, %c0_138] : memref<8x40x384xbf16, #tpu.memory_space<vmem>>, vector<1x40x384xbf16>
    %153 = vector.shape_cast %152 : vector<1x40x384xbf16> to vector<40x384xbf16>
    %cst_139 = arith.constant dense<0.000000e+00> : vector<1x384xf32>
    %154 = tpu.matmul %151, %153, %cst_139 {dimension_numbers = #tpu.dot_dimension_numbers<[1], [0], [0], [1], [0, 0, 1, 1], [], []>} : vector<1x40xbf16>, vector<40x384xbf16>, vector<1x384xf32> -> vector<1x384xf32>
    %155 = arith.addf %149, %154 : vector<1x384xf32>
    %c7 = arith.constant 7 : index
    %c0_140 = arith.constant 0 : index
    %156 = vector.load %arg18[%c7, %c0_140] : memref<8x40xf32, #tpu.memory_space<vmem>>, vector<1x40xf32>
    %157 = arith.truncf %156 : vector<1x40xf32> to vector<1x40xbf16>
    %c7_141 = arith.constant 7 : index
    %c0_142 = arith.constant 0 : index
    %c0_143 = arith.constant 0 : index
    %158 = vector.load %arg8[%c7_141, %c0_142, %c0_143] : memref<8x40x384xbf16, #tpu.memory_space<vmem>>, vector<1x40x384xbf16>
    %159 = vector.shape_cast %158 : vector<1x40x384xbf16> to vector<40x384xbf16>
    %cst_144 = arith.constant dense<0.000000e+00> : vector<1x384xf32>
    %160 = tpu.matmul %157, %159, %cst_144 {dimension_numbers = #tpu.dot_dimension_numbers<[1], [0], [0], [1], [0, 0, 1, 1], [], []>} : vector<1x40xbf16>, vector<40x384xbf16>, vector<1x384xf32> -> vector<1x384xf32>
    %161 = arith.addf %155, %160 : vector<1x384xf32>
    %c0_145 = arith.constant 0 : index
    %c0_146 = arith.constant 0 : index
    %162 = vector.load %arg9[%c0_145, %c0_146] : memref<1x384xf32, #tpu.memory_space<vmem>>, vector<1x384xf32>
    %163 = arith.addf %161, %162 : vector<1x384xf32>
    %164 = vector.extract_strided_slice %163 {offsets = [0, 0], sizes = [1, 128], strides = [1, 1]} : vector<1x384xf32> to vector<1x128xf32>
    %165 = arith.negf %164 : vector<1x128xf32>
    %166 = math.exp %165 : vector<1x128xf32>
    %cst_147 = arith.constant 1.000000e+00 : f32
    %167 = vector.broadcast %cst_147 : f32 to vector<1x128xf32>
    %168 = arith.addf %167, %166 : vector<1x128xf32>
    %169 = arith.divf %167, %168 : vector<1x128xf32>
    %170 = vector.extract_strided_slice %163 {offsets = [0, 128], sizes = [1, 128], strides = [1, 1]} : vector<1x384xf32> to vector<1x128xf32>
    %171 = math.tanh %170 : vector<1x128xf32>
    %172 = arith.mulf %169, %171 : vector<1x128xf32>
    %173 = vector.extract_strided_slice %163 {offsets = [0, 256], sizes = [1, 128], strides = [1, 1]} : vector<1x384xf32> to vector<1x128xf32>
    %174 = arith.negf %173 : vector<1x128xf32>
    %175 = math.exp %174 : vector<1x128xf32>
    %cst_148 = arith.constant 1.000000e+00 : f32
    %176 = vector.broadcast %cst_148 : f32 to vector<1x128xf32>
    %177 = arith.addf %176, %175 : vector<1x128xf32>
    %178 = arith.divf %176, %177 : vector<1x128xf32>
    %179 = math.tanh %172 : vector<1x128xf32>
    %180 = arith.mulf %178, %179 : vector<1x128xf32>
    %181 = arith.truncf %180 : vector<1x128xf32> to vector<1x128xbf16>
    %c0_149 = arith.constant 0 : index
    %c0_150 = arith.constant 0 : index
    %182 = vector.load %arg10[%c0_149, %c0_150] : memref<128x384xbf16, #tpu.memory_space<vmem>>, vector<128x384xbf16>
    %cst_151 = arith.constant dense<0.000000e+00> : vector<1x384xf32>
    %183 = tpu.matmul %181, %182, %cst_151 {dimension_numbers = #tpu.dot_dimension_numbers<[1], [0], [0], [1], [0, 0, 1, 1], [], []>} : vector<1x128xbf16>, vector<128x384xbf16>, vector<1x384xf32> -> vector<1x384xf32>
    %c0_152 = arith.constant 0 : index
    %c0_153 = arith.constant 0 : index
    %184 = vector.load %arg11[%c0_152, %c0_153] : memref<1x384xf32, #tpu.memory_space<vmem>>, vector<1x384xf32>
    %185 = arith.addf %183, %184 : vector<1x384xf32>
    %186 = vector.extract_strided_slice %185 {offsets = [0, 0], sizes = [1, 128], strides = [1, 1]} : vector<1x384xf32> to vector<1x128xf32>
    %187 = arith.negf %186 : vector<1x128xf32>
    %188 = math.exp %187 : vector<1x128xf32>
    %cst_154 = arith.constant 1.000000e+00 : f32
    %189 = vector.broadcast %cst_154 : f32 to vector<1x128xf32>
    %190 = arith.addf %189, %188 : vector<1x128xf32>
    %191 = arith.divf %189, %190 : vector<1x128xf32>
    %192 = vector.extract_strided_slice %185 {offsets = [0, 128], sizes = [1, 128], strides = [1, 1]} : vector<1x384xf32> to vector<1x128xf32>
    %193 = math.tanh %192 : vector<1x128xf32>
    %194 = arith.mulf %191, %193 : vector<1x128xf32>
    %195 = vector.extract_strided_slice %185 {offsets = [0, 256], sizes = [1, 128], strides = [1, 1]} : vector<1x384xf32> to vector<1x128xf32>
    %196 = arith.negf %195 : vector<1x128xf32>
    %197 = math.exp %196 : vector<1x128xf32>
    %cst_155 = arith.constant 1.000000e+00 : f32
    %198 = vector.broadcast %cst_155 : f32 to vector<1x128xf32>
    %199 = arith.addf %198, %197 : vector<1x128xf32>
    %200 = arith.divf %198, %199 : vector<1x128xf32>
    %201 = math.tanh %194 : vector<1x128xf32>
    %202 = arith.mulf %200, %201 : vector<1x128xf32>
    %203 = arith.truncf %202 : vector<1x128xf32> to vector<1x128xbf16>
    %c0_156 = arith.constant 0 : index
    %c0_157 = arith.constant 0 : index
    %204 = vector.load %arg12[%c0_156, %c0_157] : memref<128x5xbf16, #tpu.memory_space<vmem>>, vector<128x5xbf16>
    %cst_158 = arith.constant dense<0.000000e+00> : vector<1x5xf32>
    %205 = tpu.matmul %203, %204, %cst_158 {dimension_numbers = #tpu.dot_dimension_numbers<[1], [0], [0], [1], [0, 0, 1, 1], [], []>} : vector<1x128xbf16>, vector<128x5xbf16>, vector<1x5xf32> -> vector<1x5xf32>
    %c0_159 = arith.constant 0 : index
    %c0_160 = arith.constant 0 : index
    %206 = vector.load %arg13[%c0_159, %c0_160] : memref<1x5xf32, #tpu.memory_space<vmem>>, vector<1x5xf32>
    %207 = arith.addf %205, %206 : vector<1x5xf32>
    %208 = vector.shape_cast %207 : vector<1x5xf32> to vector<1x1x5xf32>
    %c0_161 = arith.constant 0 : index
    %c0_162 = arith.constant 0 : index
    %c0_163 = arith.constant 0 : index
    %209 = vector.load %arg14[%c0_161, %c0_162, %c0_163] : memref<1x1x5xf32, #tpu.memory_space<vmem>>, vector<1x1x5xf32>
    tpu.vector_store %arg14[%c0_161, %c0_162, %c0_163], %208 {strides = array<i32>} : memref<1x1x5xf32, #tpu.memory_space<vmem>>, vector<1x1x5xf32>,
    return
  }
  func.func @transform_0(%arg0: i32) -> (i32, i32, i32) {
    %c0_i32 = arith.constant 0 : i32
    %c0_i32_0 = arith.constant 0 : i32
    %c0_i32_1 = arith.constant 0 : i32
    return %arg0, %c0_i32, %c0_i32_0 : i32, i32, i32
  }
  func.func @transform_1(%arg0: i32) -> (i32, i32) {
    %c0_i32 = arith.constant 0 : i32
    %c0_i32_0 = arith.constant 0 : i32
    %c0_i32_1 = arith.constant 0 : i32
    return %c0_i32, %c0_i32_0 : i32, i32
  }
  func.func @transform_2(%arg0: i32) -> (i32, i32) {
    %c0_i32 = arith.constant 0 : i32
    %c0_i32_0 = arith.constant 0 : i32
    %c0_i32_1 = arith.constant 0 : i32
    return %c0_i32, %c0_i32_0 : i32, i32
  }
  func.func @transform_3(%arg0: i32) -> (i32, i32) {
    %c0_i32 = arith.constant 0 : i32
    %c0_i32_0 = arith.constant 0 : i32
    %c0_i32_1 = arith.constant 0 : i32
    return %c0_i32, %c0_i32_0 : i32, i32
  }
  func.func @transform_4(%arg0: i32) -> (i32, i32) {
    %c0_i32 = arith.constant 0 : i32
    %c0_i32_0 = arith.constant 0 : i32
    %c0_i32_1 = arith.constant 0 : i32
    return %c0_i32, %c0_i32_0 : i32, i32
  }
  func.func @transform_5(%arg0: i32) -> (i32, i32) {
    %c0_i32 = arith.constant 0 : i32
    %c0_i32_0 = arith.constant 0 : i32
    %c0_i32_1 = arith.constant 0 : i32
    return %c0_i32, %c0_i32_0 : i32, i32
  }
  func.func @transform_6(%arg0: i32) -> (i32, i32) {
    %c0_i32 = arith.constant 0 : i32
    %c0_i32_0 = arith.constant 0 : i32
    %c0_i32_1 = arith.constant 0 : i32
    return %c0_i32, %c0_i32_0 : i32, i32
  }
  func.func @transform_7(%arg0: i32) -> (i32, i32, i32) {
    %c0_i32 = arith.constant 0 : i32
    %c0_i32_0 = arith.constant 0 : i32
    %c0_i32_1 = arith.constant 0 : i32
    %c0_i32_2 = arith.constant 0 : i32
    return %c0_i32, %c0_i32_0, %c0_i32_1 : i32, i32, i32
  }
  func.func @transform_8(%arg0: i32) -> (i32, i32) {
    %c0_i32 = arith.constant 0 : i32
    %c0_i32_0 = arith.constant 0 : i32
    %c0_i32_1 = arith.constant 0 : i32
    return %c0_i32, %c0_i32_0 : i32, i32
  }
  func.func @transform_9(%arg0: i32) -> (i32, i32) {
    %c0_i32 = arith.constant 0 : i32
    %c0_i32_0 = arith.constant 0 : i32
    %c0_i32_1 = arith.constant 0 : i32
    return %c0_i32, %c0_i32_0 : i32, i32
  }
  func.func @transform_10(%arg0: i32) -> (i32, i32) {
    %c0_i32 = arith.constant 0 : i32
    %c0_i32_0 = arith.constant 0 : i32
    %c0_i32_1 = arith.constant 0 : i32
    return %c0_i32, %c0_i32_0 : i32, i32
  }
  func.func @transform_11(%arg0: i32) -> (i32, i32) {
    %c0_i32 = arith.constant 0 : i32
    %c0_i32_0 = arith.constant 0 : i32
    %c0_i32_1 = arith.constant 0 : i32
    return %c0_i32, %c0_i32_0 : i32, i32
  }
  func.func @transform_12(%arg0: i32) -> (i32, i32) {
    %c0_i32 = arith.constant 0 : i32
    %c0_i32_0 = arith.constant 0 : i32
    %c0_i32_1 = arith.constant 0 : i32
    return %c0_i32, %c0_i32_0 : i32, i32
  }
  func.func @transform_13(%arg0: i32) -> (i32, i32, i32) {
    %c0_i32 = arith.constant 0 : i32
    %c0_i32_0 = arith.constant 0 : i32
    %c0_i32_1 = arith.constant 0 : i32
    return %arg0, %c0_i32, %c0_i32_0 : i32, i32, i32
  }
}

</mosaic_0001>

<llo_original>
// kernel: conv_lstm_forward.1
$region0: #{conv_lstm_forward.1}
  #allocation0 [shape = 'u32[]', space=smem, size = 0x4, offset = 0x4, fixed_abs, tag = 'smem constant byte address 0x4 - core index']
  #allocation1 [shape = 'u32[72,128]{1,0:T(1,128)}', space=vmem, size = 0x9000, scoped, tag = 'internal scratch']
  #allocation2 [shape = 'f32[324,64]{1,0:T(8,128)}', space=vmem, size = 0x29000, scoped, tag = 'scratch operand']
  #allocation3 [shape = 'f32[164,32]{1,0:T(8,128)}', space=vmem, size = 0x15000, scoped, tag = 'scratch operand']
  #allocation4 [shape = 'f32[84,16]{1,0:T(8,128)}', space=vmem, size = 0xb000, scoped, tag = 'scratch operand']
  #allocation5 [shape = 'f32[8,40]{1,0:T(8,128)}', space=vmem, size = 0x1000, scoped, tag = 'scratch operand']
  %s0 = inlined_call_operand.hbm [shape: f32[2,64,320], index: 0, kind: input, shape index: {}]
  %s1 = inlined_call_operand.vmem [shape: bf16[320,32], index: 1, kind: input, shape index: {}]
  %s2 = inlined_call_operand.vmem [shape: f32[1,32], index: 2, kind: input, shape index: {}]
  %s3 = inlined_call_operand.vmem [shape: bf16[160,16], index: 3, kind: input, shape index: {}]
  %s4 = inlined_call_operand.vmem [shape: f32[1,16], index: 4, kind: input, shape index: {}]
  %s5 = inlined_call_operand.vmem [shape: bf16[80,8], index: 5, kind: input, shape index: {}]
  %s6 = inlined_call_operand.vmem [shape: f32[1,8], index: 6, kind: input, shape index: {}]
  %s7 = inlined_call_operand.hbm [shape: bf16[8,40,384], index: 7, kind: input, shape index: {}]
  %s8 = inlined_call_operand.vmem [shape: f32[1,384], index: 8, kind: input, shape index: {}]
  %s9 = inlined_call_operand.vmem [shape: bf16[128,384], index: 9, kind: input, shape index: {}]
  %s10 = inlined_call_operand.vmem [shape: f32[1,384], index: 10, kind: input, shape index: {}]
  %s11 = inlined_call_operand.vmem [shape: bf16[128,5], index: 11, kind: input, shape index: {}]
  %s12 = inlined_call_operand.vmem [shape: f32[1,5], index: 12, kind: input, shape index: {}]
  %s13 = inlined_call_operand.hbm [shape: f32[2,1,5], index: 13, kind: output, shape index: {}]
  %s14 = sld [smem:[#allocation0]]
  $region93: #{conv_lstm_forward.1} parent=0
    _
  %s16 = ssub.s32 1, %s14
  %s17 = scalar_select 0, %s16, %s14
  $region1: #{conv_lstm_forward.1} parent=0
    #allocation6 [shape = 'u8[196608]{0}', space=vmem, size = 0x30000, scoped, tag = 'input window, operand 0']
    #allocation7 [shape = 's32[2]{0}', space=sflag, size = 0x8, scoped, tag = 'scoped memory for conv_lstm_forward.1']
    #allocation8 [shape = 's32[2]{0}', space=sflag, size = 0x8, scoped, tag = 'scoped memory for conv_lstm_forward.1']
    #allocation9 [shape = 'u8[245760]{0}', space=vmem, size = 0x3c000, scoped, tag = 'input window, operand 7, single buffered']
    #allocation10 [shape = 's32[1]{0}', space=sflag, size = 0x4, scoped, tag = 'scoped memory for conv_lstm_forward.1']
    #allocation11 [shape = 'u8[1024]{0}', space=vmem, size = 0x400, scoped, tag = 'output window, operand 0']
    %18 = vsyncpa [#allocation7], 0
    %s19 = scalar_lea.sflag [#allocation7], 1
    %20 = vsyncpa %s19, 0
    %21 = vsyncpa [#allocation10], 0
    %22 = vsyncpa [#allocation8], 0
    %s23 = scalar_lea.sflag [#allocation8], 1
    %24 = vsyncpa %s23, 0
    loop: start=0, step=1, limit=4
    $region2: #{conv_lstm_forward.1} parent=1 // loop_pre_header
      _
    $region3: #{conv_lstm_forward.1} parent=1 // loop_header
      %s26 = sphi 0, %s30
      %p27 = scmp.ge.s32.totalorder %s26, 4
      %s36 = sphi 0, %s38
      %s39 = sphi 0, %s36
      %s40 = sphi 0, %s39
      %s56 = sphi 0, %s40
      %s60 = sphi 0, %s60
      %s62 = sphi 0, %s60
      %s63 = sphi 0, %s62
      %s77 = sphi 0, %s63
      %s81 = sphi 0, %s81
      %s83 = sphi 0, %s81
      %s84 = sphi 0, %s83
      %s98 = sphi 0, %s84
      %s102 = sphi 0, %s102
      %s104 = sphi 0, %s102
      %s105 = sphi 0, %s104
      %s119 = sphi 0, %s105
      %s123 = sphi 0, %s123
      %s125 = sphi 0, %s123
      %s126 = sphi 0, %s125
      %s140 = sphi 0, %s126
      %s144 = sphi 0, %s144
      %s146 = sphi 0, %s144
      %s147 = sphi 0, %s146
      %s161 = sphi 0, %s147
      %s165 = sphi 0, %s165
      %s167 = sphi 0, %s165
      %s168 = sphi 0, %s167
      %s182 = sphi 0, %s168
      %s186 = sphi 0, %s186
      %s188 = sphi 0, %s186
      %s189 = sphi 0, %s188
      %s203 = sphi 0, %s189
      %s207 = sphi 0, %s207
      %s209 = sphi 0, %s207
      %s210 = sphi 0, %s209
      %s224 = sphi 0, %s210
      %s228 = sphi 0, %s228
      %s230 = sphi 0, %s228
      %s231 = sphi 0, %s230
      %s245 = sphi 0, %s231
      %s249 = sphi 0, %s249
      %s251 = sphi 0, %s249
      %s252 = sphi 0, %s251
      %s266 = sphi 0, %s252
      %s270 = sphi 0, %s270
      %s272 = sphi 0, %s270
      %s273 = sphi 0, %s272
      %s287 = sphi 0, %s273
      %s291 = sphi 0, %s291
      %s293 = sphi 0, %s291
      %s294 = sphi 0, %s293
      %s308 = sphi 0, %s294
      %s314 = sphi 0, %s316
      %s317 = sphi 0, %s314
      %s318 = sphi 0, %s317
      %s334 = sphi 0, %s318
    $region4: #{conv_lstm_forward.1} parent=1 // loop_header_branch
      %29 = sbr.rel (%p27) target = $region8
    $region5: #{conv_lstm_forward.1} parent=1 // loop_body
      %s31 = ssub.s32 %s26, 1
      %s32 = ssub.s32 %s26, 2
      %s33 = sadd.s32 %s26, 1
      %s34 = ssub.s32 %s26, %s33
      %p35 = scmp.eq.s32.totalorder %s34, 0
      %s37 = sadd.s32 %s36, 1
      %s38 = scalar_select %p35, %s36, %s37
      %p41 = pneg %p35
      %p42 = scmp.eq.s32.totalorder %s26, 1
      %p43 = por %p41, %p42
      %p44 = scmp.ne.s32.totalorder %s36, %s39
      %p45 = scmp.eq.s32.totalorder %s26, 0
      %p46 = por %p44, %p45
      %p47 = scmp.ne.s32.totalorder %s36, %s39
      %p48 = scmp.eq.s32.totalorder %s31, 1
      %p49 = por %p47, %p48
      %p50 = scmp.ne.s32.totalorder %s39, %s40
      %p51 = scmp.eq.s32.totalorder %s31, 0
      %p52 = por %p50, %p51
      %p53 = scmp.ne.s32.totalorder %s39, %s40
      %p54 = scmp.eq.s32.totalorder %s32, 1
      %p55 = por %p53, %p54
      %p57 = scmp.ne.s32.totalorder %s40, %s56
      %p58 = scmp.eq.s32.totalorder %s32, 0
      %p59 = por %p57, %p58
      %s61 = sadd.s32 %s60, 1
      %p64 = scmp.eq.s32.totalorder %s26, 1
      %p65 = scmp.ne.s32.totalorder %s60, %s62
      %p66 = scmp.eq.s32.totalorder %s26, 0
      %p67 = por %p65, %p66
      %p68 = scmp.ne.s32.totalorder %s60, %s62
      %p69 = scmp.eq.s32.totalorder %s31, 1
      %p70 = por %p68, %p69
      %p71 = scmp.ne.s32.totalorder %s62, %s63
      %p72 = scmp.eq.s32.totalorder %s31, 0
      %p73 = por %p71, %p72
      %p74 = scmp.ne.s32.totalorder %s62, %s63
      %p75 = scmp.eq.s32.totalorder %s32, 1
      %p76 = por %p74, %p75
      %p78 = scmp.ne.s32.totalorder %s63, %s77
      %p79 = scmp.eq.s32.totalorder %s32, 0
      %p80 = por %p78, %p79
      %s82 = sadd.s32 %s81, 1
      %p85 = scmp.eq.s32.totalorder %s26, 1
      %p86 = scmp.ne.s32.totalorder %s81, %s83
      %p87 = scmp.eq.s32.totalorder %s26, 0
      %p88 = por %p86, %p87
      %p89 = scmp.ne.s32.totalorder %s81, %s83
      %p90 = scmp.eq.s32.totalorder %s31, 1
      %p91 = por %p89, %p90
      %p92 = scmp.ne.s32.totalorder %s83, %s84
      %p93 = scmp.eq.s32.totalorder %s31, 0
      %p94 = por %p92, %p93
      %p95 = scmp.ne.s32.totalorder %s83, %s84
      %p96 = scmp.eq.s32.totalorder %s32, 1
      %p97 = por %p95, %p96
      %p99 = scmp.ne.s32.totalorder %s84, %s98
      %p100 = scmp.eq.s32.totalorder %s32, 0
      %p101 = por %p99, %p100
      %s103 = sadd.s32 %s102, 1
      %p106 = scmp.eq.s32.totalorder %s26, 1
      %p107 = scmp.ne.s32.totalorder %s102, %s104
      %p108 = scmp.eq.s32.totalorder %s26, 0
      %p109 = por %p107, %p108
      %p110 = scmp.ne.s32.totalorder %s102, %s104
      %p111 = scmp.eq.s32.totalorder %s31, 1
      %p112 = por %p110, %p111
      %p113 = scmp.ne.s32.totalorder %s104, %s105
      %p114 = scmp.eq.s32.totalorder %s31, 0
      %p115 = por %p113, %p114
      %p116 = scmp.ne.s32.totalorder %s104, %s105
      %p117 = scmp.eq.s32.totalorder %s32, 1
      %p118 = por %p116, %p117
      %p120 = scmp.ne.s32.totalorder %s105, %s119
      %p121 = scmp.eq.s32.totalorder %s32, 0
      %p122 = por %p120, %p121
      %s124 = sadd.s32 %s123, 1
      %p127 = scmp.eq.s32.totalorder %s26, 1
      %p128 = scmp.ne.s32.totalorder %s123, %s125
      %p129 = scmp.eq.s32.totalorder %s26, 0
      %p130 = por %p128, %p129
      %p131 = scmp.ne.s32.totalorder %s123, %s125
      %p132 = scmp.eq.s32.totalorder %s31, 1
      %p133 = por %p131, %p132
      %p134 = scmp.ne.s32.totalorder %s125, %s126
      %p135 = scmp.eq.s32.totalorder %s31, 0
      %p136 = por %p134, %p135
      %p137 = scmp.ne.s32.totalorder %s125, %s126
      %p138 = scmp.eq.s32.totalorder %s32, 1
      %p139 = por %p137, %p138
      %p141 = scmp.ne.s32.totalorder %s126, %s140
      %p142 = scmp.eq.s32.totalorder %s32, 0
      %p143 = por %p141, %p142
      %s145 = sadd.s32 %s144, 1
      %p148 = scmp.eq.s32.totalorder %s26, 1
      %p149 = scmp.ne.s32.totalorder %s144, %s146
      %p150 = scmp.eq.s32.totalorder %s26, 0
      %p151 = por %p149, %p150
      %p152 = scmp.ne.s32.totalorder %s144, %s146
      %p153 = scmp.eq.s32.totalorder %s31, 1
      %p154 = por %p152, %p153
      %p155 = scmp.ne.s32.totalorder %s146, %s147
      %p156 = scmp.eq.s32.totalorder %s31, 0
      %p157 = por %p155, %p156
      %p158 = scmp.ne.s32.totalorder %s146, %s147
      %p159 = scmp.eq.s32.totalorder %s32, 1
      %p160 = por %p158, %p159
      %p162 = scmp.ne.s32.totalorder %s147, %s161
      %p163 = scmp.eq.s32.totalorder %s32, 0
      %p164 = por %p162, %p163
      %s166 = sadd.s32 %s165, 1
      %p169 = scmp.eq.s32.totalorder %s26, 1
      %p170 = scmp.ne.s32.totalorder %s165, %s167
      %p171 = scmp.eq.s32.totalorder %s26, 0
      %p172 = por %p170, %p171
      %p173 = scmp.ne.s32.totalorder %s165, %s167
      %p174 = scmp.eq.s32.totalorder %s31, 1
      %p175 = por %p173, %p174
      %p176 = scmp.ne.s32.totalorder %s167, %s168
      %p177 = scmp.eq.s32.totalorder %s31, 0
      %p178 = por %p176, %p177
      %p179 = scmp.ne.s32.totalorder %s167, %s168
      %p180 = scmp.eq.s32.totalorder %s32, 1
      %p181 = por %p179, %p180
      %p183 = scmp.ne.s32.totalorder %s168, %s182
      %p184 = scmp.eq.s32.totalorder %s32, 0
      %p185 = por %p183, %p184
      %s187 = sadd.s32 %s186, 1
      %p190 = scmp.eq.s32.totalorder %s26, 1
      %p191 = scmp.ne.s32.totalorder %s186, %s188
      %p192 = scmp.eq.s32.totalorder %s26, 0
      %p193 = por %p191, %p192
      %p194 = scmp.ne.s32.totalorder %s186, %s188
      %p195 = scmp.eq.s32.totalorder %s31, 1
      %p196 = por %p194, %p195
      %p197 = scmp.ne.s32.totalorder %s188, %s189
      %p198 = scmp.eq.s32.totalorder %s31, 0
      %p199 = por %p197, %p198
      %p200 = scmp.ne.s32.totalorder %s188, %s189
      %p201 = scmp.eq.s32.totalorder %s32, 1
      %p202 = por %p200, %p201
      %p204 = scmp.ne.s32.totalorder %s189, %s203
      %p205 = scmp.eq.s32.totalorder %s32, 0
      %p206 = por %p204, %p205
      %s208 = sadd.s32 %s207, 1
      %p211 = scmp.eq.s32.totalorder %s26, 1
      %p212 = scmp.ne.s32.totalorder %s207, %s209
      %p213 = scmp.eq.s32.totalorder %s26, 0
      %p214 = por %p212, %p213
      %p215 = scmp.ne.s32.totalorder %s207, %s209
      %p216 = scmp.eq.s32.totalorder %s31, 1
      %p217 = por %p215, %p216
      %p218 = scmp.ne.s32.totalorder %s209, %s210
      %p219 = scmp.eq.s32.totalorder %s31, 0
      %p220 = por %p218, %p219
      %p221 = scmp.ne.s32.totalorder %s209, %s210
      %p222 = scmp.eq.s32.totalorder %s32, 1
      %p223 = por %p221, %p222
      %p225 = scmp.ne.s32.totalorder %s210, %s224
      %p226 = scmp.eq.s32.totalorder %s32, 0
      %p227 = por %p225, %p226
      %s229 = sadd.s32 %s228, 1
      %p232 = scmp.eq.s32.totalorder %s26, 1
      %p233 = scmp.ne.s32.totalorder %s228, %s230
      %p234 = scmp.eq.s32.totalorder %s26, 0
      %p235 = por %p233, %p234
      %p236 = scmp.ne.s32.totalorder %s228, %s230
      %p237 = scmp.eq.s32.totalorder %s31, 1
      %p238 = por %p236, %p237
      %p239 = scmp.ne.s32.totalorder %s230, %s231
      %p240 = scmp.eq.s32.totalorder %s31, 0
      %p241 = por %p239, %p240
      %p242 = scmp.ne.s32.totalorder %s230, %s231
      %p243 = scmp.eq.s32.totalorder %s32, 1
      %p244 = por %p242, %p243
      %p246 = scmp.ne.s32.totalorder %s231, %s245
      %p247 = scmp.eq.s32.totalorder %s32, 0
      %p248 = por %p246, %p247
      %s250 = sadd.s32 %s249, 1
      %p253 = scmp.eq.s32.totalorder %s26, 1
      %p254 = scmp.ne.s32.totalorder %s249, %s251
      %p255 = scmp.eq.s32.totalorder %s26, 0
      %p256 = por %p254, %p255
      %p257 = scmp.ne.s32.totalorder %s249, %s251
      %p258 = scmp.eq.s32.totalorder %s31, 1
      %p259 = por %p257, %p258
      %p260 = scmp.ne.s32.totalorder %s251, %s252
      %p261 = scmp.eq.s32.totalorder %s31, 0
      %p262 = por %p260, %p261
      %p263 = scmp.ne.s32.totalorder %s251, %s252
      %p264 = scmp.eq.s32.totalorder %s32, 1
      %p265 = por %p263, %p264
      %p267 = scmp.ne.s32.totalorder %s252, %s266
      %p268 = scmp.eq.s32.totalorder %s32, 0
      %p269 = por %p267, %p268
      %s271 = sadd.s32 %s270, 1
      %p274 = scmp.eq.s32.totalorder %s26, 1
      %p275 = scmp.ne.s32.totalorder %s270, %s272
      %p276 = scmp.eq.s32.totalorder %s26, 0
      %p277 = por %p275, %p276
      %p278 = scmp.ne.s32.totalorder %s270, %s272
      %p279 = scmp.eq.s32.totalorder %s31, 1
      %p280 = por %p278, %p279
      %p281 = scmp.ne.s32.totalorder %s272, %s273
      %p282 = scmp.eq.s32.totalorder %s31, 0
      %p283 = por %p281, %p282
      %p284 = scmp.ne.s32.totalorder %s272, %s273
      %p285 = scmp.eq.s32.totalorder %s32, 1
      %p286 = por %p284, %p285
      %p288 = scmp.ne.s32.totalorder %s273, %s287
      %p289 = scmp.eq.s32.totalorder %s32, 0
      %p290 = por %p288, %p289
      %s292 = sadd.s32 %s291, 1
      %p295 = scmp.eq.s32.totalorder %s26, 1
      %p296 = scmp.ne.s32.totalorder %s291, %s293
      %p297 = scmp.eq.s32.totalorder %s26, 0
      %p298 = por %p296, %p297
      %p299 = scmp.ne.s32.totalorder %s291, %s293
      %p300 = scmp.eq.s32.totalorder %s31, 1
      %p301 = por %p299, %p300
      %p302 = scmp.ne.s32.totalorder %s293, %s294
      %p303 = scmp.eq.s32.totalorder %s31, 0
      %p304 = por %p302, %p303
      %p305 = scmp.ne.s32.totalorder %s293, %s294
      %p306 = scmp.eq.s32.totalorder %s32, 1
      %p307 = por %p305, %p306
      %p309 = scmp.ne.s32.totalorder %s294, %s308
      %p310 = scmp.eq.s32.totalorder %s32, 0
      %p311 = por %p309, %p310
      %s312 = ssub.s32 %s26, %s33
      %p313 = scmp.eq.s32.totalorder %s312, 0
      %s315 = sadd.s32 %s314, 1
      %s316 = scalar_select %p313, %s314, %s315
      %p319 = pneg %p313
      %p320 = scmp.eq.s32.totalorder %s26, 1
      %p321 = por %p319, %p320
      %p322 = scmp.ne.s32.totalorder %s314, %s317
      %p323 = scmp.eq.s32.totalorder %s26, 0
      %p324 = por %p322, %p323
      %p325 = scmp.ne.s32.totalorder %s314, %s317
      %p326 = scmp.eq.s32.totalorder %s31, 1
      %p327 = por %p325, %p326
      %p328 = scmp.ne.s32.totalorder %s317, %s318
      %p329 = scmp.eq.s32.totalorder %s31, 0
      %p330 = por %p328, %p329
      %p331 = scmp.ne.s32.totalorder %s317, %s318
      %p332 = scmp.eq.s32.totalorder %s32, 1
      %p333 = por %p331, %p332
      %p335 = scmp.ne.s32.totalorder %s318, %s334
      %p336 = scmp.eq.s32.totalorder %s32, 0
      %p337 = por %p335, %p336
      %p338 = scmp.le.s32.totalorder 1, %s26
      %p339 = scmp.lt.s32.totalorder %s26, 3
      %p340 = pnand %p338, %p339
      %p341 = pneg %p340
      // Predicated region
      $region9: #{conv_lstm_forward.1} parent=5 // pred_check
        _
      $region10: #{conv_lstm_forward.1} parent=5 // pred_check_branch
        %343 = sbr.rel (%p340) target = $region12
      $region11: #{conv_lstm_forward.1} parent=5 // pred_region
        %s344 = ssub.s32 %s26, 1
        // Predicated region
        $region13: #{conv_lstm_forward.1} parent=11 // pred_check
          %p345 = pneg %p73
        $region14: #{conv_lstm_forward.1} parent=11 // pred_check_branch
          %347 = sbr.rel (%p345) target = $region16
        $region15: #{conv_lstm_forward.1} parent=11 // pred_region
          _
        $region16: #{conv_lstm_forward.1} parent=11 // pred_fallthru
          _
        // Predicated region
        $region17: #{conv_lstm_forward.1} parent=11 // pred_check
          %p348 = pneg %p94
        $region18: #{conv_lstm_forward.1} parent=11 // pred_check_branch
          %350 = sbr.rel (%p348) target = $region20
        $region19: #{conv_lstm_forward.1} parent=11 // pred_region
          _
        $region20: #{conv_lstm_forward.1} parent=11 // pred_fallthru
          _
        // Predicated region
        $region21: #{conv_lstm_forward.1} parent=11 // pred_check
          %p351 = pneg %p115
        $region22: #{conv_lstm_forward.1} parent=11 // pred_check_branch
          %353 = sbr.rel (%p351) target = $region24
        $region23: #{conv_lstm_forward.1} parent=11 // pred_region
          _
        $region24: #{conv_lstm_forward.1} parent=11 // pred_fallthru
          _
        // Predicated region
        $region25: #{conv_lstm_forward.1} parent=11 // pred_check
          %p354 = pneg %p136
        $region26: #{conv_lstm_forward.1} parent=11 // pred_check_branch
          %356 = sbr.rel (%p354) target = $region28
        $region27: #{conv_lstm_forward.1} parent=11 // pred_region
          _
        $region28: #{conv_lstm_forward.1} parent=11 // pred_fallthru
          _
        // Predicated region
        $region29: #{conv_lstm_forward.1} parent=11 // pred_check
          %p357 = pneg %p157
        $region30: #{conv_lstm_forward.1} parent=11 // pred_check_branch
          %359 = sbr.rel (%p357) target = $region32
        $region31: #{conv_lstm_forward.1} parent=11 // pred_region
          _
        $region32: #{conv_lstm_forward.1} parent=11 // pred_fallthru
          _
        // Predicated region
        $region33: #{conv_lstm_forward.1} parent=11 // pred_check
          %p360 = pneg %p178
        $region34: #{conv_lstm_forward.1} parent=11 // pred_check_branch
          %362 = sbr.rel (%p360) target = $region36
        $region35: #{conv_lstm_forward.1} parent=11 // pred_region
          _
        $region36: #{conv_lstm_forward.1} parent=11 // pred_fallthru
          _
        // Predicated region
        $region37: #{conv_lstm_forward.1} parent=11 // pred_check
          %p363 = pneg %p199
        $region38: #{conv_lstm_forward.1} parent=11 // pred_check_branch
          %365 = sbr.rel (%p363) target = $region40
        $region39: #{conv_lstm_forward.1} parent=11 // pred_region
          %367 = vsyncadd [#allocation10], 0
          %s368 = sshll.u32 %s7, 4
          %s369 = int_to_ptr.hbm [resolvable:$true] %s368
          %s370 = sshll.u32 [#allocation9], 4
          %s371 = int_to_ptr.vmem [resolvable:$true] %s370
          %376 = dma.hbm_to_vmem [thread:$0]  %s369, 7680, %s371, [#allocation10], 192, 192, 12
        $region40: #{conv_lstm_forward.1} parent=11 // pred_fallthru
          _
        // Predicated region
        $region41: #{conv_lstm_forward.1} parent=11 // pred_check
          %p377 = pneg %p220
        $region42: #{conv_lstm_forward.1} parent=11 // pred_check_branch
          %379 = sbr.rel (%p377) target = $region44
        $region43: #{conv_lstm_forward.1} parent=11 // pred_region
          _
        $region44: #{conv_lstm_forward.1} parent=11 // pred_fallthru
          _
        // Predicated region
        $region45: #{conv_lstm_forward.1} parent=11 // pred_check
          %p380 = pneg %p241
        $region46: #{conv_lstm_forward.1} parent=11 // pred_check_branch
          %382 = sbr.rel (%p380) target = $region48
        $region47: #{conv_lstm_forward.1} parent=11 // pred_region
          _
        $region48: #{conv_lstm_forward.1} parent=11 // pred_fallthru
          _
        // Predicated region
        $region49: #{conv_lstm_forward.1} parent=11 // pred_check
          %p383 = pneg %p262
        $region50: #{conv_lstm_forward.1} parent=11 // pred_check_branch
          %385 = sbr.rel (%p383) target = $region52
        $region51: #{conv_lstm_forward.1} parent=11 // pred_region
          _
        $region52: #{conv_lstm_forward.1} parent=11 // pred_fallthru
          _
        // Predicated region
        $region53: #{conv_lstm_forward.1} parent=11 // pred_check
          %p386 = pneg %p283
        $region54: #{conv_lstm_forward.1} parent=11 // pred_check_branch
          %388 = sbr.rel (%p386) target = $region56
        $region55: #{conv_lstm_forward.1} parent=11 // pred_region
          _
        $region56: #{conv_lstm_forward.1} parent=11 // pred_fallthru
          _
        // Predicated region
        $region57: #{conv_lstm_forward.1} parent=11 // pred_check
          %p389 = pneg %p304
        $region58: #{conv_lstm_forward.1} parent=11 // pred_check_branch
          %391 = sbr.rel (%p389) target = $region60
        $region59: #{conv_lstm_forward.1} parent=11 // pred_region
          _
        $region60: #{conv_lstm_forward.1} parent=11 // pred_fallthru
          _
      $region12: #{conv_lstm_forward.1} parent=5 // pred_fallthru
        _
      %p392 = scmp.lt.s32.totalorder %s26, 2
      // Predicated region
      $region61: #{conv_lstm_forward.1} parent=5 // pred_check
        %p393 = pneg %p392
      $region62: #{conv_lstm_forward.1} parent=5 // pred_check_branch
        %395 = sbr.rel (%p393) target = $region64
      $region63: #{conv_lstm_forward.1} parent=5 // pred_region
        // Predicated region
        $region65: #{conv_lstm_forward.1} parent=63 // pred_check
          %p396 = pneg %p46
        $region66: #{conv_lstm_forward.1} parent=63 // pred_check_branch
          %398 = sbr.rel (%p396) target = $region68
        $region67: #{conv_lstm_forward.1} parent=63 // pred_region
          %s399 = sand.u32 %s36, 1
          %s400 = scalar_lea.sflag [#allocation7], %s399
          %s401 = sand.u32 %s36, 1
          %s402 = smul.addr %s401, 192
          %s403 = scalar_lea.vmem [#allocation6], %s402
          %405 = vsyncadd %s400, 0
          %s406 = smul.addr %s26, 24
          %s407 = smul.addr %s406, 8
          %s408 = scalar_lea.hbm %s0, %s407
          %s409 = sshll.u32 %s408, 4
          %s410 = int_to_ptr.hbm [resolvable:$true] %s409
          %s411 = sshll.u32 %s403, 4
          %s412 = int_to_ptr.vmem [resolvable:$true] %s411
          %417 = dma.hbm_to_vmem [thread:$0]  %s410, 3072, %s412, %s400, 384, 384, 24
        $region68: #{conv_lstm_forward.1} parent=63 // pred_fallthru
          _
      $region64: #{conv_lstm_forward.1} parent=5 // pred_fallthru
        _
      %p418 = scmp.le.s32.totalorder 1, %s26
      %p419 = scmp.lt.s32.totalorder %s26, 3
      %p420 = pnand %p418, %p419
      %p421 = pneg %p420
      // Predicated region
      $region69: #{conv_lstm_forward.1} parent=5 // pred_check
        _
      $region70: #{conv_lstm_forward.1} parent=5 // pred_check_branch
        %423 = sbr.rel (%p420) target = $region72
      $region71: #{conv_lstm_forward.1} parent=5 // pred_region
        %s424 = ssub.s32 %s26, 1
        %s425 = sand.u32 %s39, 1
        %s426 = scalar_lea.sflag [#allocation7], %s425
        %s427 = sand.u32 %s39, 1
        %s428 = smul.addr %s427, 192
        %s429 = scalar_lea.vmem [#allocation6], %s428
        // Predicated region
        $region73: #{conv_lstm_forward.1} parent=71 // pred_check
          %p430 = pneg %p52
        $region74: #{conv_lstm_forward.1} parent=71 // pred_check_branch
          %432 = sbr.rel (%p430) target = $region76
        $region75: #{conv_lstm_forward.1} parent=71 // pred_region
          %434 = dma.done %s426, 3072
        $region76: #{conv_lstm_forward.1} parent=71 // pred_fallthru
          _
        // Predicated region
        $region77: #{conv_lstm_forward.1} parent=71 // pred_check
          %p435 = pneg %p199
        $region78: #{conv_lstm_forward.1} parent=71 // pred_check_branch
          %437 = sbr.rel (%p435) target = $region80
        $region79: #{conv_lstm_forward.1} parent=71 // pred_region
          %439 = dma.done [#allocation10], 7680
        $region80: #{conv_lstm_forward.1} parent=71 // pred_fallthru
          _
        %s440 = sand.u32 %s39, 1
        %s441 = scalar_lea.sflag [#allocation7], %s440
        %s442 = sand.u32 %s39, 1
        %s443 = smul.addr %s442, 192
        %s444 = scalar_lea.vmem [#allocation6], %s443
        %p445 = pneg %p52
        %p446 = pneg %p49
        %p447 = pneg %p73
        %p448 = pneg %p70
        %p449 = pneg %p94
        %p450 = pneg %p91
        %p451 = pneg %p115
        %p452 = pneg %p112
        %p453 = pneg %p136
        %p454 = pneg %p133
        %p455 = pneg %p157
        %p456 = pneg %p154
        %p457 = pneg %p178
        %p458 = pneg %p175
        %p459 = pneg %p199
        %p460 = pneg %p196
        %p461 = pneg %p220
        %p462 = pneg %p217
        %p463 = pneg %p241
        %p464 = pneg %p238
        %p465 = pneg %p262
        %p466 = pneg %p259
        %p467 = pneg %p283
        %p468 = pneg %p280
        %p469 = pneg %p304
        %p470 = pneg %p301
        %p471 = pneg %p330
        %p472 = pneg %p327
        %s473 = sand.u32 %s317, 1
        %s474 = scalar_lea.sflag [#allocation8], %s473
        %s475 = sand.u32 %s317, 1
        %s476 = scalar_lea.vmem [#allocation11], %s475
        %v478 = vld [vmem:[%s429] sm:$0xff]
        %v479 = vld [vmem:[%s429 + $0x8] sm:$0xff]
        %v480 = vld [vmem:[%s429 + $0x10] sm:$0xff]
        %v481 = vld [vmem:[%s429 + $0x18] sm:$0xff]
        %v482 = vld [vmem:[%s429 + $0x20] sm:$0xff]
        %v483 = vld [vmem:[%s429 + $0x28] sm:$0xff]
        %v484 = vld [vmem:[%s429 + $0x30] sm:$0xff]
        %v485 = vld [vmem:[%s429 + $0x38] sm:$0xff]
        %v486 = vld [vmem:[%s429 + $0x40] sm:$0xff]
        %v487 = vld [vmem:[%s429 + $0x48] sm:$0xff]
        %v488 = vld [vmem:[%s429 + $0x50] sm:$0xff]
        %v489 = vld [vmem:[%s429 + $0x58] sm:$0xff]
        %v490 = vld [vmem:[%s429 + $0x60] sm:$0xff]
        %v491 = vld [vmem:[%s429 + $0x68] sm:$0xff]
        %v492 = vld [vmem:[%s429 + $0x70] sm:$0xff]
        %v493 = vld [vmem:[%s429 + $0x78] sm:$0xff]
        %v494 = vld [vmem:[%s429 + $0x80] sm:$0xff]
        %v495 = vld [vmem:[%s429 + $0x88] sm:$0xff]
        %v496 = vld [vmem:[%s429 + $0x90] sm:$0xff]
        %v497 = vld [vmem:[%s429 + $0x98] sm:$0xff]
        %v498 = vld [vmem:[%s429 + $0xa0] sm:$0xff]
        %v499 = vld [vmem:[%s429 + $0xa8] sm:$0xff]
        %v500 = vld [vmem:[%s429 + $0xb0] sm:$0xff]
        %v501 = vld [vmem:[%s429 + $0xb8] sm:$0xff]
        %502 = vxpose.xlu0.b32.start [1/16] %v478, 128
        %503 = vxpose.xlu0.b32.cont [2/16] %v481, 128
        %504 = vxpose.xlu0.b32.cont [3/16] %v484, 128
        %505 = vxpose.xlu0.b32.cont [4/16] %v487, 128
        %506 = vxpose.xlu0.b32.cont [5/16] %v490, 128
        %507 = vxpose.xlu0.b32.cont [6/16] %v493, 128
        %508 = vxpose.xlu0.b32.cont [7/16] %v496, 128
        %509 = vxpose.xlu0.b32.cont [8/16] %v499, 128
        %510 = vxpose.xlu0.b32.cont [9/16] 0.0, 128
        %511 = vxpose.xlu0.b32.cont [10/16] 0.0, 128
        %512 = vxpose.xlu0.b32.cont [11/16] 0.0, 128
        %513 = vxpose.xlu0.b32.cont [12/16] 0.0, 128
        %514 = vxpose.xlu0.b32.cont [13/16] 0.0, 128
        %515 = vxpose.xlu0.b32.cont [14/16] 0.0, 128
        %516 = vxpose.xlu0.b32.cont [15/16] 0.0, 128
        %517 = vxpose.xlu0.b32.end [16/16] 0.0, 128
        %v518 = vpop.trf.xlu0
        %v519 = vpop.trf.xlu0
        %v520 = vpop.trf.xlu0
        %v521 = vpop.trf.xlu0
        %v522 = vpop.trf.xlu0
        %v523 = vpop.trf.xlu0
        %v524 = vpop.trf.xlu0
        %v525 = vpop.trf.xlu0
        %v526 = vpop.trf.xlu0
        %v527 = vpop.trf.xlu0
        %v528 = vpop.trf.xlu0
        %v529 = vpop.trf.xlu0
        %v530 = vpop.trf.xlu0
        %v531 = vpop.trf.xlu0
        %v532 = vpop.trf.xlu0
        %v533 = vpop.trf.xlu0
        %534 = vxpose.xlu0.b32.start [1/16] %v479, 128
        %535 = vxpose.xlu0.b32.cont [2/16] %v482, 128
        %536 = vxpose.xlu0.b32.cont [3/16] %v485, 128
        %537 = vxpose.xlu0.b32.cont [4/16] %v488, 128
        %538 = vxpose.xlu0.b32.cont [5/16] %v491, 128
        %539 = vxpose.xlu0.b32.cont [6/16] %v494, 128
        %540 = vxpose.xlu0.b32.cont [7/16] %v497, 128
        %541 = vxpose.xlu0.b32.cont [8/16] %v500, 128
        %542 = vxpose.xlu0.b32.cont [9/16] 0.0, 128
        %543 = vxpose.xlu0.b32.cont [10/16] 0.0, 128
        %544 = vxpose.xlu0.b32.cont [11/16] 0.0, 128
        %545 = vxpose.xlu0.b32.cont [12/16] 0.0, 128
        %546 = vxpose.xlu0.b32.cont [13/16] 0.0, 128
        %547 = vxpose.xlu0.b32.cont [14/16] 0.0, 128
        %548 = vxpose.xlu0.b32.cont [15/16] 0.0, 128
        %549 = vxpose.xlu0.b32.end [16/16] 0.0, 128
        %v550 = vpop.trf.xlu0
        %v551 = vpop.trf.xlu0
        %v552 = vpop.trf.xlu0
        %v553 = vpop.trf.xlu0
        %v554 = vpop.trf.xlu0
        %v555 = vpop.trf.xlu0
        %v556 = vpop.trf.xlu0
        %v557 = vpop.trf.xlu0
        %v558 = vpop.trf.xlu0
        %v559 = vpop.trf.xlu0
        %v560 = vpop.trf.xlu0
        %v561 = vpop.trf.xlu0
        %v562 = vpop.trf.xlu0
        %v563 = vpop.trf.xlu0
        %v564 = vpop.trf.xlu0
        %v565 = vpop.trf.xlu0
        %566 = vxpose.xlu0.b32.start [1/16] %v480, 128
        %567 = vxpose.xlu0.b32.cont [2/16] %v483, 128
        %568 = vxpose.xlu0.b32.cont [3/16] %v486, 128
        %569 = vxpose.xlu0.b32.cont [4/16] %v489, 128
        %570 = vxpose.xlu0.b32.cont [5/16] %v492, 128
        %571 = vxpose.xlu0.b32.cont [6/16] %v495, 128
        %572 = vxpose.xlu0.b32.cont [7/16] %v498, 128
        %573 = vxpose.xlu0.b32.cont [8/16] %v501, 128
        %574 = vxpose.xlu0.b32.cont [9/16] 0.0, 128
        %575 = vxpose.xlu0.b32.cont [10/16] 0.0, 128
        %576 = vxpose.xlu0.b32.cont [11/16] 0.0, 128
        %577 = vxpose.xlu0.b32.cont [12/16] 0.0, 128
        %578 = vxpose.xlu0.b32.cont [13/16] 0.0, 128
        %579 = vxpose.xlu0.b32.cont [14/16] 0.0, 128
        %580 = vxpose.xlu0.b32.cont [15/16] 0.0, 128
        %581 = vxpose.xlu0.b32.end [16/16] 0.0, 128
        %v582 = vpop.trf.xlu0
        %v583 = vpop.trf.xlu0
        %v584 = vpop.trf.xlu0
        %v585 = vpop.trf.xlu0
        %v586 = vpop.trf.xlu0
        %v587 = vpop.trf.xlu0
        %v588 = vpop.trf.xlu0
        %v589 = vpop.trf.xlu0
        %v590 = vpop.trf.xlu0
        %v591 = vpop.trf.xlu0
        %v592 = vpop.trf.xlu0
        %v593 = vpop.trf.xlu0
        %v594 = vpop.trf.xlu0
        %v595 = vpop.trf.xlu0
        %v596 = vpop.trf.xlu0
        %v597 = vpop.trf.xlu0
        %vm598 = vcmask 517120
        %599 = vst.msk [vmem:[#allocation2] sm:$0x3] %vm598, 0.0
        %vm600 = vcmask 523264
        %601 = vst.msk [vmem:[#allocation2 + $0x2] sm:$0xff] %vm600, %v518
        %602 = vst.msk [vmem:[#allocation2 + $0xa] sm:$0xff] %vm600, %v519
        %603 = vst.msk [vmem:[#allocation2 + $0x12] sm:$0xff] %vm600, %v520
        %604 = vst.msk [vmem:[#allocation2 + $0x1a] sm:$0xff] %vm600, %v521
        %605 = vst.msk [vmem:[#allocation2 + $0x22] sm:$0xff] %vm600, %v522
        %606 = vst.msk [vmem:[#allocation2 + $0x2a] sm:$0xff] %vm600, %v523
        %607 = vst.msk [vmem:[#allocation2 + $0x32] sm:$0xff] %vm600, %v524
        %608 = vst.msk [vmem:[#allocation2 + $0x3a] sm:$0xff] %vm600, %v525
        %609 = vst.msk [vmem:[#allocation2 + $0x42] sm:$0xff] %vm600, %v526
        %610 = vst.msk [vmem:[#allocation2 + $0x4a] sm:$0xff] %vm600, %v527
        %611 = vst.msk [vmem:[#allocation2 + $0x52] sm:$0xff] %vm600, %v528
        %612 = vst.msk [vmem:[#allocation2 + $0x5a] sm:$0xff] %vm600, %v529
        %613 = vst.msk [vmem:[#allocation2 + $0x62] sm:$0xff] %vm600, %v530
        %614 = vst.msk [vmem:[#allocation2 + $0x6a] sm:$0xff] %vm600, %v531
        %615 = vst.msk [vmem:[#allocation2 + $0x72] sm:$0xff] %vm600, %v532
        %616 = vst.msk [vmem:[#allocation2 + $0x7a] sm:$0xff] %vm600, %v533
        %617 = vst.msk [vmem:[#allocation2 + $0x82] sm:$0xff] %vm600, %v550
        %618 = vst.msk [vmem:[#allocation2 + $0x8a] sm:$0xff] %vm600, %v551
        %619 = vst.msk [vmem:[#allocation2 + $0x92] sm:$0xff] %vm600, %v552
        %620 = vst.msk [vmem:[#allocation2 + $0x9a] sm:$0xff] %vm600, %v553
        %621 = vst.msk [vmem:[#allocation2 + $0xa2] sm:$0xff] %vm600, %v554
        %622 = vst.msk [vmem:[#allocation2 + $0xaa] sm:$0xff] %vm600, %v555
        %623 = vst.msk [vmem:[#allocation2 + $0xb2] sm:$0xff] %vm600, %v556
        %624 = vst.msk [vmem:[#allocation2 + $0xba] sm:$0xff] %vm600, %v557
        %625 = vst.msk [vmem:[#allocation2 + $0xc2] sm:$0xff] %vm600, %v558
        %626 = vst.msk [vmem:[#allocation2 + $0xca] sm:$0xff] %vm600, %v559
        %627 = vst.msk [vmem:[#allocation2 + $0xd2] sm:$0xff] %vm600, %v560
        %628 = vst.msk [vmem:[#allocation2 + $0xda] sm:$0xff] %vm600, %v561
        %629 = vst.msk [vmem:[#allocation2 + $0xe2] sm:$0xff] %vm600, %v562
        %630 = vst.msk [vmem:[#allocation2 + $0xea] sm:$0xff] %vm600, %v563
        %631 = vst.msk [vmem:[#allocation2 + $0xf2] sm:$0xff] %vm600, %v564
        %632 = vst.msk [vmem:[#allocation2 + $0xfa] sm:$0xff] %vm600, %v565
        %633 = vst.msk [vmem:[#allocation2 + $0x102] sm:$0xff] %vm600, %v582
        %634 = vst.msk [vmem:[#allocation2 + $0x10a] sm:$0xff] %vm600, %v583
        %635 = vst.msk [vmem:[#allocation2 + $0x112] sm:$0xff] %vm600, %v584
        %636 = vst.msk [vmem:[#allocation2 + $0x11a] sm:$0xff] %vm600, %v585
        %637 = vst.msk [vmem:[#allocation2 + $0x122] sm:$0xff] %vm600, %v586
        %638 = vst.msk [vmem:[#allocation2 + $0x12a] sm:$0xff] %vm600, %v587
        %639 = vst.msk [vmem:[#allocation2 + $0x132] sm:$0xff] %vm600, %v588
        %640 = vst.msk [vmem:[#allocation2 + $0x13a] sm:$0xff] %vm600, %v589
        %641 = vst.msk [vmem:[#allocation2 + $0x142] sm:$0x3] %vm598, 0.0
        %v642 = vld [vmem:[#allocation2] ss:$2 sm:$0xff]
        %s643 = scalar_lea.vmem [#allocation2], 16
        %v644 = vld [vmem:[%s643] ss:$2 sm:$0xff]
        %s645 = scalar_lea.vmem [#allocation2], 32
        %v646 = vld [vmem:[%s645] ss:$2 sm:$0xff]
        %s647 = scalar_lea.vmem [#allocation2], 48
        %v648 = vld [vmem:[%s647] ss:$2 sm:$0xff]
        %s649 = scalar_lea.vmem [#allocation2], 64
        %v650 = vld [vmem:[%s649] ss:$2 sm:$0xff]
        %s651 = scalar_lea.vmem [#allocation2], 80
        %v652 = vld [vmem:[%s651] ss:$2 sm:$0xff]
        %s653 = scalar_lea.vmem [#allocation2], 96
        %v654 = vld [vmem:[%s653] ss:$2 sm:$0xff]
        %s655 = scalar_lea.vmem [#allocation2], 112
        %v656 = vld [vmem:[%s655] ss:$2 sm:$0xff]
        %s657 = scalar_lea.vmem [#allocation2], 128
        %v658 = vld [vmem:[%s657] ss:$2 sm:$0xff]
        %s659 = scalar_lea.vmem [#allocation2], 144
        %v660 = vld [vmem:[%s659] ss:$2 sm:$0xff]
        %s661 = scalar_lea.vmem [#allocation2], 160
        %v662 = vld [vmem:[%s661] ss:$2 sm:$0xff]
        %s663 = scalar_lea.vmem [#allocation2], 176
        %v664 = vld [vmem:[%s663] ss:$2 sm:$0xff]
        %s665 = scalar_lea.vmem [#allocation2], 192
        %v666 = vld [vmem:[%s665] ss:$2 sm:$0xff]
        %s667 = scalar_lea.vmem [#allocation2], 208
        %v668 = vld [vmem:[%s667] ss:$2 sm:$0xff]
        %s669 = scalar_lea.vmem [#allocation2], 224
        %v670 = vld [vmem:[%s669] ss:$2 sm:$0xff]
        %s671 = scalar_lea.vmem [#allocation2], 240
        %v672 = vld [vmem:[%s671] ss:$2 sm:$0xff]
        %s673 = scalar_lea.vmem [#allocation2], 256
        %v674 = vld [vmem:[%s673] ss:$2 sm:$0xff]
        %s675 = scalar_lea.vmem [#allocation2], 272
        %v676 = vld [vmem:[%s675] ss:$2 sm:$0xff]
        %s677 = scalar_lea.vmem [#allocation2], 288
        %v678 = vld [vmem:[%s677] ss:$2 sm:$0xff]
        %s679 = scalar_lea.vmem [#allocation2], 304
        %v680 = vld [vmem:[%s679] ss:$2 sm:$0xff]
        %v681 = vpack.c.bf16 %v644, %v642
        %v682 = vpack.c.bf16 %v648, %v646
        %v683 = vpack.c.bf16 %v652, %v650
        %v684 = vpack.c.bf16 %v656, %v654
        %v685 = vpack.c.bf16 %v660, %v658
        %v686 = vpack.c.bf16 %v664, %v662
        %v687 = vpack.c.bf16 %v668, %v666
        %v688 = vpack.c.bf16 %v672, %v670
        %v689 = vpack.c.bf16 %v676, %v674
        %v690 = vpack.c.bf16 %v680, %v678
        %v691 = vld [vmem:[%s1] sm:$0xf]
        %v692 = vld [vmem:[%s1 + $0x4] sm:$0xf]
        %v693 = vld [vmem:[%s1 + $0x8] sm:$0xf]
        %v694 = vld [vmem:[%s1 + $0xc] sm:$0xf]
        %v695 = vld [vmem:[%s1 + $0x10] sm:$0xf]
        %v696 = vld [vmem:[%s1 + $0x14] sm:$0xf]
        %v697 = vld [vmem:[%s1 + $0x18] sm:$0xf]
        %v698 = vld [vmem:[%s1 + $0x1c] sm:$0xf]
        %s699 = scalar_lea.vmem [#allocation2], 1
        %v700 = vld [vmem:[%s699] ss:$2 sm:$0xff]
        %s701 = scalar_lea.vmem [#allocation2], 17
        %v702 = vld [vmem:[%s701] ss:$2 sm:$0xff]
        %s703 = scalar_lea.vmem [#allocation2], 33
        %v704 = vld [vmem:[%s703] ss:$2 sm:$0xff]
        %s705 = scalar_lea.vmem [#allocation2], 49
        %v706 = vld [vmem:[%s705] ss:$2 sm:$0xff]
        %s707 = scalar_lea.vmem [#allocation2], 65
        %v708 = vld [vmem:[%s707] ss:$2 sm:$0xff]
        %s709 = scalar_lea.vmem [#allocation2], 81
        %v710 = vld [vmem:[%s709] ss:$2 sm:$0xff]
        %s711 = scalar_lea.vmem [#allocation2], 97
        %v712 = vld [vmem:[%s711] ss:$2 sm:$0xff]
        %s713 = scalar_lea.vmem [#allocation2], 113
        %v714 = vld [vmem:[%s713] ss:$2 sm:$0xff]
        %s715 = scalar_lea.vmem [#allocation2], 129
        %v716 = vld [vmem:[%s715] ss:$2 sm:$0xff]
        %s717 = scalar_lea.vmem [#allocation2], 145
        %v718 = vld [vmem:[%s717] ss:$2 sm:$0xff]
        %s719 = scalar_lea.vmem [#allocation2], 161
        %v720 = vld [vmem:[%s719] ss:$2 sm:$0xff]
        %s721 = scalar_lea.vmem [#allocation2], 177
        %v722 = vld [vmem:[%s721] ss:$2 sm:$0xff]
        %s723 = scalar_lea.vmem [#allocation2], 193
        %v724 = vld [vmem:[%s723] ss:$2 sm:$0xff]
        %s725 = scalar_lea.vmem [#allocation2], 209
        %v726 = vld [vmem:[%s725] ss:$2 sm:$0xff]
        %s727 = scalar_lea.vmem [#allocation2], 225
        %v728 = vld [vmem:[%s727] ss:$2 sm:$0xff]
        %s729 = scalar_lea.vmem [#allocation2], 241
        %v730 = vld [vmem:[%s729] ss:$2 sm:$0xff]
        %s731 = scalar_lea.vmem [#allocation2], 257
        %v732 = vld [vmem:[%s731] ss:$2 sm:$0xff]
        %s733 = scalar_lea.vmem [#allocation2], 273
        %v734 = vld [vmem:[%s733] ss:$2 sm:$0xff]
        %s735 = scalar_lea.vmem [#allocation2], 289
        %v736 = vld [vmem:[%s735] ss:$2 sm:$0xff]
        %s737 = scalar_lea.vmem [#allocation2], 305
        %v738 = vld [vmem:[%s737] ss:$2 sm:$0xff]
        %v739 = vpack.c.bf16 %v702, %v700
        %v740 = vpack.c.bf16 %v706, %v704
        %v741 = vpack.c.bf16 %v710, %v708
        %v742 = vpack.c.bf16 %v714, %v712
        %v743 = vpack.c.bf16 %v718, %v716
        %v744 = vpack.c.bf16 %v722, %v720
        %v745 = vpack.c.bf16 %v726, %v724
        %v746 = vpack.c.bf16 %v730, %v728
        %v747 = vpack.c.bf16 %v734, %v732
        %v748 = vpack.c.bf16 %v738, %v736
        %v749 = vld [vmem:[%s1 + $0x20] sm:$0xf]
        %v750 = vld [vmem:[%s1 + $0x24] sm:$0xf]
        %v751 = vld [vmem:[%s1 + $0x28] sm:$0xf]
        %v752 = vld [vmem:[%s1 + $0x2c] sm:$0xf]
        %v753 = vld [vmem:[%s1 + $0x30] sm:$0xf]
        %v754 = vld [vmem:[%s1 + $0x34] sm:$0xf]
        %v755 = vld [vmem:[%s1 + $0x38] sm:$0xf]
        %v756 = vld [vmem:[%s1 + $0x3c] sm:$0xf]
        %v765 = vunpack.c.l.b16 %v749
        %v766 = vunpack.c.l.b16 %v750
        %v767 = vunpack.c.l.b16 %v751
        %v768 = vunpack.c.l.b16 %v752
        %v769 = vunpack.c.l.b16 %v753
        %v770 = vunpack.c.l.b16 %v754
        %v771 = vunpack.c.l.b16 %v755
        %v772 = vunpack.c.l.b16 %v756
        %v773 = vpack.c.b16 %v766, %v765
        %v774 = vpack.c.b16 %v768, %v767
        %v775 = vpack.c.b16 %v770, %v769
        %v776 = vpack.c.b16 %v772, %v771
        %v782 = vsel %vm600, %v739, 0
        %v785 = vsel %vm600, %v740, 0
        %v788 = vsel %vm600, %v741, 0
        %v791 = vsel %vm600, %v742, 0
        %v794 = vsel %vm600, %v743, 0
        %v797 = vsel %vm600, %v744, 0
        %v800 = vsel %vm600, %v745, 0
        %v803 = vsel %vm600, %v746, 0
        %v806 = vsel %vm600, %v747, 0
        %v809 = vsel %vm600, %v748, 0
        %811 = vmatpush.bf16.msra.mxu0 0
        %812 = vmatpush.bf16.msra.mxu0 0
        %813 = vmatpush.bf16.msra.mxu0 0
        %814 = vmatpush.bf16.msra.mxu0 0
        %815 = vmatpush.bf16.msra.mxu0 %v776
        %816 = vmatpush.bf16.msra.mxu0 %v775
        %817 = vmatpush.bf16.msra.mxu0 %v774
        %818 = vmatpush.bf16.msra.mxu0 %v773
        %819 = vmatmul.bf16.gmra.mxu0 %v782
        %v820 = vpop.f32.mrf.mxu0
        %v821 = vadd.f32 0.0, %v820
        %v822 = vpop.f32.mrf.mxu0
        %v823 = vadd.f32 0.0, %v822
        %824 = vmatmul.bf16.gmra.mxu0 %v785
        %v825 = vpop.f32.mrf.mxu0
        %v826 = vadd.f32 0.0, %v825
        %v827 = vpop.f32.mrf.mxu0
        %v828 = vadd.f32 0.0, %v827
        %829 = vmatmul.bf16.gmra.mxu0 %v788
        %v830 = vpop.f32.mrf.mxu0
        %v831 = vadd.f32 0.0, %v830
        %v832 = vpop.f32.mrf.mxu0
        %v833 = vadd.f32 0.0, %v832
        %834 = vmatmul.bf16.gmra.mxu0 %v791
        %v835 = vpop.f32.mrf.mxu0
        %v836 = vadd.f32 0.0, %v835
        %v837 = vpop.f32.mrf.mxu0
        %v838 = vadd.f32 0.0, %v837
        %839 = vmatmul.bf16.gmra.mxu0 %v794
        %v840 = vpop.f32.mrf.mxu0
        %v841 = vadd.f32 0.0, %v840
        %v842 = vpop.f32.mrf.mxu0
        %v843 = vadd.f32 0.0, %v842
        %844 = vmatmul.bf16.gmra.mxu0 %v797
        %v845 = vpop.f32.mrf.mxu0
        %v846 = vadd.f32 0.0, %v845
        %v847 = vpop.f32.mrf.mxu0
        %v848 = vadd.f32 0.0, %v847
        %849 = vmatmul.bf16.gmra.mxu0 %v800
        %v850 = vpop.f32.mrf.mxu0
        %v851 = vadd.f32 0.0, %v850
        %v852 = vpop.f32.mrf.mxu0
        %v853 = vadd.f32 0.0, %v852
        %854 = vmatmul.bf16.gmra.mxu0 %v803
        %v855 = vpop.f32.mrf.mxu0
        %v856 = vadd.f32 0.0, %v855
        %v857 = vpop.f32.mrf.mxu0
        %v858 = vadd.f32 0.0, %v857
        %859 = vmatmul.bf16.gmra.mxu0 %v806
        %v860 = vpop.f32.mrf.mxu0
        %v861 = vadd.f32 0.0, %v860
        %v862 = vpop.f32.mrf.mxu0
        %v863 = vadd.f32 0.0, %v862
        %864 = vmatmul.bf16.gmra.mxu0 %v809
        %v865 = vpop.f32.mrf.mxu0
        %v866 = vadd.f32 0.0, %v865
        %v867 = vpop.f32.mrf.mxu0
        %v868 = vadd.f32 0.0, %v867
        %869 = vdwg.mxu0
        %v878 = vunpack.c.l.b16 %v691
        %v879 = vunpack.c.l.b16 %v692
        %v880 = vunpack.c.l.b16 %v693
        %v881 = vunpack.c.l.b16 %v694
        %v882 = vunpack.c.l.b16 %v695
        %v883 = vunpack.c.l.b16 %v696
        %v884 = vunpack.c.l.b16 %v697
        %v885 = vunpack.c.l.b16 %v698
        %v886 = vpack.c.b16 %v879, %v878
        %v887 = vpack.c.b16 %v881, %v880
        %v888 = vpack.c.b16 %v883, %v882
        %v889 = vpack.c.b16 %v885, %v884
        %v895 = vsel %vm600, %v681, 0
        %v898 = vsel %vm600, %v682, 0
        %v901 = vsel %vm600, %v683, 0
        %v904 = vsel %vm600, %v684, 0
        %v907 = vsel %vm600, %v685, 0
        %v910 = vsel %vm600, %v686, 0
        %v913 = vsel %vm600, %v687, 0
        %v916 = vsel %vm600, %v688, 0
        %v919 = vsel %vm600, %v689, 0
        %v922 = vsel %vm600, %v690, 0
        %924 = vmatpush.bf16.msra.mxu0 0
        %925 = vmatpush.bf16.msra.mxu0 0
        %926 = vmatpush.bf16.msra.mxu0 0
        %927 = vmatpush.bf16.msra.mxu0 0
        %928 = vmatpush.bf16.msra.mxu0 %v889
        %929 = vmatpush.bf16.msra.mxu0 %v888
        %930 = vmatpush.bf16.msra.mxu0 %v887
        %931 = vmatpush.bf16.msra.mxu0 %v886
        %932 = vmatmul.bf16.gmra.mxu0 %v895
        %v933 = vpop.f32.mrf.mxu0
        %v934 = vadd.f32 %v821, %v933
        %v935 = vpop.f32.mrf.mxu0
        %v936 = vadd.f32 %v823, %v935
        %937 = vmatmul.bf16.gmra.mxu0 %v898
        %v938 = vpop.f32.mrf.mxu0
        %v939 = vadd.f32 %v826, %v938
        %v940 = vpop.f32.mrf.mxu0
        %v941 = vadd.f32 %v828, %v940
        %942 = vmatmul.bf16.gmra.mxu0 %v901
        %v943 = vpop.f32.mrf.mxu0
        %v944 = vadd.f32 %v831, %v943
        %v945 = vpop.f32.mrf.mxu0
        %v946 = vadd.f32 %v833, %v945
        %947 = vmatmul.bf16.gmra.mxu0 %v904
        %v948 = vpop.f32.mrf.mxu0
        %v949 = vadd.f32 %v836, %v948
        %v950 = vpop.f32.mrf.mxu0
        %v951 = vadd.f32 %v838, %v950
        %952 = vmatmul.bf16.gmra.mxu0 %v907
        %v953 = vpop.f32.mrf.mxu0
        %v954 = vadd.f32 %v841, %v953
        %v955 = vpop.f32.mrf.mxu0
        %v956 = vadd.f32 %v843, %v955
        %957 = vmatmul.bf16.gmra.mxu0 %v910
        %v958 = vpop.f32.mrf.mxu0
        %v959 = vadd.f32 %v846, %v958
        %v960 = vpop.f32.mrf.mxu0
        %v961 = vadd.f32 %v848, %v960
        %962 = vmatmul.bf16.gmra.mxu0 %v913
        %v963 = vpop.f32.mrf.mxu0
        %v964 = vadd.f32 %v851, %v963
        %v965 = vpop.f32.mrf.mxu0
        %v966 = vadd.f32 %v853, %v965
        %967 = vmatmul.bf16.gmra.mxu0 %v916
        %v968 = vpop.f32.mrf.mxu0
        %v969 = vadd.f32 %v856, %v968
        %v970 = vpop.f32.mrf.mxu0
        %v971 = vadd.f32 %v858, %v970
        %972 = vmatmul.bf16.gmra.mxu0 %v919
        %v973 = vpop.f32.mrf.mxu0
        %v974 = vadd.f32 %v861, %v973
        %v975 = vpop.f32.mrf.mxu0
        %v976 = vadd.f32 %v863, %v975
        %977 = vmatmul.bf16.gmra.mxu0 %v922
        %v978 = vpop.f32.mrf.mxu0
        %v979 = vadd.f32 %v866, %v978
        %v980 = vpop.f32.mrf.mxu0
        %v981 = vadd.f32 %v868, %v980
        %982 = vdwg.mxu0
        %s983 = scalar_lea.vmem [#allocation2], 2
        %v984 = vld [vmem:[%s983] ss:$2 sm:$0xff]
        %s985 = scalar_lea.vmem [#allocation2], 18
        %v986 = vld [vmem:[%s985] ss:$2 sm:$0xff]
        %s987 = scalar_lea.vmem [#allocation2], 34
        %v988 = vld [vmem:[%s987] ss:$2 sm:$0xff]
        %s989 = scalar_lea.vmem [#allocation2], 50
        %v990 = vld [vmem:[%s989] ss:$2 sm:$0xff]
        %s991 = scalar_lea.vmem [#allocation2], 66
        %v992 = vld [vmem:[%s991] ss:$2 sm:$0xff]
        %s993 = scalar_lea.vmem [#allocation2], 82
        %v994 = vld [vmem:[%s993] ss:$2 sm:$0xff]
        %s995 = scalar_lea.vmem [#allocation2], 98
        %v996 = vld [vmem:[%s995] ss:$2 sm:$0xff]
        %s997 = scalar_lea.vmem [#allocation2], 114
        %v998 = vld [vmem:[%s997] ss:$2 sm:$0xff]
        %s999 = scalar_lea.vmem [#allocation2], 130
        %v1000 = vld [vmem:[%s999] ss:$2 sm:$0xff]
        %s1001 = scalar_lea.vmem [#allocation2], 146
        %v1002 = vld [vmem:[%s1001] ss:$2 sm:$0xff]
        %s1003 = scalar_lea.vmem [#allocation2], 162
        %v1004 = vld [vmem:[%s1003] ss:$2 sm:$0xff]
        %s1005 = scalar_lea.vmem [#allocation2], 178
        %v1006 = vld [vmem:[%s1005] ss:$2 sm:$0xff]
        %s1007 = scalar_lea.vmem [#allocation2], 194
        %v1008 = vld [vmem:[%s1007] ss:$2 sm:$0xff]
        %s1009 = scalar_lea.vmem [#allocation2], 210
        %v1010 = vld [vmem:[%s1009] ss:$2 sm:$0xff]
        %s1011 = scalar_lea.vmem [#allocation2], 226
        %v1012 = vld [vmem:[%s1011] ss:$2 sm:$0xff]
        %s1013 = scalar_lea.vmem [#allocation2], 242
        %v1014 = vld [vmem:[%s1013] ss:$2 sm:$0xff]
        %s1015 = scalar_lea.vmem [#allocation2], 258
        %v1016 = vld [vmem:[%s1015] ss:$2 sm:$0xff]
        %s1017 = scalar_lea.vmem [#allocation2], 274
        %v1018 = vld [vmem:[%s1017] ss:$2 sm:$0xff]
        %s1019 = scalar_lea.vmem [#allocation2], 290
        %v1020 = vld [vmem:[%s1019] ss:$2 sm:$0xff]
        %s1021 = scalar_lea.vmem [#allocation2], 306
        %v1022 = vld [vmem:[%s1021] ss:$2 sm:$0xff]
        %v1023 = vpack.c.bf16 %v986, %v984
        %v1024 = vpack.c.bf16 %v990, %v988
        %v1025 = vpack.c.bf16 %v994, %v992
        %v1026 = vpack.c.bf16 %v998, %v996
        %v1027 = vpack.c.bf16 %v1002, %v1000
        %v1028 = vpack.c.bf16 %v1006, %v1004
        %v1029 = vpack.c.bf16 %v1010, %v1008
        %v1030 = vpack.c.bf16 %v1014, %v1012
        %v1031 = vpack.c.bf16 %v1018, %v1016
        %v1032 = vpack.c.bf16 %v1022, %v1020
        %v1033 = vld [vmem:[%s1 + $0x40] sm:$0xf]
        %v1034 = vld [vmem:[%s1 + $0x44] sm:$0xf]
        %v1035 = vld [vmem:[%s1 + $0x48] sm:$0xf]
        %v1036 = vld [vmem:[%s1 + $0x4c] sm:$0xf]
        %v1037 = vld [vmem:[%s1 + $0x50] sm:$0xf]
        %v1038 = vld [vmem:[%s1 + $0x54] sm:$0xf]
        %v1039 = vld [vmem:[%s1 + $0x58] sm:$0xf]
        %v1040 = vld [vmem:[%s1 + $0x5c] sm:$0xf]
        %v1049 = vunpack.c.l.b16 %v1033
        %v1050 = vunpack.c.l.b16 %v1034
        %v1051 = vunpack.c.l.b16 %v1035
        %v1052 = vunpack.c.l.b16 %v1036
        %v1053 = vunpack.c.l.b16 %v1037
        %v1054 = vunpack.c.l.b16 %v1038
        %v1055 = vunpack.c.l.b16 %v1039
        %v1056 = vunpack.c.l.b16 %v1040
        %v1057 = vpack.c.b16 %v1050, %v1049
        %v1058 = vpack.c.b16 %v1052, %v1051
        %v1059 = vpack.c.b16 %v1054, %v1053
        %v1060 = vpack.c.b16 %v1056, %v1055
        %v1066 = vsel %vm600, %v1023, 0
        %v1069 = vsel %vm600, %v1024, 0
        %v1072 = vsel %vm600, %v1025, 0
        %v1075 = vsel %vm600, %v1026, 0
        %v1078 = vsel %vm600, %v1027, 0
        %v1081 = vsel %vm600, %v1028, 0
        %v1084 = vsel %vm600, %v1029, 0
        %v1087 = vsel %vm600, %v1030, 0
        %v1090 = vsel %vm600, %v1031, 0
        %v1093 = vsel %vm600, %v1032, 0
        %1095 = vmatpush.bf16.msra.mxu0 0
        %1096 = vmatpush.bf16.msra.mxu0 0
        %1097 = vmatpush.bf16.msra.mxu0 0
        %1098 = vmatpush.bf16.msra.mxu0 0
        %1099 = vmatpush.bf16.msra.mxu0 %v1060
        %1100 = vmatpush.bf16.msra.mxu0 %v1059
        %1101 = vmatpush.bf16.msra.mxu0 %v1058
        %1102 = vmatpush.bf16.msra.mxu0 %v1057
        %1103 = vmatmul.bf16.gmra.mxu0 %v1066
        %v1104 = vpop.f32.mrf.mxu0
        %v1105 = vadd.f32 0.0, %v1104
        %v1106 = vpop.f32.mrf.mxu0
        %v1107 = vadd.f32 0.0, %v1106
        %1108 = vmatmul.bf16.gmra.mxu0 %v1069
        %v1109 = vpop.f32.mrf.mxu0
        %v1110 = vadd.f32 0.0, %v1109
        %v1111 = vpop.f32.mrf.mxu0
        %v1112 = vadd.f32 0.0, %v1111
        %1113 = vmatmul.bf16.gmra.mxu0 %v1072
        %v1114 = vpop.f32.mrf.mxu0
        %v1115 = vadd.f32 0.0, %v1114
        %v1116 = vpop.f32.mrf.mxu0
        %v1117 = vadd.f32 0.0, %v1116
        %1118 = vmatmul.bf16.gmra.mxu0 %v1075
        %v1119 = vpop.f32.mrf.mxu0
        %v1120 = vadd.f32 0.0, %v1119
        %v1121 = vpop.f32.mrf.mxu0
        %v1122 = vadd.f32 0.0, %v1121
        %1123 = vmatmul.bf16.gmra.mxu0 %v1078
        %v1124 = vpop.f32.mrf.mxu0
        %v1125 = vadd.f32 0.0, %v1124
        %v1126 = vpop.f32.mrf.mxu0
        %v1127 = vadd.f32 0.0, %v1126
        %1128 = vmatmul.bf16.gmra.mxu0 %v1081
        %v1129 = vpop.f32.mrf.mxu0
        %v1130 = vadd.f32 0.0, %v1129
        %v1131 = vpop.f32.mrf.mxu0
        %v1132 = vadd.f32 0.0, %v1131
        %1133 = vmatmul.bf16.gmra.mxu0 %v1084
        %v1134 = vpop.f32.mrf.mxu0
        %v1135 = vadd.f32 0.0, %v1134
        %v1136 = vpop.f32.mrf.mxu0
        %v1137 = vadd.f32 0.0, %v1136
        %1138 = vmatmul.bf16.gmra.mxu0 %v1087
        %v1139 = vpop.f32.mrf.mxu0
        %v1140 = vadd.f32 0.0, %v1139
        %v1141 = vpop.f32.mrf.mxu0
        %v1142 = vadd.f32 0.0, %v1141
        %1143 = vmatmul.bf16.gmra.mxu0 %v1090
        %v1144 = vpop.f32.mrf.mxu0
        %v1145 = vadd.f32 0.0, %v1144
        %v1146 = vpop.f32.mrf.mxu0
        %v1147 = vadd.f32 0.0, %v1146
        %1148 = vmatmul.bf16.gmra.mxu0 %v1093
        %v1149 = vpop.f32.mrf.mxu0
        %v1150 = vadd.f32 0.0, %v1149
        %v1151 = vpop.f32.mrf.mxu0
        %v1152 = vadd.f32 0.0, %v1151
        %1153 = vdwg.mxu0
        %v1154 = vadd.f32 %v934, %v1105
        %v1155 = vadd.f32 %v936, %v1107
        %v1156 = vadd.f32 %v939, %v1110
        %v1157 = vadd.f32 %v941, %v1112
        %v1158 = vadd.f32 %v944, %v1115
        %v1159 = vadd.f32 %v946, %v1117
        %v1160 = vadd.f32 %v949, %v1120
        %v1161 = vadd.f32 %v951, %v1122
        %v1162 = vadd.f32 %v954, %v1125
        %v1163 = vadd.f32 %v956, %v1127
        %v1164 = vadd.f32 %v959, %v1130
        %v1165 = vadd.f32 %v961, %v1132
        %v1166 = vadd.f32 %v964, %v1135
        %v1167 = vadd.f32 %v966, %v1137
        %v1168 = vadd.f32 %v969, %v1140
        %v1169 = vadd.f32 %v971, %v1142
        %v1170 = vadd.f32 %v974, %v1145
        %v1171 = vadd.f32 %v976, %v1147
        %v1172 = vadd.f32 %v979, %v1150
        %v1173 = vadd.f32 %v981, %v1152
        %s1174 = scalar_lea.vmem [#allocation2], 3
        %v1175 = vld [vmem:[%s1174] ss:$2 sm:$0xff]
        %s1176 = scalar_lea.vmem [#allocation2], 19
        %v1177 = vld [vmem:[%s1176] ss:$2 sm:$0xff]
        %s1178 = scalar_lea.vmem [#allocation2], 35
        %v1179 = vld [vmem:[%s1178] ss:$2 sm:$0xff]
        %s1180 = scalar_lea.vmem [#allocation2], 51
        %v1181 = vld [vmem:[%s1180] ss:$2 sm:$0xff]
        %s1182 = scalar_lea.vmem [#allocation2], 67
        %v1183 = vld [vmem:[%s1182] ss:$2 sm:$0xff]
        %s1184 = scalar_lea.vmem [#allocation2], 83
        %v1185 = vld [vmem:[%s1184] ss:$2 sm:$0xff]
        %s1186 = scalar_lea.vmem [#allocation2], 99
        %v1187 = vld [vmem:[%s1186] ss:$2 sm:$0xff]
        %s1188 = scalar_lea.vmem [#allocation2], 115
        %v1189 = vld [vmem:[%s1188] ss:$2 sm:$0xff]
        %s1190 = scalar_lea.vmem [#allocation2], 131
        %v1191 = vld [vmem:[%s1190] ss:$2 sm:$0xff]
        %s1192 = scalar_lea.vmem [#allocation2], 147
        %v1193 = vld [vmem:[%s1192] ss:$2 sm:$0xff]
        %s1194 = scalar_lea.vmem [#allocation2], 163
        %v1195 = vld [vmem:[%s1194] ss:$2 sm:$0xff]
        %s1196 = scalar_lea.vmem [#allocation2], 179
        %v1197 = vld [vmem:[%s1196] ss:$2 sm:$0xff]
        %s1198 = scalar_lea.vmem [#allocation2], 195
        %v1199 = vld [vmem:[%s1198] ss:$2 sm:$0xff]
        %s1200 = scalar_lea.vmem [#allocation2], 211
        %v1201 = vld [vmem:[%s1200] ss:$2 sm:$0xff]
        %s1202 = scalar_lea.vmem [#allocation2], 227
        %v1203 = vld [vmem:[%s1202] ss:$2 sm:$0xff]
        %s1204 = scalar_lea.vmem [#allocation2], 243
        %v1205 = vld [vmem:[%s1204] ss:$2 sm:$0xff]
        %s1206 = scalar_lea.vmem [#allocation2], 259
        %v1207 = vld [vmem:[%s1206] ss:$2 sm:$0xff]
        %s1208 = scalar_lea.vmem [#allocation2], 275
        %v1209 = vld [vmem:[%s1208] ss:$2 sm:$0xff]
        %s1210 = scalar_lea.vmem [#allocation2], 291
        %v1211 = vld [vmem:[%s1210] ss:$2 sm:$0xff]
        %s1212 = scalar_lea.vmem [#allocation2], 307
        %v1213 = vld [vmem:[%s1212] ss:$2 sm:$0xff]
        %v1214 = vpack.c.bf16 %v1177, %v1175
        %v1215 = vpack.c.bf16 %v1181, %v1179
        %v1216 = vpack.c.bf16 %v1185, %v1183
        %v1217 = vpack.c.bf16 %v1189, %v1187
        %v1218 = vpack.c.bf16 %v1193, %v1191
        %v1219 = vpack.c.bf16 %v1197, %v1195
        %v1220 = vpack.c.bf16 %v1201, %v1199
        %v1221 = vpack.c.bf16 %v1205, %v1203
        %v1222 = vpack.c.bf16 %v1209, %v1207
        %v1223 = vpack.c.bf16 %v1213, %v1211
        %v1224 = vld [vmem:[%s1 + $0x60] sm:$0xf]
        %v1225 = vld [vmem:[%s1 + $0x64] sm:$0xf]
        %v1226 = vld [vmem:[%s1 + $0x68] sm:$0xf]
        %v1227 = vld [vmem:[%s1 + $0x6c] sm:$0xf]
        %v1228 = vld [vmem:[%s1 + $0x70] sm:$0xf]
        %v1229 = vld [vmem:[%s1 + $0x74] sm:$0xf]
        %v1230 = vld [vmem:[%s1 + $0x78] sm:$0xf]
        %v1231 = vld [vmem:[%s1 + $0x7c] sm:$0xf]
        %v1240 = vunpack.c.l.b16 %v1224
        %v1241 = vunpack.c.l.b16 %v1225
        %v1242 = vunpack.c.l.b16 %v1226
        %v1243 = vunpack.c.l.b16 %v1227
        %v1244 = vunpack.c.l.b16 %v1228
        %v1245 = vunpack.c.l.b16 %v1229
        %v1246 = vunpack.c.l.b16 %v1230
        %v1247 = vunpack.c.l.b16 %v1231
        %v1248 = vpack.c.b16 %v1241, %v1240
        %v1249 = vpack.c.b16 %v1243, %v1242
        %v1250 = vpack.c.b16 %v1245, %v1244
        %v1251 = vpack.c.b16 %v1247, %v1246
        %v1257 = vsel %vm600, %v1214, 0
        %v1260 = vsel %vm600, %v1215, 0
        %v1263 = vsel %vm600, %v1216, 0
        %v1266 = vsel %vm600, %v1217, 0
        %v1269 = vsel %vm600, %v1218, 0
        %v1272 = vsel %vm600, %v1219, 0
        %v1275 = vsel %vm600, %v1220, 0
        %v1278 = vsel %vm600, %v1221, 0
        %v1281 = vsel %vm600, %v1222, 0
        %v1284 = vsel %vm600, %v1223, 0
        %1286 = vmatpush.bf16.msra.mxu0 0
        %1287 = vmatpush.bf16.msra.mxu0 0
        %1288 = vmatpush.bf16.msra.mxu0 0
        %1289 = vmatpush.bf16.msra.mxu0 0
        %1290 = vmatpush.bf16.msra.mxu0 %v1251
        %1291 = vmatpush.bf16.msra.mxu0 %v1250
        %1292 = vmatpush.bf16.msra.mxu0 %v1249
        %1293 = vmatpush.bf16.msra.mxu0 %v1248
        %1294 = vmatmul.bf16.gmra.mxu0 %v1257
        %v1295 = vpop.f32.mrf.mxu0
        %v1296 = vadd.f32 0.0, %v1295
        %v1297 = vpop.f32.mrf.mxu0
        %v1298 = vadd.f32 0.0, %v1297
        %1299 = vmatmul.bf16.gmra.mxu0 %v1260
        %v1300 = vpop.f32.mrf.mxu0
        %v1301 = vadd.f32 0.0, %v1300
        %v1302 = vpop.f32.mrf.mxu0
        %v1303 = vadd.f32 0.0, %v1302
        %1304 = vmatmul.bf16.gmra.mxu0 %v1263
        %v1305 = vpop.f32.mrf.mxu0
        %v1306 = vadd.f32 0.0, %v1305
        %v1307 = vpop.f32.mrf.mxu0
        %v1308 = vadd.f32 0.0, %v1307
        %1309 = vmatmul.bf16.gmra.mxu0 %v1266
        %v1310 = vpop.f32.mrf.mxu0
        %v1311 = vadd.f32 0.0, %v1310
        %v1312 = vpop.f32.mrf.mxu0
        %v1313 = vadd.f32 0.0, %v1312
        %1314 = vmatmul.bf16.gmra.mxu0 %v1269
        %v1315 = vpop.f32.mrf.mxu0
        %v1316 = vadd.f32 0.0, %v1315
        %v1317 = vpop.f32.mrf.mxu0
        %v1318 = vadd.f32 0.0, %v1317
        %1319 = vmatmul.bf16.gmra.mxu0 %v1272
        %v1320 = vpop.f32.mrf.mxu0
        %v1321 = vadd.f32 0.0, %v1320
        %v1322 = vpop.f32.mrf.mxu0
        %v1323 = vadd.f32 0.0, %v1322
        %1324 = vmatmul.bf16.gmra.mxu0 %v1275
        %v1325 = vpop.f32.mrf.mxu0
        %v1326 = vadd.f32 0.0, %v1325
        %v1327 = vpop.f32.mrf.mxu0
        %v1328 = vadd.f32 0.0, %v1327
        %1329 = vmatmul.bf16.gmra.mxu0 %v1278
        %v1330 = vpop.f32.mrf.mxu0
        %v1331 = vadd.f32 0.0, %v1330
        %v1332 = vpop.f32.mrf.mxu0
        %v1333 = vadd.f32 0.0, %v1332
        %1334 = vmatmul.bf16.gmra.mxu0 %v1281
        %v1335 = vpop.f32.mrf.mxu0
        %v1336 = vadd.f32 0.0, %v1335
        %v1337 = vpop.f32.mrf.mxu0
        %v1338 = vadd.f32 0.0, %v1337
        %1339 = vmatmul.bf16.gmra.mxu0 %v1284
        %v1340 = vpop.f32.mrf.mxu0
        %v1341 = vadd.f32 0.0, %v1340
        %v1342 = vpop.f32.mrf.mxu0
        %v1343 = vadd.f32 0.0, %v1342
        %1344 = vdwg.mxu0
        %v1345 = vadd.f32 %v1154, %v1296
        %v1346 = vadd.f32 %v1155, %v1298
        %v1347 = vadd.f32 %v1156, %v1301
        %v1348 = vadd.f32 %v1157, %v1303
        %v1349 = vadd.f32 %v1158, %v1306
        %v1350 = vadd.f32 %v1159, %v1308
        %v1351 = vadd.f32 %v1160, %v1311
        %v1352 = vadd.f32 %v1161, %v1313
        %v1353 = vadd.f32 %v1162, %v1316
        %v1354 = vadd.f32 %v1163, %v1318
        %v1355 = vadd.f32 %v1164, %v1321
        %v1356 = vadd.f32 %v1165, %v1323
        %v1357 = vadd.f32 %v1166, %v1326
        %v1358 = vadd.f32 %v1167, %v1328
        %v1359 = vadd.f32 %v1168, %v1331
        %v1360 = vadd.f32 %v1169, %v1333
        %v1361 = vadd.f32 %v1170, %v1336
        %v1362 = vadd.f32 %v1171, %v1338
        %v1363 = vadd.f32 %v1172, %v1341
        %v1364 = vadd.f32 %v1173, %v1343
        %s1365 = scalar_lea.vmem [#allocation2], 4
        %v1366 = vld [vmem:[%s1365] ss:$2 sm:$0xff]
        %s1367 = scalar_lea.vmem [#allocation2], 20
        %v1368 = vld [vmem:[%s1367] ss:$2 sm:$0xff]
        %s1369 = scalar_lea.vmem [#allocation2], 36
        %v1370 = vld [vmem:[%s1369] ss:$2 sm:$0xff]
        %s1371 = scalar_lea.vmem [#allocation2], 52
        %v1372 = vld [vmem:[%s1371] ss:$2 sm:$0xff]
        %s1373 = scalar_lea.vmem [#allocation2], 68
        %v1374 = vld [vmem:[%s1373] ss:$2 sm:$0xff]
        %s1375 = scalar_lea.vmem [#allocation2], 84
        %v1376 = vld [vmem:[%s1375] ss:$2 sm:$0xff]
        %s1377 = scalar_lea.vmem [#allocation2], 100
        %v1378 = vld [vmem:[%s1377] ss:$2 sm:$0xff]
        %s1379 = scalar_lea.vmem [#allocation2], 116
        %v1380 = vld [vmem:[%s1379] ss:$2 sm:$0xff]
        %s1381 = scalar_lea.vmem [#allocation2], 132
        %v1382 = vld [vmem:[%s1381] ss:$2 sm:$0xff]
        %s1383 = scalar_lea.vmem [#allocation2], 148
        %v1384 = vld [vmem:[%s1383] ss:$2 sm:$0xff]
        %s1385 = scalar_lea.vmem [#allocation2], 164
        %v1386 = vld [vmem:[%s1385] ss:$2 sm:$0xff]
        %s1387 = scalar_lea.vmem [#allocation2], 180
        %v1388 = vld [vmem:[%s1387] ss:$2 sm:$0xff]
        %s1389 = scalar_lea.vmem [#allocation2], 196
        %v1390 = vld [vmem:[%s1389] ss:$2 sm:$0xff]
        %s1391 = scalar_lea.vmem [#allocation2], 212
        %v1392 = vld [vmem:[%s1391] ss:$2 sm:$0xff]
        %s1393 = scalar_lea.vmem [#allocation2], 228
        %v1394 = vld [vmem:[%s1393] ss:$2 sm:$0xff]
        %s1395 = scalar_lea.vmem [#allocation2], 244
        %v1396 = vld [vmem:[%s1395] ss:$2 sm:$0xff]
        %s1397 = scalar_lea.vmem [#allocation2], 260
        %v1398 = vld [vmem:[%s1397] ss:$2 sm:$0xff]
        %s1399 = scalar_lea.vmem [#allocation2], 276
        %v1400 = vld [vmem:[%s1399] ss:$2 sm:$0xff]
        %s1401 = scalar_lea.vmem [#allocation2], 292
        %v1402 = vld [vmem:[%s1401] ss:$2 sm:$0xff]
        %s1403 = scalar_lea.vmem [#allocation2], 308
        %v1404 = vld [vmem:[%s1403] ss:$2 sm:$0xff]
        %v1405 = vpack.c.bf16 %v1368, %v1366
        %v1406 = vpack.c.bf16 %v1372, %v1370
        %v1407 = vpack.c.bf16 %v1376, %v1374
        %v1408 = vpack.c.bf16 %v1380, %v1378
        %v1409 = vpack.c.bf16 %v1384, %v1382
        %v1410 = vpack.c.bf16 %v1388, %v1386
        %v1411 = vpack.c.bf16 %v1392, %v1390
        %v1412 = vpack.c.bf16 %v1396, %v1394
        %v1413 = vpack.c.bf16 %v1400, %v1398
        %v1414 = vpack.c.bf16 %v1404, %v1402
        %v1415 = vld [vmem:[%s1 + $0x80] sm:$0xf]
        %v1416 = vld [vmem:[%s1 + $0x84] sm:$0xf]
        %v1417 = vld [vmem:[%s1 + $0x88] sm:$0xf]
        %v1418 = vld [vmem:[%s1 + $0x8c] sm:$0xf]
        %v1419 = vld [vmem:[%s1 + $0x90] sm:$0xf]
        %v1420 = vld [vmem:[%s1 + $0x94] sm:$0xf]
        %v1421 = vld [vmem:[%s1 + $0x98] sm:$0xf]
        %v1422 = vld [vmem:[%s1 + $0x9c] sm:$0xf]
        %v1431 = vunpack.c.l.b16 %v1415
        %v1432 = vunpack.c.l.b16 %v1416
        %v1433 = vunpack.c.l.b16 %v1417
        %v1434 = vunpack.c.l.b16 %v1418
        %v1435 = vunpack.c.l.b16 %v1419
        %v1436 = vunpack.c.l.b16 %v1420
        %v1437 = vunpack.c.l.b16 %v1421
        %v1438 = vunpack.c.l.b16 %v1422
        %v1439 = vpack.c.b16 %v1432, %v1431
        %v1440 = vpack.c.b16 %v1434, %v1433
        %v1441 = vpack.c.b16 %v1436, %v1435
        %v1442 = vpack.c.b16 %v1438, %v1437
        %v1448 = vsel %vm600, %v1405, 0
        %v1451 = vsel %vm600, %v1406, 0
        %v1454 = vsel %vm600, %v1407, 0
        %v1457 = vsel %vm600, %v1408, 0
        %v1460 = vsel %vm600, %v1409, 0
        %v1463 = vsel %vm600, %v1410, 0
        %v1466 = vsel %vm600, %v1411, 0
        %v1469 = vsel %vm600, %v1412, 0
        %v1472 = vsel %vm600, %v1413, 0
        %v1475 = vsel %vm600, %v1414, 0
        %1477 = vmatpush.bf16.msra.mxu0 0
        %1478 = vmatpush.bf16.msra.mxu0 0
        %1479 = vmatpush.bf16.msra.mxu0 0
        %1480 = vmatpush.bf16.msra.mxu0 0
        %1481 = vmatpush.bf16.msra.mxu0 %v1442
        %1482 = vmatpush.bf16.msra.mxu0 %v1441
        %1483 = vmatpush.bf16.msra.mxu0 %v1440
        %1484 = vmatpush.bf16.msra.mxu0 %v1439
        %1485 = vmatmul.bf16.gmra.mxu0 %v1448
        %v1486 = vpop.f32.mrf.mxu0
        %v1487 = vadd.f32 0.0, %v1486
        %v1488 = vpop.f32.mrf.mxu0
        %v1489 = vadd.f32 0.0, %v1488
        %1490 = vmatmul.bf16.gmra.mxu0 %v1451
        %v1491 = vpop.f32.mrf.mxu0
        %v1492 = vadd.f32 0.0, %v1491
        %v1493 = vpop.f32.mrf.mxu0
        %v1494 = vadd.f32 0.0, %v1493
        %1495 = vmatmul.bf16.gmra.mxu0 %v1454
        %v1496 = vpop.f32.mrf.mxu0
        %v1497 = vadd.f32 0.0, %v1496
        %v1498 = vpop.f32.mrf.mxu0
        %v1499 = vadd.f32 0.0, %v1498
        %1500 = vmatmul.bf16.gmra.mxu0 %v1457
        %v1501 = vpop.f32.mrf.mxu0
        %v1502 = vadd.f32 0.0, %v1501
        %v1503 = vpop.f32.mrf.mxu0
        %v1504 = vadd.f32 0.0, %v1503
        %1505 = vmatmul.bf16.gmra.mxu0 %v1460
        %v1506 = vpop.f32.mrf.mxu0
        %v1507 = vadd.f32 0.0, %v1506
        %v1508 = vpop.f32.mrf.mxu0
        %v1509 = vadd.f32 0.0, %v1508
        %1510 = vmatmul.bf16.gmra.mxu0 %v1463
        %v1511 = vpop.f32.mrf.mxu0
        %v1512 = vadd.f32 0.0, %v1511
        %v1513 = vpop.f32.mrf.mxu0
        %v1514 = vadd.f32 0.0, %v1513
        %1515 = vmatmul.bf16.gmra.mxu0 %v1466
        %v1516 = vpop.f32.mrf.mxu0
        %v1517 = vadd.f32 0.0, %v1516
        %v1518 = vpop.f32.mrf.mxu0
        %v1519 = vadd.f32 0.0, %v1518
        %1520 = vmatmul.bf16.gmra.mxu0 %v1469
        %v1521 = vpop.f32.mrf.mxu0
        %v1522 = vadd.f32 0.0, %v1521
        %v1523 = vpop.f32.mrf.mxu0
        %v1524 = vadd.f32 0.0, %v1523
        %1525 = vmatmul.bf16.gmra.mxu0 %v1472
        %v1526 = vpop.f32.mrf.mxu0
        %v1527 = vadd.f32 0.0, %v1526
        %v1528 = vpop.f32.mrf.mxu0
        %v1529 = vadd.f32 0.0, %v1528
        %1530 = vmatmul.bf16.gmra.mxu0 %v1475
        %v1531 = vpop.f32.mrf.mxu0
        %v1532 = vadd.f32 0.0, %v1531
        %v1533 = vpop.f32.mrf.mxu0
        %v1534 = vadd.f32 0.0, %v1533
        %1535 = vdwg.mxu0
        %v1536 = vadd.f32 %v1345, %v1487
        %v1537 = vadd.f32 %v1346, %v1489
        %v1538 = vadd.f32 %v1347, %v1492
        %v1539 = vadd.f32 %v1348, %v1494
        %v1540 = vadd.f32 %v1349, %v1497
        %v1541 = vadd.f32 %v1350, %v1499
        %v1542 = vadd.f32 %v1351, %v1502
        %v1543 = vadd.f32 %v1352, %v1504
        %v1544 = vadd.f32 %v1353, %v1507
        %v1545 = vadd.f32 %v1354, %v1509
        %v1546 = vadd.f32 %v1355, %v1512
        %v1547 = vadd.f32 %v1356, %v1514
        %v1548 = vadd.f32 %v1357, %v1517
        %v1549 = vadd.f32 %v1358, %v1519
        %v1550 = vadd.f32 %v1359, %v1522
        %v1551 = vadd.f32 %v1360, %v1524
        %v1552 = vadd.f32 %v1361, %v1527
        %v1553 = vadd.f32 %v1362, %v1529
        %v1554 = vadd.f32 %v1363, %v1532
        %v1555 = vadd.f32 %v1364, %v1534
        %v1556 = vld [vmem:[%s2] sm:$0x1]
        %v1558 = vperm.slane %v1556, 0
        %v1560 = vadd.f32 %v1536, %v1558
        %v1561 = vadd.f32 %v1537, %v1558
        %v1562 = vadd.f32 %v1538, %v1558
        %v1563 = vadd.f32 %v1539, %v1558
        %v1564 = vadd.f32 %v1540, %v1558
        %v1565 = vadd.f32 %v1541, %v1558
        %v1566 = vadd.f32 %v1542, %v1558
        %v1567 = vadd.f32 %v1543, %v1558
        %v1568 = vadd.f32 %v1544, %v1558
        %v1569 = vadd.f32 %v1545, %v1558
        %v1570 = vadd.f32 %v1546, %v1558
        %v1571 = vadd.f32 %v1547, %v1558
        %v1572 = vadd.f32 %v1548, %v1558
        %v1573 = vadd.f32 %v1549, %v1558
        %v1574 = vadd.f32 %v1550, %v1558
        %v1575 = vadd.f32 %v1551, %v1558
        %v1576 = vadd.f32 %v1552, %v1558
        %v1577 = vadd.f32 %v1553, %v1558
        %v1578 = vadd.f32 %v1554, %v1558
        %v1579 = vadd.f32 %v1555, %v1558
        %v1580 = vmax.f32 %v1560, 0.0
        %v1581 = vmax.f32 %v1561, 0.0
        %v1582 = vmax.f32 %v1562, 0.0
        %v1583 = vmax.f32 %v1563, 0.0
        %v1584 = vmax.f32 %v1564, 0.0
        %v1585 = vmax.f32 %v1565, 0.0
        %v1586 = vmax.f32 %v1566, 0.0
        %v1587 = vmax.f32 %v1567, 0.0
        %v1588 = vmax.f32 %v1568, 0.0
        %v1589 = vmax.f32 %v1569, 0.0
        %v1590 = vmax.f32 %v1570, 0.0
        %v1591 = vmax.f32 %v1571, 0.0
        %v1592 = vmax.f32 %v1572, 0.0
        %v1593 = vmax.f32 %v1573, 0.0
        %v1594 = vmax.f32 %v1574, 0.0
        %v1595 = vmax.f32 %v1575, 0.0
        %v1596 = vmax.f32 %v1576, 0.0
        %v1597 = vmax.f32 %v1577, 0.0
        %v1598 = vmax.f32 %v1578, 0.0
        %v1599 = vmax.f32 %v1579, 0.0
        %vm1600 = vcmask 254976
        %1601 = vst.msk [vmem:[#allocation3] sm:$0x3] %vm1600, 0.0
        %vm1602 = vcmask 261120
        %1603 = vst.msk [vmem:[#allocation3 + $0x2] sm:$0xff] %vm1602, %v1580
        %1604 = vst.msk [vmem:[#allocation3 + $0xa] sm:$0xff] %vm1602, %v1581
        %1605 = vst.msk [vmem:[#allocation3 + $0x12] sm:$0xff] %vm1602, %v1582
        %1606 = vst.msk [vmem:[#allocation3 + $0x1a] sm:$0xff] %vm1602, %v1583
        %1607 = vst.msk [vmem:[#allocation3 + $0x22] sm:$0xff] %vm1602, %v1584
        %1608 = vst.msk [vmem:[#allocation3 + $0x2a] sm:$0xff] %vm1602, %v1585
        %1609 = vst.msk [vmem:[#allocation3 + $0x32] sm:$0xff] %vm1602, %v1586
        %1610 = vst.msk [vmem:[#allocation3 + $0x3a] sm:$0xff] %vm1602, %v1587
        %1611 = vst.msk [vmem:[#allocation3 + $0x42] sm:$0xff] %vm1602, %v1588
        %1612 = vst.msk [vmem:[#allocation3 + $0x4a] sm:$0xff] %vm1602, %v1589
        %1613 = vst.msk [vmem:[#allocation3 + $0x52] sm:$0xff] %vm1602, %v1590
        %1614 = vst.msk [vmem:[#allocation3 + $0x5a] sm:$0xff] %vm1602, %v1591
        %1615 = vst.msk [vmem:[#allocation3 + $0x62] sm:$0xff] %vm1602, %v1592
        %1616 = vst.msk [vmem:[#allocation3 + $0x6a] sm:$0xff] %vm1602, %v1593
        %1617 = vst.msk [vmem:[#allocation3 + $0x72] sm:$0xff] %vm1602, %v1594
        %1618 = vst.msk [vmem:[#allocation3 + $0x7a] sm:$0xff] %vm1602, %v1595
        %1619 = vst.msk [vmem:[#allocation3 + $0x82] sm:$0xff] %vm1602, %v1596
        %1620 = vst.msk [vmem:[#allocation3 + $0x8a] sm:$0xff] %vm1602, %v1597
        %1621 = vst.msk [vmem:[#allocation3 + $0x92] sm:$0xff] %vm1602, %v1598
        %1622 = vst.msk [vmem:[#allocation3 + $0x9a] sm:$0xff] %vm1602, %v1599
        %1623 = vst.msk [vmem:[#allocation3 + $0xa2] sm:$0x3] %vm1600, 0.0
        %v1624 = vld [vmem:[#allocation3] ss:$2 sm:$0xff]
        %s1625 = scalar_lea.vmem [#allocation3], 16
        %v1626 = vld [vmem:[%s1625] ss:$2 sm:$0xff]
        %s1627 = scalar_lea.vmem [#allocation3], 32
        %v1628 = vld [vmem:[%s1627] ss:$2 sm:$0xff]
        %s1629 = scalar_lea.vmem [#allocation3], 48
        %v1630 = vld [vmem:[%s1629] ss:$2 sm:$0xff]
        %s1631 = scalar_lea.vmem [#allocation3], 64
        %v1632 = vld [vmem:[%s1631] ss:$2 sm:$0xff]
        %s1633 = scalar_lea.vmem [#allocation3], 80
        %v1634 = vld [vmem:[%s1633] ss:$2 sm:$0xff]
        %s1635 = scalar_lea.vmem [#allocation3], 96
        %v1636 = vld [vmem:[%s1635] ss:$2 sm:$0xff]
        %s1637 = scalar_lea.vmem [#allocation3], 112
        %v1638 = vld [vmem:[%s1637] ss:$2 sm:$0xff]
        %s1639 = scalar_lea.vmem [#allocation3], 128
        %v1640 = vld [vmem:[%s1639] ss:$2 sm:$0xff]
        %s1641 = scalar_lea.vmem [#allocation3], 144
        %v1642 = vld [vmem:[%s1641] ss:$2 sm:$0xff]
        %v1643 = vpack.c.bf16 %v1626, %v1624
        %v1644 = vpack.c.bf16 %v1630, %v1628
        %v1645 = vpack.c.bf16 %v1634, %v1632
        %v1646 = vpack.c.bf16 %v1638, %v1636
        %v1647 = vpack.c.bf16 %v1642, %v1640
        %v1648 = vld [vmem:[%s3] sm:$0xf]
        %v1649 = vld [vmem:[%s3 + $0x4] sm:$0xf]
        %v1650 = vld [vmem:[%s3 + $0x8] sm:$0xf]
        %v1651 = vld [vmem:[%s3 + $0xc] sm:$0xf]
        %s1652 = scalar_lea.vmem [#allocation3], 1
        %v1653 = vld [vmem:[%s1652] ss:$2 sm:$0xff]
        %s1654 = scalar_lea.vmem [#allocation3], 17
        %v1655 = vld [vmem:[%s1654] ss:$2 sm:$0xff]
        %s1656 = scalar_lea.vmem [#allocation3], 33
        %v1657 = vld [vmem:[%s1656] ss:$2 sm:$0xff]
        %s1658 = scalar_lea.vmem [#allocation3], 49
        %v1659 = vld [vmem:[%s1658] ss:$2 sm:$0xff]
        %s1660 = scalar_lea.vmem [#allocation3], 65
        %v1661 = vld [vmem:[%s1660] ss:$2 sm:$0xff]
        %s1662 = scalar_lea.vmem [#allocation3], 81
        %v1663 = vld [vmem:[%s1662] ss:$2 sm:$0xff]
        %s1664 = scalar_lea.vmem [#allocation3], 97
        %v1665 = vld [vmem:[%s1664] ss:$2 sm:$0xff]
        %s1666 = scalar_lea.vmem [#allocation3], 113
        %v1667 = vld [vmem:[%s1666] ss:$2 sm:$0xff]
        %s1668 = scalar_lea.vmem [#allocation3], 129
        %v1669 = vld [vmem:[%s1668] ss:$2 sm:$0xff]
        %s1670 = scalar_lea.vmem [#allocation3], 145
        %v1671 = vld [vmem:[%s1670] ss:$2 sm:$0xff]
        %v1672 = vpack.c.bf16 %v1655, %v1653
        %v1673 = vpack.c.bf16 %v1659, %v1657
        %v1674 = vpack.c.bf16 %v1663, %v1661
        %v1675 = vpack.c.bf16 %v1667, %v1665
        %v1676 = vpack.c.bf16 %v1671, %v1669
        %v1677 = vld [vmem:[%s3 + $0x10] sm:$0xf]
        %v1678 = vld [vmem:[%s3 + $0x14] sm:$0xf]
        %v1679 = vld [vmem:[%s3 + $0x18] sm:$0xf]
        %v1680 = vld [vmem:[%s3 + $0x1c] sm:$0xf]
        %v1685 = vunpack.c.l.b16 %v1677
        %v1686 = vunpack.c.l.b16 %v1678
        %v1687 = vunpack.c.l.b16 %v1679
        %v1688 = vunpack.c.l.b16 %v1680
        %v1689 = vpack.c.b16 %v1686, %v1685
        %v1690 = vpack.c.b16 %v1688, %v1687
        %v1694 = vsel %vm1602, %v1672, 0
        %v1697 = vsel %vm1602, %v1673, 0
        %v1700 = vsel %vm1602, %v1674, 0
        %v1703 = vsel %vm1602, %v1675, 0
        %v1706 = vsel %vm1602, %v1676, 0
        %1708 = vmatpush.bf16.msra.mxu0 0
        %1709 = vmatpush.bf16.msra.mxu0 0
        %1710 = vmatpush.bf16.msra.mxu0 0
        %1711 = vmatpush.bf16.msra.mxu0 0
        %1712 = vmatpush.bf16.msra.mxu0 0
        %1713 = vmatpush.bf16.msra.mxu0 0
        %1714 = vmatpush.bf16.msra.mxu0 %v1690
        %1715 = vmatpush.bf16.msra.mxu0 %v1689
        %1716 = vmatmul.bf16.gmra.mxu0 %v1694
        %v1717 = vpop.f32.mrf.mxu0
        %v1718 = vadd.f32 0.0, %v1717
        %v1719 = vpop.f32.mrf.mxu0
        %v1720 = vadd.f32 0.0, %v1719
        %1721 = vmatmul.bf16.gmra.mxu0 %v1697
        %v1722 = vpop.f32.mrf.mxu0
        %v1723 = vadd.f32 0.0, %v1722
        %v1724 = vpop.f32.mrf.mxu0
        %v1725 = vadd.f32 0.0, %v1724
        %1726 = vmatmul.bf16.gmra.mxu0 %v1700
        %v1727 = vpop.f32.mrf.mxu0
        %v1728 = vadd.f32 0.0, %v1727
        %v1729 = vpop.f32.mrf.mxu0
        %v1730 = vadd.f32 0.0, %v1729
        %1731 = vmatmul.bf16.gmra.mxu0 %v1703
        %v1732 = vpop.f32.mrf.mxu0
        %v1733 = vadd.f32 0.0, %v1732
        %v1734 = vpop.f32.mrf.mxu0
        %v1735 = vadd.f32 0.0, %v1734
        %1736 = vmatmul.bf16.gmra.mxu0 %v1706
        %v1737 = vpop.f32.mrf.mxu0
        %v1738 = vadd.f32 0.0, %v1737
        %v1739 = vpop.f32.mrf.mxu0
        %v1740 = vadd.f32 0.0, %v1739
        %1741 = vdwg.mxu0
        %v1746 = vunpack.c.l.b16 %v1648
        %v1747 = vunpack.c.l.b16 %v1649
        %v1748 = vunpack.c.l.b16 %v1650
        %v1749 = vunpack.c.l.b16 %v1651
        %v1750 = vpack.c.b16 %v1747, %v1746
        %v1751 = vpack.c.b16 %v1749, %v1748
        %v1755 = vsel %vm1602, %v1643, 0
        %v1758 = vsel %vm1602, %v1644, 0
        %v1761 = vsel %vm1602, %v1645, 0
        %v1764 = vsel %vm1602, %v1646, 0
        %v1767 = vsel %vm1602, %v1647, 0
        %1769 = vmatpush.bf16.msra.mxu0 0
        %1770 = vmatpush.bf16.msra.mxu0 0
        %1771 = vmatpush.bf16.msra.mxu0 0
        %1772 = vmatpush.bf16.msra.mxu0 0
        %1773 = vmatpush.bf16.msra.mxu0 0
        %1774 = vmatpush.bf16.msra.mxu0 0
        %1775 = vmatpush.bf16.msra.mxu0 %v1751
        %1776 = vmatpush.bf16.msra.mxu0 %v1750
        %1777 = vmatmul.bf16.gmra.mxu0 %v1755
        %v1778 = vpop.f32.mrf.mxu0
        %v1779 = vadd.f32 %v1718, %v1778
        %v1780 = vpop.f32.mrf.mxu0
        %v1781 = vadd.f32 %v1720, %v1780
        %1782 = vmatmul.bf16.gmra.mxu0 %v1758
        %v1783 = vpop.f32.mrf.mxu0
        %v1784 = vadd.f32 %v1723, %v1783
        %v1785 = vpop.f32.mrf.mxu0
        %v1786 = vadd.f32 %v1725, %v1785
        %1787 = vmatmul.bf16.gmra.mxu0 %v1761
        %v1788 = vpop.f32.mrf.mxu0
        %v1789 = vadd.f32 %v1728, %v1788
        %v1790 = vpop.f32.mrf.mxu0
        %v1791 = vadd.f32 %v1730, %v1790
        %1792 = vmatmul.bf16.gmra.mxu0 %v1764
        %v1793 = vpop.f32.mrf.mxu0
        %v1794 = vadd.f32 %v1733, %v1793
        %v1795 = vpop.f32.mrf.mxu0
        %v1796 = vadd.f32 %v1735, %v1795
        %1797 = vmatmul.bf16.gmra.mxu0 %v1767
        %v1798 = vpop.f32.mrf.mxu0
        %v1799 = vadd.f32 %v1738, %v1798
        %v1800 = vpop.f32.mrf.mxu0
        %v1801 = vadd.f32 %v1740, %v1800
        %1802 = vdwg.mxu0
        %s1803 = scalar_lea.vmem [#allocation3], 2
        %v1804 = vld [vmem:[%s1803] ss:$2 sm:$0xff]
        %s1805 = scalar_lea.vmem [#allocation3], 18
        %v1806 = vld [vmem:[%s1805] ss:$2 sm:$0xff]
        %s1807 = scalar_lea.vmem [#allocation3], 34
        %v1808 = vld [vmem:[%s1807] ss:$2 sm:$0xff]
        %s1809 = scalar_lea.vmem [#allocation3], 50
        %v1810 = vld [vmem:[%s1809] ss:$2 sm:$0xff]
        %s1811 = scalar_lea.vmem [#allocation3], 66
        %v1812 = vld [vmem:[%s1811] ss:$2 sm:$0xff]
        %s1813 = scalar_lea.vmem [#allocation3], 82
        %v1814 = vld [vmem:[%s1813] ss:$2 sm:$0xff]
        %s1815 = scalar_lea.vmem [#allocation3], 98
        %v1816 = vld [vmem:[%s1815] ss:$2 sm:$0xff]
        %s1817 = scalar_lea.vmem [#allocation3], 114
        %v1818 = vld [vmem:[%s1817] ss:$2 sm:$0xff]
        %s1819 = scalar_lea.vmem [#allocation3], 130
        %v1820 = vld [vmem:[%s1819] ss:$2 sm:$0xff]
        %s1821 = scalar_lea.vmem [#allocation3], 146
        %v1822 = vld [vmem:[%s1821] ss:$2 sm:$0xff]
        %v1823 = vpack.c.bf16 %v1806, %v1804
        %v1824 = vpack.c.bf16 %v1810, %v1808
        %v1825 = vpack.c.bf16 %v1814, %v1812
        %v1826 = vpack.c.bf16 %v1818, %v1816
        %v1827 = vpack.c.bf16 %v1822, %v1820
        %v1828 = vld [vmem:[%s3 + $0x20] sm:$0xf]
        %v1829 = vld [vmem:[%s3 + $0x24] sm:$0xf]
        %v1830 = vld [vmem:[%s3 + $0x28] sm:$0xf]
        %v1831 = vld [vmem:[%s3 + $0x2c] sm:$0xf]
        %v1836 = vunpack.c.l.b16 %v1828
        %v1837 = vunpack.c.l.b16 %v1829
        %v1838 = vunpack.c.l.b16 %v1830
        %v1839 = vunpack.c.l.b16 %v1831
        %v1840 = vpack.c.b16 %v1837, %v1836
        %v1841 = vpack.c.b16 %v1839, %v1838
        %v1845 = vsel %vm1602, %v1823, 0
        %v1848 = vsel %vm1602, %v1824, 0
        %v1851 = vsel %vm1602, %v1825, 0
        %v1854 = vsel %vm1602, %v1826, 0
        %v1857 = vsel %vm1602, %v1827, 0
        %1859 = vmatpush.bf16.msra.mxu0 0
        %1860 = vmatpush.bf16.msra.mxu0 0
        %1861 = vmatpush.bf16.msra.mxu0 0
        %1862 = vmatpush.bf16.msra.mxu0 0
        %1863 = vmatpush.bf16.msra.mxu0 0
        %1864 = vmatpush.bf16.msra.mxu0 0
        %1865 = vmatpush.bf16.msra.mxu0 %v1841
        %1866 = vmatpush.bf16.msra.mxu0 %v1840
        %1867 = vmatmul.bf16.gmra.mxu0 %v1845
        %v1868 = vpop.f32.mrf.mxu0
        %v1869 = vadd.f32 0.0, %v1868
        %v1870 = vpop.f32.mrf.mxu0
        %v1871 = vadd.f32 0.0, %v1870
        %1872 = vmatmul.bf16.gmra.mxu0 %v1848
        %v1873 = vpop.f32.mrf.mxu0
        %v1874 = vadd.f32 0.0, %v1873
        %v1875 = vpop.f32.mrf.mxu0
        %v1876 = vadd.f32 0.0, %v1875
        %1877 = vmatmul.bf16.gmra.mxu0 %v1851
        %v1878 = vpop.f32.mrf.mxu0
        %v1879 = vadd.f32 0.0, %v1878
        %v1880 = vpop.f32.mrf.mxu0
        %v1881 = vadd.f32 0.0, %v1880
        %1882 = vmatmul.bf16.gmra.mxu0 %v1854
        %v1883 = vpop.f32.mrf.mxu0
        %v1884 = vadd.f32 0.0, %v1883
        %v1885 = vpop.f32.mrf.mxu0
        %v1886 = vadd.f32 0.0, %v1885
        %1887 = vmatmul.bf16.gmra.mxu0 %v1857
        %v1888 = vpop.f32.mrf.mxu0
        %v1889 = vadd.f32 0.0, %v1888
        %v1890 = vpop.f32.mrf.mxu0
        %v1891 = vadd.f32 0.0, %v1890
        %1892 = vdwg.mxu0
        %v1893 = vadd.f32 %v1779, %v1869
        %v1894 = vadd.f32 %v1781, %v1871
        %v1895 = vadd.f32 %v1784, %v1874
        %v1896 = vadd.f32 %v1786, %v1876
        %v1897 = vadd.f32 %v1789, %v1879
        %v1898 = vadd.f32 %v1791, %v1881
        %v1899 = vadd.f32 %v1794, %v1884
        %v1900 = vadd.f32 %v1796, %v1886
        %v1901 = vadd.f32 %v1799, %v1889
        %v1902 = vadd.f32 %v1801, %v1891
        %s1903 = scalar_lea.vmem [#allocation3], 3
        %v1904 = vld [vmem:[%s1903] ss:$2 sm:$0xff]
        %s1905 = scalar_lea.vmem [#allocation3], 19
        %v1906 = vld [vmem:[%s1905] ss:$2 sm:$0xff]
        %s1907 = scalar_lea.vmem [#allocation3], 35
        %v1908 = vld [vmem:[%s1907] ss:$2 sm:$0xff]
        %s1909 = scalar_lea.vmem [#allocation3], 51
        %v1910 = vld [vmem:[%s1909] ss:$2 sm:$0xff]
        %s1911 = scalar_lea.vmem [#allocation3], 67
        %v1912 = vld [vmem:[%s1911] ss:$2 sm:$0xff]
        %s1913 = scalar_lea.vmem [#allocation3], 83
        %v1914 = vld [vmem:[%s1913] ss:$2 sm:$0xff]
        %s1915 = scalar_lea.vmem [#allocation3], 99
        %v1916 = vld [vmem:[%s1915] ss:$2 sm:$0xff]
        %s1917 = scalar_lea.vmem [#allocation3], 115
        %v1918 = vld [vmem:[%s1917] ss:$2 sm:$0xff]
        %s1919 = scalar_lea.vmem [#allocation3], 131
        %v1920 = vld [vmem:[%s1919] ss:$2 sm:$0xff]
        %s1921 = scalar_lea.vmem [#allocation3], 147
        %v1922 = vld [vmem:[%s1921] ss:$2 sm:$0xff]
        %v1923 = vpack.c.bf16 %v1906, %v1904
        %v1924 = vpack.c.bf16 %v1910, %v1908
        %v1925 = vpack.c.bf16 %v1914, %v1912
        %v1926 = vpack.c.bf16 %v1918, %v1916
        %v1927 = vpack.c.bf16 %v1922, %v1920
        %v1928 = vld [vmem:[%s3 + $0x30] sm:$0xf]
        %v1929 = vld [vmem:[%s3 + $0x34] sm:$0xf]
        %v1930 = vld [vmem:[%s3 + $0x38] sm:$0xf]
        %v1931 = vld [vmem:[%s3 + $0x3c] sm:$0xf]
        %v1936 = vunpack.c.l.b16 %v1928
        %v1937 = vunpack.c.l.b16 %v1929
        %v1938 = vunpack.c.l.b16 %v1930
        %v1939 = vunpack.c.l.b16 %v1931
        %v1940 = vpack.c.b16 %v1937, %v1936
        %v1941 = vpack.c.b16 %v1939, %v1938
        %v1945 = vsel %vm1602, %v1923, 0
        %v1948 = vsel %vm1602, %v1924, 0
        %v1951 = vsel %vm1602, %v1925, 0
        %v1954 = vsel %vm1602, %v1926, 0
        %v1957 = vsel %vm1602, %v1927, 0
        %1959 = vmatpush.bf16.msra.mxu0 0
        %1960 = vmatpush.bf16.msra.mxu0 0
        %1961 = vmatpush.bf16.msra.mxu0 0
        %1962 = vmatpush.bf16.msra.mxu0 0
        %1963 = vmatpush.bf16.msra.mxu0 0
        %1964 = vmatpush.bf16.msra.mxu0 0
        %1965 = vmatpush.bf16.msra.mxu0 %v1941
        %1966 = vmatpush.bf16.msra.mxu0 %v1940
        %1967 = vmatmul.bf16.gmra.mxu0 %v1945
        %v1968 = vpop.f32.mrf.mxu0
        %v1969 = vadd.f32 0.0, %v1968
        %v1970 = vpop.f32.mrf.mxu0
        %v1971 = vadd.f32 0.0, %v1970
        %1972 = vmatmul.bf16.gmra.mxu0 %v1948
        %v1973 = vpop.f32.mrf.mxu0
        %v1974 = vadd.f32 0.0, %v1973
        %v1975 = vpop.f32.mrf.mxu0
        %v1976 = vadd.f32 0.0, %v1975
        %1977 = vmatmul.bf16.gmra.mxu0 %v1951
        %v1978 = vpop.f32.mrf.mxu0
        %v1979 = vadd.f32 0.0, %v1978
        %v1980 = vpop.f32.mrf.mxu0
        %v1981 = vadd.f32 0.0, %v1980
        %1982 = vmatmul.bf16.gmra.mxu0 %v1954
        %v1983 = vpop.f32.mrf.mxu0
        %v1984 = vadd.f32 0.0, %v1983
        %v1985 = vpop.f32.mrf.mxu0
        %v1986 = vadd.f32 0.0, %v1985
        %1987 = vmatmul.bf16.gmra.mxu0 %v1957
        %v1988 = vpop.f32.mrf.mxu0
        %v1989 = vadd.f32 0.0, %v1988
        %v1990 = vpop.f32.mrf.mxu0
        %v1991 = vadd.f32 0.0, %v1990
        %1992 = vdwg.mxu0
        %v1993 = vadd.f32 %v1893, %v1969
        %v1994 = vadd.f32 %v1894, %v1971
        %v1995 = vadd.f32 %v1895, %v1974
        %v1996 = vadd.f32 %v1896, %v1976
        %v1997 = vadd.f32 %v1897, %v1979
        %v1998 = vadd.f32 %v1898, %v1981
        %v1999 = vadd.f32 %v1899, %v1984
        %v2000 = vadd.f32 %v1900, %v1986
        %v2001 = vadd.f32 %v1901, %v1989
        %v2002 = vadd.f32 %v1902, %v1991
        %s2003 = scalar_lea.vmem [#allocation3], 4
        %v2004 = vld [vmem:[%s2003] ss:$2 sm:$0xff]
        %s2005 = scalar_lea.vmem [#allocation3], 20
        %v2006 = vld [vmem:[%s2005] ss:$2 sm:$0xff]
        %s2007 = scalar_lea.vmem [#allocation3], 36
        %v2008 = vld [vmem:[%s2007] ss:$2 sm:$0xff]
        %s2009 = scalar_lea.vmem [#allocation3], 52
        %v2010 = vld [vmem:[%s2009] ss:$2 sm:$0xff]
        %s2011 = scalar_lea.vmem [#allocation3], 68
        %v2012 = vld [vmem:[%s2011] ss:$2 sm:$0xff]
        %s2013 = scalar_lea.vmem [#allocation3], 84
        %v2014 = vld [vmem:[%s2013] ss:$2 sm:$0xff]
        %s2015 = scalar_lea.vmem [#allocation3], 100
        %v2016 = vld [vmem:[%s2015] ss:$2 sm:$0xff]
        %s2017 = scalar_lea.vmem [#allocation3], 116
        %v2018 = vld [vmem:[%s2017] ss:$2 sm:$0xff]
        %s2019 = scalar_lea.vmem [#allocation3], 132
        %v2020 = vld [vmem:[%s2019] ss:$2 sm:$0xff]
        %s2021 = scalar_lea.vmem [#allocation3], 148
        %v2022 = vld [vmem:[%s2021] ss:$2 sm:$0xff]
        %v2023 = vpack.c.bf16 %v2006, %v2004
        %v2024 = vpack.c.bf16 %v2010, %v2008
        %v2025 = vpack.c.bf16 %v2014, %v2012
        %v2026 = vpack.c.bf16 %v2018, %v2016
        %v2027 = vpack.c.bf16 %v2022, %v2020
        %v2028 = vld [vmem:[%s3 + $0x40] sm:$0xf]
        %v2029 = vld [vmem:[%s3 + $0x44] sm:$0xf]
        %v2030 = vld [vmem:[%s3 + $0x48] sm:$0xf]
        %v2031 = vld [vmem:[%s3 + $0x4c] sm:$0xf]
        %v2036 = vunpack.c.l.b16 %v2028
        %v2037 = vunpack.c.l.b16 %v2029
        %v2038 = vunpack.c.l.b16 %v2030
        %v2039 = vunpack.c.l.b16 %v2031
        %v2040 = vpack.c.b16 %v2037, %v2036
        %v2041 = vpack.c.b16 %v2039, %v2038
        %v2045 = vsel %vm1602, %v2023, 0
        %v2048 = vsel %vm1602, %v2024, 0
        %v2051 = vsel %vm1602, %v2025, 0
        %v2054 = vsel %vm1602, %v2026, 0
        %v2057 = vsel %vm1602, %v2027, 0
        %2059 = vmatpush.bf16.msra.mxu0 0
        %2060 = vmatpush.bf16.msra.mxu0 0
        %2061 = vmatpush.bf16.msra.mxu0 0
        %2062 = vmatpush.bf16.msra.mxu0 0
        %2063 = vmatpush.bf16.msra.mxu0 0
        %2064 = vmatpush.bf16.msra.mxu0 0
        %2065 = vmatpush.bf16.msra.mxu0 %v2041
        %2066 = vmatpush.bf16.msra.mxu0 %v2040
        %2067 = vmatmul.bf16.gmra.mxu0 %v2045
        %v2068 = vpop.f32.mrf.mxu0
        %v2069 = vadd.f32 0.0, %v2068
        %v2070 = vpop.f32.mrf.mxu0
        %v2071 = vadd.f32 0.0, %v2070
        %2072 = vmatmul.bf16.gmra.mxu0 %v2048
        %v2073 = vpop.f32.mrf.mxu0
        %v2074 = vadd.f32 0.0, %v2073
        %v2075 = vpop.f32.mrf.mxu0
        %v2076 = vadd.f32 0.0, %v2075
        %2077 = vmatmul.bf16.gmra.mxu0 %v2051
        %v2078 = vpop.f32.mrf.mxu0
        %v2079 = vadd.f32 0.0, %v2078
        %v2080 = vpop.f32.mrf.mxu0
        %v2081 = vadd.f32 0.0, %v2080
        %2082 = vmatmul.bf16.gmra.mxu0 %v2054
        %v2083 = vpop.f32.mrf.mxu0
        %v2084 = vadd.f32 0.0, %v2083
        %v2085 = vpop.f32.mrf.mxu0
        %v2086 = vadd.f32 0.0, %v2085
        %2087 = vmatmul.bf16.gmra.mxu0 %v2057
        %v2088 = vpop.f32.mrf.mxu0
        %v2089 = vadd.f32 0.0, %v2088
        %v2090 = vpop.f32.mrf.mxu0
        %v2091 = vadd.f32 0.0, %v2090
        %2092 = vdwg.mxu0
        %v2093 = vadd.f32 %v1993, %v2069
        %v2094 = vadd.f32 %v1994, %v2071
        %v2095 = vadd.f32 %v1995, %v2074
        %v2096 = vadd.f32 %v1996, %v2076
        %v2097 = vadd.f32 %v1997, %v2079
        %v2098 = vadd.f32 %v1998, %v2081
        %v2099 = vadd.f32 %v1999, %v2084
        %v2100 = vadd.f32 %v2000, %v2086
        %v2101 = vadd.f32 %v2001, %v2089
        %v2102 = vadd.f32 %v2002, %v2091
        %v2103 = vld [vmem:[%s4] sm:$0x1]
        %v2105 = vperm.slane %v2103, 0
        %v2107 = vadd.f32 %v2093, %v2105
        %v2108 = vadd.f32 %v2094, %v2105
        %v2109 = vadd.f32 %v2095, %v2105
        %v2110 = vadd.f32 %v2096, %v2105
        %v2111 = vadd.f32 %v2097, %v2105
        %v2112 = vadd.f32 %v2098, %v2105
        %v2113 = vadd.f32 %v2099, %v2105
        %v2114 = vadd.f32 %v2100, %v2105
        %v2115 = vadd.f32 %v2101, %v2105
        %v2116 = vadd.f32 %v2102, %v2105
        %v2117 = vmax.f32 %v2107, 0.0
        %v2118 = vmax.f32 %v2108, 0.0
        %v2119 = vmax.f32 %v2109, 0.0
        %v2120 = vmax.f32 %v2110, 0.0
        %v2121 = vmax.f32 %v2111, 0.0
        %v2122 = vmax.f32 %v2112, 0.0
        %v2123 = vmax.f32 %v2113, 0.0
        %v2124 = vmax.f32 %v2114, 0.0
        %v2125 = vmax.f32 %v2115, 0.0
        %v2126 = vmax.f32 %v2116, 0.0
        %vm2127 = vcmask 123904
        %2128 = vst.msk [vmem:[#allocation4] sm:$0x3] %vm2127, 0.0
        %vm2129 = vcmask 130048
        %2130 = vst.msk [vmem:[#allocation4 + $0x2] sm:$0xff] %vm2129, %v2117
        %2131 = vst.msk [vmem:[#allocation4 + $0xa] sm:$0xff] %vm2129, %v2118
        %2132 = vst.msk [vmem:[#allocation4 + $0x12] sm:$0xff] %vm2129, %v2119
        %2133 = vst.msk [vmem:[#allocation4 + $0x1a] sm:$0xff] %vm2129, %v2120
        %2134 = vst.msk [vmem:[#allocation4 + $0x22] sm:$0xff] %vm2129, %v2121
        %2135 = vst.msk [vmem:[#allocation4 + $0x2a] sm:$0xff] %vm2129, %v2122
        %2136 = vst.msk [vmem:[#allocation4 + $0x32] sm:$0xff] %vm2129, %v2123
        %2137 = vst.msk [vmem:[#allocation4 + $0x3a] sm:$0xff] %vm2129, %v2124
        %2138 = vst.msk [vmem:[#allocation4 + $0x42] sm:$0xff] %vm2129, %v2125
        %2139 = vst.msk [vmem:[#allocation4 + $0x4a] sm:$0xff] %vm2129, %v2126
        %2140 = vst.msk [vmem:[#allocation4 + $0x52] sm:$0x3] %vm2127, 0.0
        %v2141 = vld [vmem:[#allocation4] ss:$2 sm:$0xff]
        %s2142 = scalar_lea.vmem [#allocation4], 16
        %v2143 = vld [vmem:[%s2142] ss:$2 sm:$0xff]
        %s2144 = scalar_lea.vmem [#allocation4], 32
        %v2145 = vld [vmem:[%s2144] ss:$2 sm:$0xff]
        %s2146 = scalar_lea.vmem [#allocation4], 48
        %v2147 = vld [vmem:[%s2146] ss:$2 sm:$0xff]
        %s2148 = scalar_lea.vmem [#allocation4], 64
        %v2149 = vld [vmem:[%s2148] ss:$2 sm:$0xff]
        %v2150 = vpack.c.bf16 %v2143, %v2141
        %v2151 = vpack.c.bf16 %v2147, %v2145
        %v2152 = vpack.c.bf16 %v2149, %v2149
        %v2153 = vld [vmem:[%s5] sm:$0xf]
        %v2154 = vld [vmem:[%s5 + $0x4] sm:$0xf]
        %s2155 = scalar_lea.vmem [#allocation4], 1
        %v2156 = vld [vmem:[%s2155] ss:$2 sm:$0xff]
        %s2157 = scalar_lea.vmem [#allocation4], 17
        %v2158 = vld [vmem:[%s2157] ss:$2 sm:$0xff]
        %s2159 = scalar_lea.vmem [#allocation4], 33
        %v2160 = vld [vmem:[%s2159] ss:$2 sm:$0xff]
        %s2161 = scalar_lea.vmem [#allocation4], 49
        %v2162 = vld [vmem:[%s2161] ss:$2 sm:$0xff]
        %s2163 = scalar_lea.vmem [#allocation4], 65
        %v2164 = vld [vmem:[%s2163] ss:$2 sm:$0xff]
        %v2165 = vpack.c.bf16 %v2158, %v2156
        %v2166 = vpack.c.bf16 %v2162, %v2160
        %v2167 = vpack.c.bf16 %v2164, %v2164
        %v2168 = vld [vmem:[%s5 + $0x8] sm:$0xf]
        %v2169 = vld [vmem:[%s5 + $0xc] sm:$0xf]
        %v2172 = vunpack.c.l.b16 %v2168
        %v2173 = vunpack.c.l.b16 %v2169
        %v2174 = vpack.c.b16 %v2173, %v2172
        %v2177 = vsel %vm2129, %v2165, 0
        %v2180 = vsel %vm2129, %v2166, 0
        %v2183 = vsel %vm2129, %v2167, 0
        %2185 = vmatpush.bf16.msra.mxu0 0
        %2186 = vmatpush.bf16.msra.mxu0 0
        %2187 = vmatpush.bf16.msra.mxu0 0
        %2188 = vmatpush.bf16.msra.mxu0 0
        %2189 = vmatpush.bf16.msra.mxu0 0
        %2190 = vmatpush.bf16.msra.mxu0 0
        %2191 = vmatpush.bf16.msra.mxu0 0
        %2192 = vmatpush.bf16.msra.mxu0 %v2174
        %2193 = vmatmul.bf16.gmra.mxu0 %v2177
        %v2194 = vpop.f32.mrf.mxu0
        %v2195 = vadd.f32 0.0, %v2194
        %v2196 = vpop.f32.mrf.mxu0
        %v2197 = vadd.f32 0.0, %v2196
        %2198 = vmatmul.bf16.gmra.mxu0 %v2180
        %v2199 = vpop.f32.mrf.mxu0
        %v2200 = vadd.f32 0.0, %v2199
        %v2201 = vpop.f32.mrf.mxu0
        %v2202 = vadd.f32 0.0, %v2201
        %2203 = vmatmul.bf16.gmra.mxu0 %v2183
        %v2204 = vpop.f32.mrf.mxu0
        %v2205 = vadd.f32 0.0, %v2204
        %v2206 = vpop.f32.mrf.mxu0
        %2207 = vdwg.mxu0
        %v2210 = vunpack.c.l.b16 %v2153
        %v2211 = vunpack.c.l.b16 %v2154
        %v2212 = vpack.c.b16 %v2211, %v2210
        %v2215 = vsel %vm2129, %v2150, 0
        %v2218 = vsel %vm2129, %v2151, 0
        %v2221 = vsel %vm2129, %v2152, 0
        %2223 = vmatpush.bf16.msra.mxu0 0
        %2224 = vmatpush.bf16.msra.mxu0 0
        %2225 = vmatpush.bf16.msra.mxu0 0
        %2226 = vmatpush.bf16.msra.mxu0 0
        %2227 = vmatpush.bf16.msra.mxu0 0
        %2228 = vmatpush.bf16.msra.mxu0 0
        %2229 = vmatpush.bf16.msra.mxu0 0
        %2230 = vmatpush.bf16.msra.mxu0 %v2212
        %2231 = vmatmul.bf16.gmra.mxu0 %v2215
        %v2232 = vpop.f32.mrf.mxu0
        %v2233 = vadd.f32 %v2195, %v2232
        %v2234 = vpop.f32.mrf.mxu0
        %v2235 = vadd.f32 %v2197, %v2234
        %2236 = vmatmul.bf16.gmra.mxu0 %v2218
        %v2237 = vpop.f32.mrf.mxu0
        %v2238 = vadd.f32 %v2200, %v2237
        %v2239 = vpop.f32.mrf.mxu0
        %v2240 = vadd.f32 %v2202, %v2239
        %2241 = vmatmul.bf16.gmra.mxu0 %v2221
        %v2242 = vpop.f32.mrf.mxu0
        %v2243 = vadd.f32 %v2205, %v2242
        %v2244 = vpop.f32.mrf.mxu0
        %2245 = vdwg.mxu0
        %s2246 = scalar_lea.vmem [#allocation4], 2
        %v2247 = vld [vmem:[%s2246] ss:$2 sm:$0xff]
        %s2248 = scalar_lea.vmem [#allocation4], 18
        %v2249 = vld [vmem:[%s2248] ss:$2 sm:$0xff]
        %s2250 = scalar_lea.vmem [#allocation4], 34
        %v2251 = vld [vmem:[%s2250] ss:$2 sm:$0xff]
        %s2252 = scalar_lea.vmem [#allocation4], 50
        %v2253 = vld [vmem:[%s2252] ss:$2 sm:$0xff]
        %s2254 = scalar_lea.vmem [#allocation4], 66
        %v2255 = vld [vmem:[%s2254] ss:$2 sm:$0xff]
        %v2256 = vpack.c.bf16 %v2249, %v2247
        %v2257 = vpack.c.bf16 %v2253, %v2251
        %v2258 = vpack.c.bf16 %v2255, %v2255
        %v2259 = vld [vmem:[%s5 + $0x10] sm:$0xf]
        %v2260 = vld [vmem:[%s5 + $0x14] sm:$0xf]
        %v2263 = vunpack.c.l.b16 %v2259
        %v2264 = vunpack.c.l.b16 %v2260
        %v2265 = vpack.c.b16 %v2264, %v2263
        %v2268 = vsel %vm2129, %v2256, 0
        %v2271 = vsel %vm2129, %v2257, 0
        %v2274 = vsel %vm2129, %v2258, 0
        %2276 = vmatpush.bf16.msra.mxu0 0
        %2277 = vmatpush.bf16.msra.mxu0 0
        %2278 = vmatpush.bf16.msra.mxu0 0
        %2279 = vmatpush.bf16.msra.mxu0 0
        %2280 = vmatpush.bf16.msra.mxu0 0
        %2281 = vmatpush.bf16.msra.mxu0 0
        %2282 = vmatpush.bf16.msra.mxu0 0
        %2283 = vmatpush.bf16.msra.mxu0 %v2265
        %2284 = vmatmul.bf16.gmra.mxu0 %v2268
        %v2285 = vpop.f32.mrf.mxu0
        %v2286 = vadd.f32 0.0, %v2285
        %v2287 = vpop.f32.mrf.mxu0
        %v2288 = vadd.f32 0.0, %v2287
        %2289 = vmatmul.bf16.gmra.mxu0 %v2271
        %v2290 = vpop.f32.mrf.mxu0
        %v2291 = vadd.f32 0.0, %v2290
        %v2292 = vpop.f32.mrf.mxu0
        %v2293 = vadd.f32 0.0, %v2292
        %2294 = vmatmul.bf16.gmra.mxu0 %v2274
        %v2295 = vpop.f32.mrf.mxu0
        %v2296 = vadd.f32 0.0, %v2295
        %v2297 = vpop.f32.mrf.mxu0
        %2298 = vdwg.mxu0
        %v2299 = vadd.f32 %v2233, %v2286
        %v2300 = vadd.f32 %v2235, %v2288
        %v2301 = vadd.f32 %v2238, %v2291
        %v2302 = vadd.f32 %v2240, %v2293
        %v2303 = vadd.f32 %v2243, %v2296
        %s2304 = scalar_lea.vmem [#allocation4], 3
        %v2305 = vld [vmem:[%s2304] ss:$2 sm:$0xff]
        %s2306 = scalar_lea.vmem [#allocation4], 19
        %v2307 = vld [vmem:[%s2306] ss:$2 sm:$0xff]
        %s2308 = scalar_lea.vmem [#allocation4], 35
        %v2309 = vld [vmem:[%s2308] ss:$2 sm:$0xff]
        %s2310 = scalar_lea.vmem [#allocation4], 51
        %v2311 = vld [vmem:[%s2310] ss:$2 sm:$0xff]
        %s2312 = scalar_lea.vmem [#allocation4], 67
        %v2313 = vld [vmem:[%s2312] ss:$2 sm:$0xff]
        %v2314 = vpack.c.bf16 %v2307, %v2305
        %v2315 = vpack.c.bf16 %v2311, %v2309
        %v2316 = vpack.c.bf16 %v2313, %v2313
        %v2317 = vld [vmem:[%s5 + $0x18] sm:$0xf]
        %v2318 = vld [vmem:[%s5 + $0x1c] sm:$0xf]
        %v2321 = vunpack.c.l.b16 %v2317
        %v2322 = vunpack.c.l.b16 %v2318
        %v2323 = vpack.c.b16 %v2322, %v2321
        %v2326 = vsel %vm2129, %v2314, 0
        %v2329 = vsel %vm2129, %v2315, 0
        %v2332 = vsel %vm2129, %v2316, 0
        %2334 = vmatpush.bf16.msra.mxu0 0
        %2335 = vmatpush.bf16.msra.mxu0 0
        %2336 = vmatpush.bf16.msra.mxu0 0
        %2337 = vmatpush.bf16.msra.mxu0 0
        %2338 = vmatpush.bf16.msra.mxu0 0
        %2339 = vmatpush.bf16.msra.mxu0 0
        %2340 = vmatpush.bf16.msra.mxu0 0
        %2341 = vmatpush.bf16.msra.mxu0 %v2323
        %2342 = vmatmul.bf16.gmra.mxu0 %v2326
        %v2343 = vpop.f32.mrf.mxu0
        %v2344 = vadd.f32 0.0, %v2343
        %v2345 = vpop.f32.mrf.mxu0
        %v2346 = vadd.f32 0.0, %v2345
        %2347 = vmatmul.bf16.gmra.mxu0 %v2329
        %v2348 = vpop.f32.mrf.mxu0
        %v2349 = vadd.f32 0.0, %v2348
        %v2350 = vpop.f32.mrf.mxu0
        %v2351 = vadd.f32 0.0, %v2350
        %2352 = vmatmul.bf16.gmra.mxu0 %v2332
        %v2353 = vpop.f32.mrf.mxu0
        %v2354 = vadd.f32 0.0, %v2353
        %v2355 = vpop.f32.mrf.mxu0
        %2356 = vdwg.mxu0
        %v2357 = vadd.f32 %v2299, %v2344
        %v2358 = vadd.f32 %v2300, %v2346
        %v2359 = vadd.f32 %v2301, %v2349
        %v2360 = vadd.f32 %v2302, %v2351
        %v2361 = vadd.f32 %v2303, %v2354
        %s2362 = scalar_lea.vmem [#allocation4], 4
        %v2363 = vld [vmem:[%s2362] ss:$2 sm:$0xff]
        %s2364 = scalar_lea.vmem [#allocation4], 20
        %v2365 = vld [vmem:[%s2364] ss:$2 sm:$0xff]
        %s2366 = scalar_lea.vmem [#allocation4], 36
        %v2367 = vld [vmem:[%s2366] ss:$2 sm:$0xff]
        %s2368 = scalar_lea.vmem [#allocation4], 52
        %v2369 = vld [vmem:[%s2368] ss:$2 sm:$0xff]
        %s2370 = scalar_lea.vmem [#allocation4], 68
        %v2371 = vld [vmem:[%s2370] ss:$2 sm:$0xff]
        %v2372 = vpack.c.bf16 %v2365, %v2363
        %v2373 = vpack.c.bf16 %v2369, %v2367
        %v2374 = vpack.c.bf16 %v2371, %v2371
        %v2375 = vld [vmem:[%s5 + $0x20] sm:$0xf]
        %v2376 = vld [vmem:[%s5 + $0x24] sm:$0xf]
        %v2379 = vunpack.c.l.b16 %v2375
        %v2380 = vunpack.c.l.b16 %v2376
        %v2381 = vpack.c.b16 %v2380, %v2379
        %v2384 = vsel %vm2129, %v2372, 0
        %v2387 = vsel %vm2129, %v2373, 0
        %v2390 = vsel %vm2129, %v2374, 0
        %2392 = vmatpush.bf16.msra.mxu0 0
        %2393 = vmatpush.bf16.msra.mxu0 0
        %2394 = vmatpush.bf16.msra.mxu0 0
        %2395 = vmatpush.bf16.msra.mxu0 0
        %2396 = vmatpush.bf16.msra.mxu0 0
        %2397 = vmatpush.bf16.msra.mxu0 0
        %2398 = vmatpush.bf16.msra.mxu0 0
        %2399 = vmatpush.bf16.msra.mxu0 %v2381
        %2400 = vmatmul.bf16.gmra.mxu0 %v2384
        %v2401 = vpop.f32.mrf.mxu0
        %v2402 = vadd.f32 0.0, %v2401
        %v2403 = vpop.f32.mrf.mxu0
        %v2404 = vadd.f32 0.0, %v2403
        %2405 = vmatmul.bf16.gmra.mxu0 %v2387
        %v2406 = vpop.f32.mrf.mxu0
        %v2407 = vadd.f32 0.0, %v2406
        %v2408 = vpop.f32.mrf.mxu0
        %v2409 = vadd.f32 0.0, %v2408
        %2410 = vmatmul.bf16.gmra.mxu0 %v2390
        %v2411 = vpop.f32.mrf.mxu0
        %v2412 = vadd.f32 0.0, %v2411
        %v2413 = vpop.f32.mrf.mxu0
        %2414 = vdwg.mxu0
        %v2415 = vadd.f32 %v2357, %v2402
        %v2416 = vadd.f32 %v2358, %v2404
        %v2417 = vadd.f32 %v2359, %v2407
        %v2418 = vadd.f32 %v2360, %v2409
        %v2419 = vadd.f32 %v2361, %v2412
        %v2420 = vld [vmem:[%s6] sm:$0x1]
        %v2422 = vperm.slane %v2420, 0
        %v2424 = vadd.f32 %v2415, %v2422
        %v2425 = vadd.f32 %v2416, %v2422
        %v2426 = vadd.f32 %v2417, %v2422
        %v2427 = vadd.f32 %v2418, %v2422
        %v2428 = vadd.f32 %v2419, %v2422
        %v2429 = vmax.f32 %v2424, 0.0
        %v2430 = vmax.f32 %v2425, 0.0
        %v2431 = vmax.f32 %v2426, 0.0
        %v2432 = vmax.f32 %v2427, 0.0
        %v2433 = vmax.f32 %v2428, 0.0
        %2434 = vxpose.xlu0.b32.start [1/16] %v2429, 128
        %2435 = vxpose.xlu0.b32.cont [2/16] %v2430, 128
        %2436 = vxpose.xlu0.b32.cont [3/16] %v2431, 128
        %2437 = vxpose.xlu0.b32.cont [4/16] %v2432, 128
        %2438 = vxpose.xlu0.b32.cont [5/16] %v2433, 128
        %2439 = vxpose.xlu0.b32.cont [6/16] 0.0, 128
        %2440 = vxpose.xlu0.b32.cont [7/16] 0.0, 128
        %2441 = vxpose.xlu0.b32.cont [8/16] 0.0, 128
        %2442 = vxpose.xlu0.b32.cont [9/16] 0.0, 128
        %2443 = vxpose.xlu0.b32.cont [10/16] 0.0, 128
        %2444 = vxpose.xlu0.b32.cont [11/16] 0.0, 128
        %2445 = vxpose.xlu0.b32.cont [12/16] 0.0, 128
        %2446 = vxpose.xlu0.b32.cont [13/16] 0.0, 128
        %2447 = vxpose.xlu0.b32.cont [14/16] 0.0, 128
        %2448 = vxpose.xlu0.b32.cont [15/16] 0.0, 128
        %2449 = vxpose.xlu0.b32.end [16/16] 0.0, 128
        %v2450 = vpop.trf.xlu0
        %v2451 = vpop.trf.xlu0
        %v2452 = vpop.trf.xlu0
        %v2453 = vpop.trf.xlu0
        %v2454 = vpop.trf.xlu0
        %v2455 = vpop.trf.xlu0
        %v2456 = vpop.trf.xlu0
        %v2457 = vpop.trf.xlu0
        %v2458 = vpop.trf.xlu0
        %v2459 = vpop.trf.xlu0
        %v2460 = vpop.trf.xlu0
        %v2461 = vpop.trf.xlu0
        %v2462 = vpop.trf.xlu0
        %v2463 = vpop.trf.xlu0
        %v2464 = vpop.trf.xlu0
        %v2465 = vpop.trf.xlu0
        %vm2466 = vcmask 326656
        %2467 = vst.msk [vmem:[#allocation5] sm:$0xff] %vm2466, %v2450
        %v2468 = vld [vmem:[#allocation5] sm:$0x1]
        %v2469 = vpack.c.bf16 %v2468, %v2468
        %v2470 = vld [vmem:[#allocation9] sm:$0xff]
        %v2471 = vld [vmem:[#allocation9 + $0x8] sm:$0xf]
        %v2472 = vld [vmem:[#allocation9 + $0xc] sm:$0xff]
        %v2473 = vld [vmem:[#allocation9 + $0x14] sm:$0xf]
        %v2474 = vld [vmem:[#allocation9 + $0x18] sm:$0xff]
        %v2475 = vld [vmem:[#allocation9 + $0x20] sm:$0xf]
        %v2476 = vld [vmem:[#allocation9 + $0x24] sm:$0xff]
        %v2477 = vld [vmem:[#allocation9 + $0x2c] sm:$0xf]
        %v2478 = vld [vmem:[#allocation9 + $0x30] sm:$0xff]
        %v2479 = vld [vmem:[#allocation9 + $0x38] sm:$0xf]
        %v2480 = vld [vmem:[#allocation5 + $0x1] sm:$0x1]
        %v2481 = vpack.c.bf16 %v2480, %v2480
        %s2482 = scalar_lea.vmem [#allocation9], 60
        %v2483 = vld [vmem:[%s2482] sm:$0xff]
        %v2484 = vld [vmem:[%s2482 + $0x8] sm:$0xf]
        %v2485 = vld [vmem:[%s2482 + $0xc] sm:$0xff]
        %v2486 = vld [vmem:[%s2482 + $0x14] sm:$0xf]
        %v2487 = vld [vmem:[%s2482 + $0x18] sm:$0xff]
        %v2488 = vld [vmem:[%s2482 + $0x20] sm:$0xf]
        %v2489 = vld [vmem:[%s2482 + $0x24] sm:$0xff]
        %v2490 = vld [vmem:[%s2482 + $0x2c] sm:$0xf]
        %v2491 = vld [vmem:[%s2482 + $0x30] sm:$0xff]
        %v2492 = vld [vmem:[%s2482 + $0x38] sm:$0xf]
        %v2503 = vunpack.c.l.b16 %v2483
        %v2504 = vunpack.c.h.b16 %v2483
        %v2505 = vunpack.c.l.b16 %v2484
        %v2506 = vunpack.c.l.b16 %v2485
        %v2507 = vunpack.c.h.b16 %v2485
        %v2508 = vunpack.c.l.b16 %v2486
        %v2509 = vunpack.c.l.b16 %v2487
        %v2510 = vunpack.c.h.b16 %v2487
        %v2511 = vunpack.c.l.b16 %v2488
        %v2512 = vunpack.c.l.b16 %v2489
        %v2513 = vunpack.c.h.b16 %v2489
        %v2514 = vunpack.c.l.b16 %v2490
        %v2515 = vunpack.c.l.b16 %v2491
        %v2516 = vunpack.c.h.b16 %v2491
        %v2517 = vunpack.c.l.b16 %v2492
        %v2518 = vpack.c.b16 %v2506, %v2503
        %v2519 = vpack.c.b16 %v2507, %v2504
        %v2520 = vpack.c.b16 %v2508, %v2505
        %v2521 = vpack.c.b16 %v2512, %v2509
        %v2522 = vpack.c.b16 %v2513, %v2510
        %v2523 = vpack.c.b16 %v2514, %v2511
        %v2524 = vpack.c.b16 %v2515, %v2515
        %v2525 = vpack.c.b16 %v2516, %v2516
        %v2526 = vpack.c.b16 %v2517, %v2517
        %v2534 = vsel %vm2466, %v2481, 0
        %vm2536 = vcmask 1043456
        %v2538 = vsel %vm2536, %v2524, 0
        %v2541 = vsel %vm2536, %v2525, 0
        %v2544 = vsel %vm2536, %v2526, 0
        %2546 = vmatpush.bf16.msra.mxu0 0
        %2547 = vmatpush.bf16.msra.mxu0 0
        %2548 = vmatpush.bf16.msra.mxu0 0
        %2549 = vmatpush.bf16.msra.mxu0 0
        %2550 = vmatpush.bf16.msra.mxu0 0
        %2551 = vmatpush.bf16.msra.mxu0 %v2538
        %2552 = vmatpush.bf16.msra.mxu0 %v2521
        %2553 = vmatpush.bf16.msra.mxu0 %v2518
        %2554 = vmatmul.bf16.gmra.mxu0 %v2534
        %v2555 = vpop.f32.mrf.mxu0
        %v2556 = vadd.f32 0.0, %v2555
        %v2557 = vpop.f32.mrf.mxu0
        %2558 = vdwg.mxu0
        %2559 = vmatpush.bf16.msra.mxu0 0
        %2560 = vmatpush.bf16.msra.mxu0 0
        %2561 = vmatpush.bf16.msra.mxu0 0
        %2562 = vmatpush.bf16.msra.mxu0 0
        %2563 = vmatpush.bf16.msra.mxu0 0
        %2564 = vmatpush.bf16.msra.mxu0 %v2541
        %2565 = vmatpush.bf16.msra.mxu0 %v2522
        %2566 = vmatpush.bf16.msra.mxu0 %v2519
        %2567 = vmatmul.bf16.gmra.mxu0 %v2534
        %v2568 = vpop.f32.mrf.mxu0
        %v2569 = vadd.f32 0.0, %v2568
        %v2570 = vpop.f32.mrf.mxu0
        %2571 = vdwg.mxu0
        %2572 = vmatpush.bf16.msra.mxu0 0
        %2573 = vmatpush.bf16.msra.mxu0 0
        %2574 = vmatpush.bf16.msra.mxu0 0
        %2575 = vmatpush.bf16.msra.mxu0 0
        %2576 = vmatpush.bf16.msra.mxu0 0
        %2577 = vmatpush.bf16.msra.mxu0 %v2544
        %2578 = vmatpush.bf16.msra.mxu0 %v2523
        %2579 = vmatpush.bf16.msra.mxu0 %v2520
        %2580 = vmatmul.bf16.gmra.mxu0 %v2534
        %v2581 = vpop.f32.mrf.mxu0
        %v2582 = vadd.f32 0.0, %v2581
        %v2583 = vpop.f32.mrf.mxu0
        %2584 = vdwg.mxu0
        %v2595 = vunpack.c.l.b16 %v2470
        %v2596 = vunpack.c.h.b16 %v2470
        %v2597 = vunpack.c.l.b16 %v2471
        %v2598 = vunpack.c.l.b16 %v2472
        %v2599 = vunpack.c.h.b16 %v2472
        %v2600 = vunpack.c.l.b16 %v2473
        %v2601 = vunpack.c.l.b16 %v2474
        %v2602 = vunpack.c.h.b16 %v2474
        %v2603 = vunpack.c.l.b16 %v2475
        %v2604 = vunpack.c.l.b16 %v2476
        %v2605 = vunpack.c.h.b16 %v2476
        %v2606 = vunpack.c.l.b16 %v2477
        %v2607 = vunpack.c.l.b16 %v2478
        %v2608 = vunpack.c.h.b16 %v2478
        %v2609 = vunpack.c.l.b16 %v2479
        %v2610 = vpack.c.b16 %v2598, %v2595
        %v2611 = vpack.c.b16 %v2599, %v2596
        %v2612 = vpack.c.b16 %v2600, %v2597
        %v2613 = vpack.c.b16 %v2604, %v2601
        %v2614 = vpack.c.b16 %v2605, %v2602
        %v2615 = vpack.c.b16 %v2606, %v2603
        %v2616 = vpack.c.b16 %v2607, %v2607
        %v2617 = vpack.c.b16 %v2608, %v2608
        %v2618 = vpack.c.b16 %v2609, %v2609
        %v2626 = vsel %vm2466, %v2469, 0
        %v2629 = vsel %vm2536, %v2616, 0
        %v2632 = vsel %vm2536, %v2617, 0
        %v2635 = vsel %vm2536, %v2618, 0
        %2637 = vmatpush.bf16.msra.mxu0 0
        %2638 = vmatpush.bf16.msra.mxu0 0
        %2639 = vmatpush.bf16.msra.mxu0 0
        %2640 = vmatpush.bf16.msra.mxu0 0
        %2641 = vmatpush.bf16.msra.mxu0 0
        %2642 = vmatpush.bf16.msra.mxu0 %v2629
        %2643 = vmatpush.bf16.msra.mxu0 %v2613
        %2644 = vmatpush.bf16.msra.mxu0 %v2610
        %2645 = vmatmul.bf16.gmra.mxu0 %v2626
        %v2646 = vpop.f32.mrf.mxu0
        %v2647 = vadd.f32 %v2556, %v2646
        %v2648 = vpop.f32.mrf.mxu0
        %2649 = vdwg.mxu0
        %2650 = vmatpush.bf16.msra.mxu0 0
        %2651 = vmatpush.bf16.msra.mxu0 0
        %2652 = vmatpush.bf16.msra.mxu0 0
        %2653 = vmatpush.bf16.msra.mxu0 0
        %2654 = vmatpush.bf16.msra.mxu0 0
        %2655 = vmatpush.bf16.msra.mxu0 %v2632
        %2656 = vmatpush.bf16.msra.mxu0 %v2614
        %2657 = vmatpush.bf16.msra.mxu0 %v2611
        %2658 = vmatmul.bf16.gmra.mxu0 %v2626
        %v2659 = vpop.f32.mrf.mxu0
        %v2660 = vadd.f32 %v2569, %v2659
        %v2661 = vpop.f32.mrf.mxu0
        %2662 = vdwg.mxu0
        %2663 = vmatpush.bf16.msra.mxu0 0
        %2664 = vmatpush.bf16.msra.mxu0 0
        %2665 = vmatpush.bf16.msra.mxu0 0
        %2666 = vmatpush.bf16.msra.mxu0 0
        %2667 = vmatpush.bf16.msra.mxu0 0
        %2668 = vmatpush.bf16.msra.mxu0 %v2635
        %2669 = vmatpush.bf16.msra.mxu0 %v2615
        %2670 = vmatpush.bf16.msra.mxu0 %v2612
        %2671 = vmatmul.bf16.gmra.mxu0 %v2626
        %v2672 = vpop.f32.mrf.mxu0
        %v2673 = vadd.f32 %v2582, %v2672
        %v2674 = vpop.f32.mrf.mxu0
        %2675 = vdwg.mxu0
        %v2676 = vld [vmem:[#allocation5 + $0x2] sm:$0x1]
        %v2677 = vpack.c.bf16 %v2676, %v2676
        %s2678 = scalar_lea.vmem [#allocation9], 120
        %v2679 = vld [vmem:[%s2678] sm:$0xff]
        %v2680 = vld [vmem:[%s2678 + $0x8] sm:$0xf]
        %v2681 = vld [vmem:[%s2678 + $0xc] sm:$0xff]
        %v2682 = vld [vmem:[%s2678 + $0x14] sm:$0xf]
        %v2683 = vld [vmem:[%s2678 + $0x18] sm:$0xff]
        %v2684 = vld [vmem:[%s2678 + $0x20] sm:$0xf]
        %v2685 = vld [vmem:[%s2678 + $0x24] sm:$0xff]
        %v2686 = vld [vmem:[%s2678 + $0x2c] sm:$0xf]
        %v2687 = vld [vmem:[%s2678 + $0x30] sm:$0xff]
        %v2688 = vld [vmem:[%s2678 + $0x38] sm:$0xf]
        %v2699 = vunpack.c.l.b16 %v2679
        %v2700 = vunpack.c.h.b16 %v2679
        %v2701 = vunpack.c.l.b16 %v2680
        %v2702 = vunpack.c.l.b16 %v2681
        %v2703 = vunpack.c.h.b16 %v2681
        %v2704 = vunpack.c.l.b16 %v2682
        %v2705 = vunpack.c.l.b16 %v2683
        %v2706 = vunpack.c.h.b16 %v2683
        %v2707 = vunpack.c.l.b16 %v2684
        %v2708 = vunpack.c.l.b16 %v2685
        %v2709 = vunpack.c.h.b16 %v2685
        %v2710 = vunpack.c.l.b16 %v2686
        %v2711 = vunpack.c.l.b16 %v2687
        %v2712 = vunpack.c.h.b16 %v2687
        %v2713 = vunpack.c.l.b16 %v2688
        %v2714 = vpack.c.b16 %v2702, %v2699
        %v2715 = vpack.c.b16 %v2703, %v2700
        %v2716 = vpack.c.b16 %v2704, %v2701
        %v2717 = vpack.c.b16 %v2708, %v2705
        %v2718 = vpack.c.b16 %v2709, %v2706
        %v2719 = vpack.c.b16 %v2710, %v2707
        %v2720 = vpack.c.b16 %v2711, %v2711
        %v2721 = vpack.c.b16 %v2712, %v2712
        %v2722 = vpack.c.b16 %v2713, %v2713
        %v2730 = vsel %vm2466, %v2677, 0
        %v2733 = vsel %vm2536, %v2720, 0
        %v2736 = vsel %vm2536, %v2721, 0
        %v2739 = vsel %vm2536, %v2722, 0
        %2741 = vmatpush.bf16.msra.mxu0 0
        %2742 = vmatpush.bf16.msra.mxu0 0
        %2743 = vmatpush.bf16.msra.mxu0 0
        %2744 = vmatpush.bf16.msra.mxu0 0
        %2745 = vmatpush.bf16.msra.mxu0 0
        %2746 = vmatpush.bf16.msra.mxu0 %v2733
        %2747 = vmatpush.bf16.msra.mxu0 %v2717
        %2748 = vmatpush.bf16.msra.mxu0 %v2714
        %2749 = vmatmul.bf16.gmra.mxu0 %v2730
        %v2750 = vpop.f32.mrf.mxu0
        %v2751 = vadd.f32 0.0, %v2750
        %v2752 = vpop.f32.mrf.mxu0
        %2753 = vdwg.mxu0
        %2754 = vmatpush.bf16.msra.mxu0 0
        %2755 = vmatpush.bf16.msra.mxu0 0
        %2756 = vmatpush.bf16.msra.mxu0 0
        %2757 = vmatpush.bf16.msra.mxu0 0
        %2758 = vmatpush.bf16.msra.mxu0 0
        %2759 = vmatpush.bf16.msra.mxu0 %v2736
        %2760 = vmatpush.bf16.msra.mxu0 %v2718
        %2761 = vmatpush.bf16.msra.mxu0 %v2715
        %2762 = vmatmul.bf16.gmra.mxu0 %v2730
        %v2763 = vpop.f32.mrf.mxu0
        %v2764 = vadd.f32 0.0, %v2763
        %v2765 = vpop.f32.mrf.mxu0
        %2766 = vdwg.mxu0
        %2767 = vmatpush.bf16.msra.mxu0 0
        %2768 = vmatpush.bf16.msra.mxu0 0
        %2769 = vmatpush.bf16.msra.mxu0 0
        %2770 = vmatpush.bf16.msra.mxu0 0
        %2771 = vmatpush.bf16.msra.mxu0 0
        %2772 = vmatpush.bf16.msra.mxu0 %v2739
        %2773 = vmatpush.bf16.msra.mxu0 %v2719
        %2774 = vmatpush.bf16.msra.mxu0 %v2716
        %2775 = vmatmul.bf16.gmra.mxu0 %v2730
        %v2776 = vpop.f32.mrf.mxu0
        %v2777 = vadd.f32 0.0, %v2776
        %v2778 = vpop.f32.mrf.mxu0
        %2779 = vdwg.mxu0
        %v2780 = vadd.f32 %v2647, %v2751
        %v2781 = vadd.f32 %v2660, %v2764
        %v2782 = vadd.f32 %v2673, %v2777
        %v2783 = vld [vmem:[#allocation5 + $0x3] sm:$0x1]
        %v2784 = vpack.c.bf16 %v2783, %v2783
        %s2785 = scalar_lea.vmem [#allocation9], 180
        %v2786 = vld [vmem:[%s2785] sm:$0xff]
        %v2787 = vld [vmem:[%s2785 + $0x8] sm:$0xf]
        %v2788 = vld [vmem:[%s2785 + $0xc] sm:$0xff]
        %v2789 = vld [vmem:[%s2785 + $0x14] sm:$0xf]
        %v2790 = vld [vmem:[%s2785 + $0x18] sm:$0xff]
        %v2791 = vld [vmem:[%s2785 + $0x20] sm:$0xf]
        %v2792 = vld [vmem:[%s2785 + $0x24] sm:$0xff]
        %v2793 = vld [vmem:[%s2785 + $0x2c] sm:$0xf]
        %v2794 = vld [vmem:[%s2785 + $0x30] sm:$0xff]
        %v2795 = vld [vmem:[%s2785 + $0x38] sm:$0xf]
        %v2806 = vunpack.c.l.b16 %v2786
        %v2807 = vunpack.c.h.b16 %v2786
        %v2808 = vunpack.c.l.b16 %v2787
        %v2809 = vunpack.c.l.b16 %v2788
        %v2810 = vunpack.c.h.b16 %v2788
        %v2811 = vunpack.c.l.b16 %v2789
        %v2812 = vunpack.c.l.b16 %v2790
        %v2813 = vunpack.c.h.b16 %v2790
        %v2814 = vunpack.c.l.b16 %v2791
        %v2815 = vunpack.c.l.b16 %v2792
        %v2816 = vunpack.c.h.b16 %v2792
        %v2817 = vunpack.c.l.b16 %v2793
        %v2818 = vunpack.c.l.b16 %v2794
        %v2819 = vunpack.c.h.b16 %v2794
        %v2820 = vunpack.c.l.b16 %v2795
        %v2821 = vpack.c.b16 %v2809, %v2806
        %v2822 = vpack.c.b16 %v2810, %v2807
        %v2823 = vpack.c.b16 %v2811, %v2808
        %v2824 = vpack.c.b16 %v2815, %v2812
        %v2825 = vpack.c.b16 %v2816, %v2813
        %v2826 = vpack.c.b16 %v2817, %v2814
        %v2827 = vpack.c.b16 %v2818, %v2818
        %v2828 = vpack.c.b16 %v2819, %v2819
        %v2829 = vpack.c.b16 %v2820, %v2820
        %v2837 = vsel %vm2466, %v2784, 0
        %v2840 = vsel %vm2536, %v2827, 0
        %v2843 = vsel %vm2536, %v2828, 0
        %v2846 = vsel %vm2536, %v2829, 0
        %2848 = vmatpush.bf16.msra.mxu0 0
        %2849 = vmatpush.bf16.msra.mxu0 0
        %2850 = vmatpush.bf16.msra.mxu0 0
        %2851 = vmatpush.bf16.msra.mxu0 0
        %2852 = vmatpush.bf16.msra.mxu0 0
        %2853 = vmatpush.bf16.msra.mxu0 %v2840
        %2854 = vmatpush.bf16.msra.mxu0 %v2824
        %2855 = vmatpush.bf16.msra.mxu0 %v2821
        %2856 = vmatmul.bf16.gmra.mxu0 %v2837
        %v2857 = vpop.f32.mrf.mxu0
        %v2858 = vadd.f32 0.0, %v2857
        %v2859 = vpop.f32.mrf.mxu0
        %2860 = vdwg.mxu0
        %2861 = vmatpush.bf16.msra.mxu0 0
        %2862 = vmatpush.bf16.msra.mxu0 0
        %2863 = vmatpush.bf16.msra.mxu0 0
        %2864 = vmatpush.bf16.msra.mxu0 0
        %2865 = vmatpush.bf16.msra.mxu0 0
        %2866 = vmatpush.bf16.msra.mxu0 %v2843
        %2867 = vmatpush.bf16.msra.mxu0 %v2825
        %2868 = vmatpush.bf16.msra.mxu0 %v2822
        %2869 = vmatmul.bf16.gmra.mxu0 %v2837
        %v2870 = vpop.f32.mrf.mxu0
        %v2871 = vadd.f32 0.0, %v2870
        %v2872 = vpop.f32.mrf.mxu0
        %2873 = vdwg.mxu0
        %2874 = vmatpush.bf16.msra.mxu0 0
        %2875 = vmatpush.bf16.msra.mxu0 0
        %2876 = vmatpush.bf16.msra.mxu0 0
        %2877 = vmatpush.bf16.msra.mxu0 0
        %2878 = vmatpush.bf16.msra.mxu0 0
        %2879 = vmatpush.bf16.msra.mxu0 %v2846
        %2880 = vmatpush.bf16.msra.mxu0 %v2826
        %2881 = vmatpush.bf16.msra.mxu0 %v2823
        %2882 = vmatmul.bf16.gmra.mxu0 %v2837
        %v2883 = vpop.f32.mrf.mxu0
        %v2884 = vadd.f32 0.0, %v2883
        %v2885 = vpop.f32.mrf.mxu0
        %2886 = vdwg.mxu0
        %v2887 = vadd.f32 %v2780, %v2858
        %v2888 = vadd.f32 %v2781, %v2871
        %v2889 = vadd.f32 %v2782, %v2884
        %v2890 = vld [vmem:[#allocation5 + $0x4] sm:$0x1]
        %v2891 = vpack.c.bf16 %v2890, %v2890
        %s2892 = scalar_lea.vmem [#allocation9], 240
        %v2893 = vld [vmem:[%s2892] sm:$0xff]
        %v2894 = vld [vmem:[%s2892 + $0x8] sm:$0xf]
        %v2895 = vld [vmem:[%s2892 + $0xc] sm:$0xff]
        %v2896 = vld [vmem:[%s2892 + $0x14] sm:$0xf]
        %v2897 = vld [vmem:[%s2892 + $0x18] sm:$0xff]
        %v2898 = vld [vmem:[%s2892 + $0x20] sm:$0xf]
        %v2899 = vld [vmem:[%s2892 + $0x24] sm:$0xff]
        %v2900 = vld [vmem:[%s2892 + $0x2c] sm:$0xf]
        %v2901 = vld [vmem:[%s2892 + $0x30] sm:$0xff]
        %v2902 = vld [vmem:[%s2892 + $0x38] sm:$0xf]
        %v2913 = vunpack.c.l.b16 %v2893
        %v2914 = vunpack.c.h.b16 %v2893
        %v2915 = vunpack.c.l.b16 %v2894
        %v2916 = vunpack.c.l.b16 %v2895
        %v2917 = vunpack.c.h.b16 %v2895
        %v2918 = vunpack.c.l.b16 %v2896
        %v2919 = vunpack.c.l.b16 %v2897
        %v2920 = vunpack.c.h.b16 %v2897
        %v2921 = vunpack.c.l.b16 %v2898
        %v2922 = vunpack.c.l.b16 %v2899
        %v2923 = vunpack.c.h.b16 %v2899
        %v2924 = vunpack.c.l.b16 %v2900
        %v2925 = vunpack.c.l.b16 %v2901
        %v2926 = vunpack.c.h.b16 %v2901
        %v2927 = vunpack.c.l.b16 %v2902
        %v2928 = vpack.c.b16 %v2916, %v2913
        %v2929 = vpack.c.b16 %v2917, %v2914
        %v2930 = vpack.c.b16 %v2918, %v2915
        %v2931 = vpack.c.b16 %v2922, %v2919
        %v2932 = vpack.c.b16 %v2923, %v2920
        %v2933 = vpack.c.b16 %v2924, %v2921
        %v2934 = vpack.c.b16 %v2925, %v2925
        %v2935 = vpack.c.b16 %v2926, %v2926
        %v2936 = vpack.c.b16 %v2927, %v2927
        %v2944 = vsel %vm2466, %v2891, 0
        %v2947 = vsel %vm2536, %v2934, 0
        %v2950 = vsel %vm2536, %v2935, 0
        %v2953 = vsel %vm2536, %v2936, 0
        %2955 = vmatpush.bf16.msra.mxu0 0
        %2956 = vmatpush.bf16.msra.mxu0 0
        %2957 = vmatpush.bf16.msra.mxu0 0
        %2958 = vmatpush.bf16.msra.mxu0 0
        %2959 = vmatpush.bf16.msra.mxu0 0
        %2960 = vmatpush.bf16.msra.mxu0 %v2947
        %2961 = vmatpush.bf16.msra.mxu0 %v2931
        %2962 = vmatpush.bf16.msra.mxu0 %v2928
        %2963 = vmatmul.bf16.gmra.mxu0 %v2944
        %v2964 = vpop.f32.mrf.mxu0
        %v2965 = vadd.f32 0.0, %v2964
        %v2966 = vpop.f32.mrf.mxu0
        %2967 = vdwg.mxu0
        %2968 = vmatpush.bf16.msra.mxu0 0
        %2969 = vmatpush.bf16.msra.mxu0 0
        %2970 = vmatpush.bf16.msra.mxu0 0
        %2971 = vmatpush.bf16.msra.mxu0 0
        %2972 = vmatpush.bf16.msra.mxu0 0
        %2973 = vmatpush.bf16.msra.mxu0 %v2950
        %2974 = vmatpush.bf16.msra.mxu0 %v2932
        %2975 = vmatpush.bf16.msra.mxu0 %v2929
        %2976 = vmatmul.bf16.gmra.mxu0 %v2944
        %v2977 = vpop.f32.mrf.mxu0
        %v2978 = vadd.f32 0.0, %v2977
        %v2979 = vpop.f32.mrf.mxu0
        %2980 = vdwg.mxu0
        %2981 = vmatpush.bf16.msra.mxu0 0
        %2982 = vmatpush.bf16.msra.mxu0 0
        %2983 = vmatpush.bf16.msra.mxu0 0
        %2984 = vmatpush.bf16.msra.mxu0 0
        %2985 = vmatpush.bf16.msra.mxu0 0
        %2986 = vmatpush.bf16.msra.mxu0 %v2953
        %2987 = vmatpush.bf16.msra.mxu0 %v2933
        %2988 = vmatpush.bf16.msra.mxu0 %v2930
        %2989 = vmatmul.bf16.gmra.mxu0 %v2944
        %v2990 = vpop.f32.mrf.mxu0
        %v2991 = vadd.f32 0.0, %v2990
        %v2992 = vpop.f32.mrf.mxu0
        %2993 = vdwg.mxu0
        %v2994 = vadd.f32 %v2887, %v2965
        %v2995 = vadd.f32 %v2888, %v2978
        %v2996 = vadd.f32 %v2889, %v2991
        %v2997 = vld [vmem:[#allocation5 + $0x5] sm:$0x1]
        %v2998 = vpack.c.bf16 %v2997, %v2997
        %s2999 = scalar_lea.vmem [#allocation9], 300
        %v3000 = vld [vmem:[%s2999] sm:$0xff]
        %v3001 = vld [vmem:[%s2999 + $0x8] sm:$0xf]
        %v3002 = vld [vmem:[%s2999 + $0xc] sm:$0xff]
        %v3003 = vld [vmem:[%s2999 + $0x14] sm:$0xf]
        %v3004 = vld [vmem:[%s2999 + $0x18] sm:$0xff]
        %v3005 = vld [vmem:[%s2999 + $0x20] sm:$0xf]
        %v3006 = vld [vmem:[%s2999 + $0x24] sm:$0xff]
        %v3007 = vld [vmem:[%s2999 + $0x2c] sm:$0xf]
        %v3008 = vld [vmem:[%s2999 + $0x30] sm:$0xff]
        %v3009 = vld [vmem:[%s2999 + $0x38] sm:$0xf]
        %v3020 = vunpack.c.l.b16 %v3000
        %v3021 = vunpack.c.h.b16 %v3000
        %v3022 = vunpack.c.l.b16 %v3001
        %v3023 = vunpack.c.l.b16 %v3002
        %v3024 = vunpack.c.h.b16 %v3002
        %v3025 = vunpack.c.l.b16 %v3003
        %v3026 = vunpack.c.l.b16 %v3004
        %v3027 = vunpack.c.h.b16 %v3004
        %v3028 = vunpack.c.l.b16 %v3005
        %v3029 = vunpack.c.l.b16 %v3006
        %v3030 = vunpack.c.h.b16 %v3006
        %v3031 = vunpack.c.l.b16 %v3007
        %v3032 = vunpack.c.l.b16 %v3008
        %v3033 = vunpack.c.h.b16 %v3008
        %v3034 = vunpack.c.l.b16 %v3009
        %v3035 = vpack.c.b16 %v3023, %v3020
        %v3036 = vpack.c.b16 %v3024, %v3021
        %v3037 = vpack.c.b16 %v3025, %v3022
        %v3038 = vpack.c.b16 %v3029, %v3026
        %v3039 = vpack.c.b16 %v3030, %v3027
        %v3040 = vpack.c.b16 %v3031, %v3028
        %v3041 = vpack.c.b16 %v3032, %v3032
        %v3042 = vpack.c.b16 %v3033, %v3033
        %v3043 = vpack.c.b16 %v3034, %v3034
        %v3051 = vsel %vm2466, %v2998, 0
        %v3054 = vsel %vm2536, %v3041, 0
        %v3057 = vsel %vm2536, %v3042, 0
        %v3060 = vsel %vm2536, %v3043, 0
        %3062 = vmatpush.bf16.msra.mxu0 0
        %3063 = vmatpush.bf16.msra.mxu0 0
        %3064 = vmatpush.bf16.msra.mxu0 0
        %3065 = vmatpush.bf16.msra.mxu0 0
        %3066 = vmatpush.bf16.msra.mxu0 0
        %3067 = vmatpush.bf16.msra.mxu0 %v3054
        %3068 = vmatpush.bf16.msra.mxu0 %v3038
        %3069 = vmatpush.bf16.msra.mxu0 %v3035
        %3070 = vmatmul.bf16.gmra.mxu0 %v3051
        %v3071 = vpop.f32.mrf.mxu0
        %v3072 = vadd.f32 0.0, %v3071
        %v3073 = vpop.f32.mrf.mxu0
        %3074 = vdwg.mxu0
        %3075 = vmatpush.bf16.msra.mxu0 0
        %3076 = vmatpush.bf16.msra.mxu0 0
        %3077 = vmatpush.bf16.msra.mxu0 0
        %3078 = vmatpush.bf16.msra.mxu0 0
        %3079 = vmatpush.bf16.msra.mxu0 0
        %3080 = vmatpush.bf16.msra.mxu0 %v3057
        %3081 = vmatpush.bf16.msra.mxu0 %v3039
        %3082 = vmatpush.bf16.msra.mxu0 %v3036
        %3083 = vmatmul.bf16.gmra.mxu0 %v3051
        %v3084 = vpop.f32.mrf.mxu0
        %v3085 = vadd.f32 0.0, %v3084
        %v3086 = vpop.f32.mrf.mxu0
        %3087 = vdwg.mxu0
        %3088 = vmatpush.bf16.msra.mxu0 0
        %3089 = vmatpush.bf16.msra.mxu0 0
        %3090 = vmatpush.bf16.msra.mxu0 0
        %3091 = vmatpush.bf16.msra.mxu0 0
        %3092 = vmatpush.bf16.msra.mxu0 0
        %3093 = vmatpush.bf16.msra.mxu0 %v3060
        %3094 = vmatpush.bf16.msra.mxu0 %v3040
        %3095 = vmatpush.bf16.msra.mxu0 %v3037
        %3096 = vmatmul.bf16.gmra.mxu0 %v3051
        %v3097 = vpop.f32.mrf.mxu0
        %v3098 = vadd.f32 0.0, %v3097
        %v3099 = vpop.f32.mrf.mxu0
        %3100 = vdwg.mxu0
        %v3101 = vadd.f32 %v2994, %v3072
        %v3102 = vadd.f32 %v2995, %v3085
        %v3103 = vadd.f32 %v2996, %v3098
        %v3104 = vld [vmem:[#allocation5 + $0x6] sm:$0x1]
        %v3105 = vpack.c.bf16 %v3104, %v3104
        %s3106 = scalar_lea.vmem [#allocation9], 360
        %v3107 = vld [vmem:[%s3106] sm:$0xff]
        %v3108 = vld [vmem:[%s3106 + $0x8] sm:$0xf]
        %v3109 = vld [vmem:[%s3106 + $0xc] sm:$0xff]
        %v3110 = vld [vmem:[%s3106 + $0x14] sm:$0xf]
        %v3111 = vld [vmem:[%s3106 + $0x18] sm:$0xff]
        %v3112 = vld [vmem:[%s3106 + $0x20] sm:$0xf]
        %v3113 = vld [vmem:[%s3106 + $0x24] sm:$0xff]
        %v3114 = vld [vmem:[%s3106 + $0x2c] sm:$0xf]
        %v3115 = vld [vmem:[%s3106 + $0x30] sm:$0xff]
        %v3116 = vld [vmem:[%s3106 + $0x38] sm:$0xf]
        %v3127 = vunpack.c.l.b16 %v3107
        %v3128 = vunpack.c.h.b16 %v3107
        %v3129 = vunpack.c.l.b16 %v3108
        %v3130 = vunpack.c.l.b16 %v3109
        %v3131 = vunpack.c.h.b16 %v3109
        %v3132 = vunpack.c.l.b16 %v3110
        %v3133 = vunpack.c.l.b16 %v3111
        %v3134 = vunpack.c.h.b16 %v3111
        %v3135 = vunpack.c.l.b16 %v3112
        %v3136 = vunpack.c.l.b16 %v3113
        %v3137 = vunpack.c.h.b16 %v3113
        %v3138 = vunpack.c.l.b16 %v3114
        %v3139 = vunpack.c.l.b16 %v3115
        %v3140 = vunpack.c.h.b16 %v3115
        %v3141 = vunpack.c.l.b16 %v3116
        %v3142 = vpack.c.b16 %v3130, %v3127
        %v3143 = vpack.c.b16 %v3131, %v3128
        %v3144 = vpack.c.b16 %v3132, %v3129
        %v3145 = vpack.c.b16 %v3136, %v3133
        %v3146 = vpack.c.b16 %v3137, %v3134
        %v3147 = vpack.c.b16 %v3138, %v3135
        %v3148 = vpack.c.b16 %v3139, %v3139
        %v3149 = vpack.c.b16 %v3140, %v3140
        %v3150 = vpack.c.b16 %v3141, %v3141
        %v3158 = vsel %vm2466, %v3105, 0
        %v3161 = vsel %vm2536, %v3148, 0
        %v3164 = vsel %vm2536, %v3149, 0
        %v3167 = vsel %vm2536, %v3150, 0
        %3169 = vmatpush.bf16.msra.mxu0 0
        %3170 = vmatpush.bf16.msra.mxu0 0
        %3171 = vmatpush.bf16.msra.mxu0 0
        %3172 = vmatpush.bf16.msra.mxu0 0
        %3173 = vmatpush.bf16.msra.mxu0 0
        %3174 = vmatpush.bf16.msra.mxu0 %v3161
        %3175 = vmatpush.bf16.msra.mxu0 %v3145
        %3176 = vmatpush.bf16.msra.mxu0 %v3142
        %3177 = vmatmul.bf16.gmra.mxu0 %v3158
        %v3178 = vpop.f32.mrf.mxu0
        %v3179 = vadd.f32 0.0, %v3178
        %v3180 = vpop.f32.mrf.mxu0
        %3181 = vdwg.mxu0
        %3182 = vmatpush.bf16.msra.mxu0 0
        %3183 = vmatpush.bf16.msra.mxu0 0
        %3184 = vmatpush.bf16.msra.mxu0 0
        %3185 = vmatpush.bf16.msra.mxu0 0
        %3186 = vmatpush.bf16.msra.mxu0 0
        %3187 = vmatpush.bf16.msra.mxu0 %v3164
        %3188 = vmatpush.bf16.msra.mxu0 %v3146
        %3189 = vmatpush.bf16.msra.mxu0 %v3143
        %3190 = vmatmul.bf16.gmra.mxu0 %v3158
        %v3191 = vpop.f32.mrf.mxu0
        %v3192 = vadd.f32 0.0, %v3191
        %v3193 = vpop.f32.mrf.mxu0
        %3194 = vdwg.mxu0
        %3195 = vmatpush.bf16.msra.mxu0 0
        %3196 = vmatpush.bf16.msra.mxu0 0
        %3197 = vmatpush.bf16.msra.mxu0 0
        %3198 = vmatpush.bf16.msra.mxu0 0
        %3199 = vmatpush.bf16.msra.mxu0 0
        %3200 = vmatpush.bf16.msra.mxu0 %v3167
        %3201 = vmatpush.bf16.msra.mxu0 %v3147
        %3202 = vmatpush.bf16.msra.mxu0 %v3144
        %3203 = vmatmul.bf16.gmra.mxu0 %v3158
        %v3204 = vpop.f32.mrf.mxu0
        %v3205 = vadd.f32 0.0, %v3204
        %v3206 = vpop.f32.mrf.mxu0
        %3207 = vdwg.mxu0
        %v3208 = vadd.f32 %v3101, %v3179
        %v3209 = vadd.f32 %v3102, %v3192
        %v3210 = vadd.f32 %v3103, %v3205
        %v3211 = vld [vmem:[#allocation5 + $0x7] sm:$0x1]
        %v3212 = vpack.c.bf16 %v3211, %v3211
        %s3213 = scalar_lea.vmem [#allocation9], 420
        %v3214 = vld [vmem:[%s3213] sm:$0xff]
        %v3215 = vld [vmem:[%s3213 + $0x8] sm:$0xf]
        %v3216 = vld [vmem:[%s3213 + $0xc] sm:$0xff]
        %v3217 = vld [vmem:[%s3213 + $0x14] sm:$0xf]
        %v3218 = vld [vmem:[%s3213 + $0x18] sm:$0xff]
        %v3219 = vld [vmem:[%s3213 + $0x20] sm:$0xf]
        %v3220 = vld [vmem:[%s3213 + $0x24] sm:$0xff]
        %v3221 = vld [vmem:[%s3213 + $0x2c] sm:$0xf]
        %v3222 = vld [vmem:[%s3213 + $0x30] sm:$0xff]
        %v3223 = vld [vmem:[%s3213 + $0x38] sm:$0xf]
        %v3234 = vunpack.c.l.b16 %v3214
        %v3235 = vunpack.c.h.b16 %v3214
        %v3236 = vunpack.c.l.b16 %v3215
        %v3237 = vunpack.c.l.b16 %v3216
        %v3238 = vunpack.c.h.b16 %v3216
        %v3239 = vunpack.c.l.b16 %v3217
        %v3240 = vunpack.c.l.b16 %v3218
        %v3241 = vunpack.c.h.b16 %v3218
        %v3242 = vunpack.c.l.b16 %v3219
        %v3243 = vunpack.c.l.b16 %v3220
        %v3244 = vunpack.c.h.b16 %v3220
        %v3245 = vunpack.c.l.b16 %v3221
        %v3246 = vunpack.c.l.b16 %v3222
        %v3247 = vunpack.c.h.b16 %v3222
        %v3248 = vunpack.c.l.b16 %v3223
        %v3249 = vpack.c.b16 %v3237, %v3234
        %v3250 = vpack.c.b16 %v3238, %v3235
        %v3251 = vpack.c.b16 %v3239, %v3236
        %v3252 = vpack.c.b16 %v3243, %v3240
        %v3253 = vpack.c.b16 %v3244, %v3241
        %v3254 = vpack.c.b16 %v3245, %v3242
        %v3255 = vpack.c.b16 %v3246, %v3246
        %v3256 = vpack.c.b16 %v3247, %v3247
        %v3257 = vpack.c.b16 %v3248, %v3248
        %v3265 = vsel %vm2466, %v3212, 0
        %v3268 = vsel %vm2536, %v3255, 0
        %v3271 = vsel %vm2536, %v3256, 0
        %v3274 = vsel %vm2536, %v3257, 0
        %3276 = vmatpush.bf16.msra.mxu0 0
        %3277 = vmatpush.bf16.msra.mxu0 0
        %3278 = vmatpush.bf16.msra.mxu0 0
        %3279 = vmatpush.bf16.msra.mxu0 0
        %3280 = vmatpush.bf16.msra.mxu0 0
        %3281 = vmatpush.bf16.msra.mxu0 %v3268
        %3282 = vmatpush.bf16.msra.mxu0 %v3252
        %3283 = vmatpush.bf16.msra.mxu0 %v3249
        %3284 = vmatmul.bf16.gmra.mxu0 %v3265
        %v3285 = vpop.f32.mrf.mxu0
        %v3286 = vadd.f32 0.0, %v3285
        %v3287 = vpop.f32.mrf.mxu0
        %3288 = vdwg.mxu0
        %3289 = vmatpush.bf16.msra.mxu0 0
        %3290 = vmatpush.bf16.msra.mxu0 0
        %3291 = vmatpush.bf16.msra.mxu0 0
        %3292 = vmatpush.bf16.msra.mxu0 0
        %3293 = vmatpush.bf16.msra.mxu0 0
        %3294 = vmatpush.bf16.msra.mxu0 %v3271
        %3295 = vmatpush.bf16.msra.mxu0 %v3253
        %3296 = vmatpush.bf16.msra.mxu0 %v3250
        %3297 = vmatmul.bf16.gmra.mxu0 %v3265
        %v3298 = vpop.f32.mrf.mxu0
        %v3299 = vadd.f32 0.0, %v3298
        %v3300 = vpop.f32.mrf.mxu0
        %3301 = vdwg.mxu0
        %3302 = vmatpush.bf16.msra.mxu0 0
        %3303 = vmatpush.bf16.msra.mxu0 0
        %3304 = vmatpush.bf16.msra.mxu0 0
        %3305 = vmatpush.bf16.msra.mxu0 0
        %3306 = vmatpush.bf16.msra.mxu0 0
        %3307 = vmatpush.bf16.msra.mxu0 %v3274
        %3308 = vmatpush.bf16.msra.mxu0 %v3254
        %3309 = vmatpush.bf16.msra.mxu0 %v3251
        %3310 = vmatmul.bf16.gmra.mxu0 %v3265
        %v3311 = vpop.f32.mrf.mxu0
        %v3312 = vadd.f32 0.0, %v3311
        %v3313 = vpop.f32.mrf.mxu0
        %3314 = vdwg.mxu0
        %v3315 = vadd.f32 %v3208, %v3286
        %v3316 = vadd.f32 %v3209, %v3299
        %v3317 = vadd.f32 %v3210, %v3312
        %v3318 = vld [vmem:[%s8] sm:$0x7]
        %v3320 = vperm.slane %v3318, 0
        %v3321 = vperm.slane %v3318, 1
        %v3322 = vperm.slane %v3318, 2
        %v3326 = vadd.f32 %v3315, %v3320
        %v3327 = vadd.f32 %v3316, %v3321
        %v3328 = vadd.f32 %v3317, %v3322
        %v3329 = vxor.u32 %v3326, 2147483648
        %v3330 = vmul.f32 %v3329, 1.442695
        %v3331 = vpow.pop %v3330
        %v3332 = vadd.f32 %v3331, 1.0
        %v3333 = vrcp.pop %v3332
        %v3334 = vmul.f32 %v3332, %v3333
        %v3335 = vsub.f32 1.0, %v3334
        %v3336 = vmul.f32 %v3333, %v3335
        %v3337 = vadd.f32 %v3333, %v3336
        %vm3338 = vweird.f32 %v3332
        %vm3339 = vweird.f32 %v3333
        %vm3340 = vmor %vm3338, %vm3339
        %v3341 = vsel %vm3340, %v3333, %v3337
        %v3342 = vand.u32 2147483647, %v3332
        %vm3343 = vcmp.eq.f32.partialorder %v3342, 8.507059e+37
        %v3344 = vand.u32 %v3332, 2147483648
        %v3345 = vor.u32 1.1754944e-38, %v3344
        %v3346 = vsel %vm3343, %v3345, %v3341
        %v3347 = vmul.f32 1.0, %v3346
        %v3348 = vtanh.pop %v3327
        %v3349 = vmul.f32 %v3347, %v3348
        %v3350 = vxor.u32 %v3328, 2147483648
        %v3351 = vmul.f32 %v3350, 1.442695
        %v3352 = vpow.pop %v3351
        %v3353 = vadd.f32 %v3352, 1.0
        %v3354 = vrcp.pop %v3353
        %v3355 = vmul.f32 %v3353, %v3354
        %v3356 = vsub.f32 1.0, %v3355
        %v3357 = vmul.f32 %v3354, %v3356
        %v3358 = vadd.f32 %v3354, %v3357
        %vm3359 = vweird.f32 %v3353
        %vm3360 = vweird.f32 %v3354
        %vm3361 = vmor %vm3359, %vm3360
        %v3362 = vsel %vm3361, %v3354, %v3358
        %v3363 = vand.u32 2147483647, %v3353
        %vm3364 = vcmp.eq.f32.partialorder %v3363, 8.507059e+37
        %v3365 = vand.u32 %v3353, 2147483648
        %v3366 = vor.u32 1.1754944e-38, %v3365
        %v3367 = vsel %vm3364, %v3366, %v3362
        %v3368 = vmul.f32 1.0, %v3367
        %v3369 = vtanh.pop %v3349
        %v3370 = vmul.f32 %v3368, %v3369
        %v3371 = vpack.c.bf16 %v3370, %v3370
        %v3372 = vld [vmem:[%s9] sm:$0xff]
        %v3373 = vld [vmem:[%s9 + $0x8] sm:$0xf]
        %v3374 = vld [vmem:[%s9 + $0xc] sm:$0xff]
        %v3375 = vld [vmem:[%s9 + $0x14] sm:$0xf]
        %v3376 = vld [vmem:[%s9 + $0x18] sm:$0xff]
        %v3377 = vld [vmem:[%s9 + $0x20] sm:$0xf]
        %v3378 = vld [vmem:[%s9 + $0x24] sm:$0xff]
        %v3379 = vld [vmem:[%s9 + $0x2c] sm:$0xf]
        %v3380 = vld [vmem:[%s9 + $0x30] sm:$0xff]
        %v3381 = vld [vmem:[%s9 + $0x38] sm:$0xf]
        %v3382 = vld [vmem:[%s9 + $0x3c] sm:$0xff]
        %v3383 = vld [vmem:[%s9 + $0x44] sm:$0xf]
        %v3384 = vld [vmem:[%s9 + $0x48] sm:$0xff]
        %v3385 = vld [vmem:[%s9 + $0x50] sm:$0xf]
        %v3386 = vld [vmem:[%s9 + $0x54] sm:$0xff]
        %v3387 = vld [vmem:[%s9 + $0x5c] sm:$0xf]
        %v3388 = vld [vmem:[%s9 + $0x60] sm:$0xff]
        %v3389 = vld [vmem:[%s9 + $0x68] sm:$0xf]
        %v3390 = vld [vmem:[%s9 + $0x6c] sm:$0xff]
        %v3391 = vld [vmem:[%s9 + $0x74] sm:$0xf]
        %v3392 = vld [vmem:[%s9 + $0x78] sm:$0xff]
        %v3393 = vld [vmem:[%s9 + $0x80] sm:$0xf]
        %v3394 = vld [vmem:[%s9 + $0x84] sm:$0xff]
        %v3395 = vld [vmem:[%s9 + $0x8c] sm:$0xf]
        %v3396 = vld [vmem:[%s9 + $0x90] sm:$0xff]
        %v3397 = vld [vmem:[%s9 + $0x98] sm:$0xf]
        %v3398 = vld [vmem:[%s9 + $0x9c] sm:$0xff]
        %v3399 = vld [vmem:[%s9 + $0xa4] sm:$0xf]
        %v3400 = vld [vmem:[%s9 + $0xa8] sm:$0xff]
        %v3401 = vld [vmem:[%s9 + $0xb0] sm:$0xf]
        %v3402 = vld [vmem:[%s9 + $0xb4] sm:$0xff]
        %v3403 = vld [vmem:[%s9 + $0xbc] sm:$0xf]
        %v3404 = vld [vmem:[%s10] sm:$0x7]
        %v3437 = vunpack.c.l.b16 %v3372
        %v3438 = vunpack.c.h.b16 %v3372
        %v3439 = vunpack.c.l.b16 %v3373
        %v3440 = vunpack.c.l.b16 %v3374
        %v3441 = vunpack.c.h.b16 %v3374
        %v3442 = vunpack.c.l.b16 %v3375
        %v3443 = vunpack.c.l.b16 %v3376
        %v3444 = vunpack.c.h.b16 %v3376
        %v3445 = vunpack.c.l.b16 %v3377
        %v3446 = vunpack.c.l.b16 %v3378
        %v3447 = vunpack.c.h.b16 %v3378
        %v3448 = vunpack.c.l.b16 %v3379
        %v3449 = vunpack.c.l.b16 %v3380
        %v3450 = vunpack.c.h.b16 %v3380
        %v3451 = vunpack.c.l.b16 %v3381
        %v3452 = vunpack.c.l.b16 %v3382
        %v3453 = vunpack.c.h.b16 %v3382
        %v3454 = vunpack.c.l.b16 %v3383
        %v3455 = vunpack.c.l.b16 %v3384
        %v3456 = vunpack.c.h.b16 %v3384
        %v3457 = vunpack.c.l.b16 %v3385
        %v3458 = vunpack.c.l.b16 %v3386
        %v3459 = vunpack.c.h.b16 %v3386
        %v3460 = vunpack.c.l.b16 %v3387
        %v3461 = vunpack.c.l.b16 %v3388
        %v3462 = vunpack.c.h.b16 %v3388
        %v3463 = vunpack.c.l.b16 %v3389
        %v3464 = vunpack.c.l.b16 %v3390
        %v3465 = vunpack.c.h.b16 %v3390
        %v3466 = vunpack.c.l.b16 %v3391
        %v3467 = vunpack.c.l.b16 %v3392
        %v3468 = vunpack.c.h.b16 %v3392
        %v3469 = vunpack.c.l.b16 %v3393
        %v3470 = vunpack.c.l.b16 %v3394
        %v3471 = vunpack.c.h.b16 %v3394
        %v3472 = vunpack.c.l.b16 %v3395
        %v3473 = vunpack.c.l.b16 %v3396
        %v3474 = vunpack.c.h.b16 %v3396
        %v3475 = vunpack.c.l.b16 %v3397
        %v3476 = vunpack.c.l.b16 %v3398
        %v3477 = vunpack.c.h.b16 %v3398
        %v3478 = vunpack.c.l.b16 %v3399
        %v3479 = vunpack.c.l.b16 %v3400
        %v3480 = vunpack.c.h.b16 %v3400
        %v3481 = vunpack.c.l.b16 %v3401
        %v3482 = vunpack.c.l.b16 %v3402
        %v3483 = vunpack.c.h.b16 %v3402
        %v3484 = vunpack.c.l.b16 %v3403
        %v3485 = vpack.c.b16 %v3440, %v3437
        %v3486 = vpack.c.b16 %v3441, %v3438
        %v3487 = vpack.c.b16 %v3442, %v3439
        %v3488 = vpack.c.b16 %v3446, %v3443
        %v3489 = vpack.c.b16 %v3447, %v3444
        %v3490 = vpack.c.b16 %v3448, %v3445
        %v3491 = vpack.c.b16 %v3452, %v3449
        %v3492 = vpack.c.b16 %v3453, %v3450
        %v3493 = vpack.c.b16 %v3454, %v3451
        %v3494 = vpack.c.b16 %v3458, %v3455
        %v3495 = vpack.c.b16 %v3459, %v3456
        %v3496 = vpack.c.b16 %v3460, %v3457
        %v3497 = vpack.c.b16 %v3464, %v3461
        %v3498 = vpack.c.b16 %v3465, %v3462
        %v3499 = vpack.c.b16 %v3466, %v3463
        %v3500 = vpack.c.b16 %v3470, %v3467
        %v3501 = vpack.c.b16 %v3471, %v3468
        %v3502 = vpack.c.b16 %v3472, %v3469
        %v3503 = vpack.c.b16 %v3476, %v3473
        %v3504 = vpack.c.b16 %v3477, %v3474
        %v3505 = vpack.c.b16 %v3478, %v3475
        %v3506 = vpack.c.b16 %v3482, %v3479
        %v3507 = vpack.c.b16 %v3483, %v3480
        %v3508 = vpack.c.b16 %v3484, %v3481
        %v3534 = vperm.slane %v3404, 0
        %v3535 = vperm.slane %v3404, 1
        %v3536 = vperm.slane %v3404, 2
        %3540 = vmatpush.bf16.msra.mxu0 %v3506
        %3541 = vmatpush.bf16.msra.mxu0 %v3503
        %3542 = vmatpush.bf16.msra.mxu0 %v3500
        %3543 = vmatpush.bf16.msra.mxu0 %v3497
        %3544 = vmatpush.bf16.msra.mxu0 %v3494
        %3545 = vmatpush.bf16.msra.mxu0 %v3491
        %3546 = vmatpush.bf16.msra.mxu0 %v3488
        %3547 = vmatpush.bf16.msra.mxu0 %v3485
        %3548 = vmatmul.bf16.gmra.mxu0 %v3371
        %v3549 = vpop.f32.mrf.mxu0
        %v3550 = vadd.f32 %v3534, %v3549
        %v3551 = vpop.f32.mrf.mxu0
        %3552 = vdwg.mxu0
        %3553 = vmatpush.bf16.msra.mxu0 %v3507
        %3554 = vmatpush.bf16.msra.mxu0 %v3504
        %3555 = vmatpush.bf16.msra.mxu0 %v3501
        %3556 = vmatpush.bf16.msra.mxu0 %v3498
        %3557 = vmatpush.bf16.msra.mxu0 %v3495
        %3558 = vmatpush.bf16.msra.mxu0 %v3492
        %3559 = vmatpush.bf16.msra.mxu0 %v3489
        %3560 = vmatpush.bf16.msra.mxu0 %v3486
        %3561 = vmatmul.bf16.gmra.mxu0 %v3371
        %v3562 = vpop.f32.mrf.mxu0
        %v3563 = vadd.f32 %v3535, %v3562
        %v3564 = vpop.f32.mrf.mxu0
        %3565 = vdwg.mxu0
        %3566 = vmatpush.bf16.msra.mxu0 %v3508
        %3567 = vmatpush.bf16.msra.mxu0 %v3505
        %3568 = vmatpush.bf16.msra.mxu0 %v3502
        %3569 = vmatpush.bf16.msra.mxu0 %v3499
        %3570 = vmatpush.bf16.msra.mxu0 %v3496
        %3571 = vmatpush.bf16.msra.mxu0 %v3493
        %3572 = vmatpush.bf16.msra.mxu0 %v3490
        %3573 = vmatpush.bf16.msra.mxu0 %v3487
        %3574 = vmatmul.bf16.gmra.mxu0 %v3371
        %v3575 = vpop.f32.mrf.mxu0
        %v3576 = vadd.f32 %v3536, %v3575
        %v3577 = vpop.f32.mrf.mxu0
        %3578 = vdwg.mxu0
        %v3579 = vxor.u32 %v3550, 2147483648
        %v3580 = vmul.f32 %v3579, 1.442695
        %v3581 = vpow.pop %v3580
        %v3582 = vadd.f32 %v3581, 1.0
        %v3583 = vrcp.pop %v3582
        %v3584 = vmul.f32 %v3582, %v3583
        %v3585 = vsub.f32 1.0, %v3584
        %v3586 = vmul.f32 %v3583, %v3585
        %v3587 = vadd.f32 %v3583, %v3586
        %vm3588 = vweird.f32 %v3582
        %vm3589 = vweird.f32 %v3583
        %vm3590 = vmor %vm3588, %vm3589
        %v3591 = vsel %vm3590, %v3583, %v3587
        %v3592 = vand.u32 2147483647, %v3582
        %vm3593 = vcmp.eq.f32.partialorder %v3592, 8.507059e+37
        %v3594 = vand.u32 %v3582, 2147483648
        %v3595 = vor.u32 1.1754944e-38, %v3594
        %v3596 = vsel %vm3593, %v3595, %v3591
        %v3597 = vmul.f32 1.0, %v3596
        %v3598 = vtanh.pop %v3563
        %v3599 = vmul.f32 %v3597, %v3598
        %v3600 = vxor.u32 %v3576, 2147483648
        %v3601 = vmul.f32 %v3600, 1.442695
        %v3602 = vpow.pop %v3601
        %v3603 = vadd.f32 %v3602, 1.0
        %v3604 = vrcp.pop %v3603
        %v3605 = vmul.f32 %v3603, %v3604
        %v3606 = vsub.f32 1.0, %v3605
        %v3607 = vmul.f32 %v3604, %v3606
        %v3608 = vadd.f32 %v3604, %v3607
        %vm3609 = vweird.f32 %v3603
        %vm3610 = vweird.f32 %v3604
        %vm3611 = vmor %vm3609, %vm3610
        %v3612 = vsel %vm3611, %v3604, %v3608
        %v3613 = vand.u32 2147483647, %v3603
        %vm3614 = vcmp.eq.f32.partialorder %v3613, 8.507059e+37
        %v3615 = vand.u32 %v3603, 2147483648
        %v3616 = vor.u32 1.1754944e-38, %v3615
        %v3617 = vsel %vm3614, %v3616, %v3612
        %v3618 = vmul.f32 1.0, %v3617
        %v3619 = vtanh.pop %v3599
        %v3620 = vmul.f32 %v3618, %v3619
        %v3621 = vpack.c.bf16 %v3620, %v3620
        %v3622 = vld [vmem:[%s11] sm:$0xf]
        %v3623 = vld [vmem:[%s11 + $0x4] sm:$0xf]
        %v3624 = vld [vmem:[%s11 + $0x8] sm:$0xf]
        %v3625 = vld [vmem:[%s11 + $0xc] sm:$0xf]
        %v3626 = vld [vmem:[%s11 + $0x10] sm:$0xf]
        %v3627 = vld [vmem:[%s11 + $0x14] sm:$0xf]
        %v3628 = vld [vmem:[%s11 + $0x18] sm:$0xf]
        %v3629 = vld [vmem:[%s11 + $0x1c] sm:$0xf]
        %v3630 = vld [vmem:[%s11 + $0x20] sm:$0xf]
        %v3631 = vld [vmem:[%s11 + $0x24] sm:$0xf]
        %v3632 = vld [vmem:[%s11 + $0x28] sm:$0xf]
        %v3633 = vld [vmem:[%s11 + $0x2c] sm:$0xf]
        %v3634 = vld [vmem:[%s11 + $0x30] sm:$0xf]
        %v3635 = vld [vmem:[%s11 + $0x34] sm:$0xf]
        %v3636 = vld [vmem:[%s11 + $0x38] sm:$0xf]
        %v3637 = vld [vmem:[%s11 + $0x3c] sm:$0xf]
        %v3638 = vld [vmem:[%s12] sm:$0x1]
        %v3655 = vunpack.c.l.b16 %v3622
        %v3656 = vunpack.c.l.b16 %v3623
        %v3657 = vunpack.c.l.b16 %v3624
        %v3658 = vunpack.c.l.b16 %v3625
        %v3659 = vunpack.c.l.b16 %v3626
        %v3660 = vunpack.c.l.b16 %v3627
        %v3661 = vunpack.c.l.b16 %v3628
        %v3662 = vunpack.c.l.b16 %v3629
        %v3663 = vunpack.c.l.b16 %v3630
        %v3664 = vunpack.c.l.b16 %v3631
        %v3665 = vunpack.c.l.b16 %v3632
        %v3666 = vunpack.c.l.b16 %v3633
        %v3667 = vunpack.c.l.b16 %v3634
        %v3668 = vunpack.c.l.b16 %v3635
        %v3669 = vunpack.c.l.b16 %v3636
        %v3670 = vunpack.c.l.b16 %v3637
        %v3671 = vpack.c.b16 %v3656, %v3655
        %v3672 = vpack.c.b16 %v3658, %v3657
        %v3673 = vpack.c.b16 %v3660, %v3659
        %v3674 = vpack.c.b16 %v3662, %v3661
        %v3675 = vpack.c.b16 %v3664, %v3663
        %v3676 = vpack.c.b16 %v3666, %v3665
        %v3677 = vpack.c.b16 %v3668, %v3667
        %v3678 = vpack.c.b16 %v3670, %v3669
        %3687 = vmatpush.bf16.msra.mxu0 %v3678
        %3688 = vmatpush.bf16.msra.mxu0 %v3677
        %3689 = vmatpush.bf16.msra.mxu0 %v3676
        %3690 = vmatpush.bf16.msra.mxu0 %v3675
        %3691 = vmatpush.bf16.msra.mxu0 %v3674
        %3692 = vmatpush.bf16.msra.mxu0 %v3673
        %3693 = vmatpush.bf16.msra.mxu0 %v3672
        %3694 = vmatpush.bf16.msra.mxu0 %v3671
        %3695 = vmatmul.bf16.gmra.mxu0 %v3621
        %v3696 = vpop.f32.mrf.mxu0
        %v3697 = vadd.f32 %v3638, %v3696
        %v3698 = vpop.f32.mrf.mxu0
        %3699 = vdwg.mxu0
        %vm3700 = vcmask 32768
        %3701 = vst.msk [vmem:[%s476] sm:$0x1] %vm3700, %v3697
        %s3702 = sand.u32 %s317, 1
        %s3703 = scalar_lea.sflag [#allocation8], %s3702
        %s3704 = sand.u32 %s317, 1
        %s3705 = scalar_lea.vmem [#allocation11], %s3704
        // Predicated region
        $region81: #{conv_lstm_forward.1} parent=71 // pred_check
          %p3706 = pneg %p327
        $region82: #{conv_lstm_forward.1} parent=71 // pred_check_branch
          %3708 = sbr.rel (%p3706) target = $region84
        $region83: #{conv_lstm_forward.1} parent=71 // pred_region
          %3710 = vsyncadd %s3703, 0
          %s3711 = scalar_lea.hbm %s13, %s31
          %s3713 = sshll.u32 %s3705, 4
          %s3714 = int_to_ptr.vmem [resolvable:$true] %s3713
          %s3715 = sshll.u32 %s3711, 4
          %s3716 = int_to_ptr.hbm [resolvable:$true] %s3715
          %3718 = dma.vmem_to_hbm [thread:$0]  %s3714, 16, %s3716, %s3703
        $region84: #{conv_lstm_forward.1} parent=71 // pred_fallthru
          _
      $region72: #{conv_lstm_forward.1} parent=5 // pred_fallthru
        _
      %p3719 = scmp.le.s32.totalorder 2, %s26
      // Predicated region
      $region85: #{conv_lstm_forward.1} parent=5 // pred_check
        %p3720 = pneg %p3719
      $region86: #{conv_lstm_forward.1} parent=5 // pred_check_branch
        %3722 = sbr.rel (%p3720) target = $region88
      $region87: #{conv_lstm_forward.1} parent=5 // pred_region
        %s3723 = ssub.s32 %s26, 2
        // Predicated region
        $region89: #{conv_lstm_forward.1} parent=87 // pred_check
          %p3724 = pneg %p333
        $region90: #{conv_lstm_forward.1} parent=87 // pred_check_branch
          %3726 = sbr.rel (%p3724) target = $region92
        $region91: #{conv_lstm_forward.1} parent=87 // pred_region
          %s3727 = sand.u32 %s318, 1
          %s3728 = scalar_lea.sflag [#allocation8], %s3727
          %s3729 = sand.u32 %s318, 1
          %s3730 = scalar_lea.vmem [#allocation11], %s3729
          %3732 = dma.done %s3728, 16
        $region92: #{conv_lstm_forward.1} parent=87 // pred_fallthru
          _
      $region88: #{conv_lstm_forward.1} parent=5 // pred_fallthru
        _
    $region6: #{conv_lstm_forward.1} parent=1 // loop_footer
      %s30 = sadd.s32 1, %s26
    $region7: #{conv_lstm_forward.1} parent=1 // loop_footer_branch
      %25 = sbr.rel target = $region3
    $region8: #{conv_lstm_forward.1} parent=1 // loop_exit
      _
    %3733 = vsyncpa [#allocation7], 1
    %s3734 = scalar_lea.sflag [#allocation7], 1
    %3735 = vsyncpa %s3734, 1
    %3736 = vsyncpa [#allocation10], 1
    %3737 = vsyncpa [#allocation8], 1
    %s3738 = scalar_lea.sflag [#allocation8], 1
    %3739 = vsyncpa %s3738, 1

</llo_original>
